<compile_context>
chip_gen: v6e
topology: v6e:2x2x1
jax: 0.10.0
libtpu: 0.0.40
codegen_flags: <defaults>
</compile_context>

<pallas_src>
import jax
import jax.numpy as jnp
import numpy as np
from jax.experimental import pallas as pl
from jax.experimental.pallas import tpu as pltpu


def nerlstm_crf_kernel(
    emb_ref,                          # (bb, S, E) f32 embedded tokens (batch-major block)
    wif_ref, bf_ref,                  # fwd LSTM input proj: (E, 4H), (1, 4H)
    wib_ref, bbw_ref,                 # bwd LSTM input proj: (E, 4H), (1, 4H)
    whblk_ref,                        # block-diag recurrence weight: (2H, 8H)
    wtf_ref, wtb_ref, bt_ref,         # hidden2tag split: (H, T), (H, T), (1, T)
    start_ref, end_ref, transT_ref,   # CRF: (1, T), (1, T), (T, T) = transitions.T
    out_ref,                          # (bb, S) int32 decoded best tags
):
    bb, S, E = emb_ref.shape
    H = wtf_ref.shape[0]
    T = transT_ref.shape[0]
    G = 4 * H

    # ---------------- hoisted input projections (one big matmul / direction) -
    emb2 = emb_ref[...].reshape(bb * S, E)
    xg_f = (jnp.dot(emb2, wif_ref[...], preferred_element_type=jnp.float32)
            + bf_ref[...]).reshape(bb, S, G)
    xg_b = (jnp.dot(emb2, wib_ref[...], preferred_element_type=jnp.float32)
            + bbw_ref[...]).reshape(bb, S, G)

    wh_blk = whblk_ref[...]                           # hoisted weight load (2H, 8H)

    # ---------------- interleaved bidirectional LSTM (PyTorch gate order) ----
    # Single fused block-diagonal recurrence matmul per step:
    #   [h_f | h_b] @ blockdiag(Whh_f, Whh_b) = [h_f@Whh_f | h_b@Whh_b]
    h_f = jnp.zeros((bb, H), jnp.float32)
    c_f = jnp.zeros((bb, H), jnp.float32)
    h_b = jnp.zeros((bb, H), jnp.float32)
    c_b = jnp.zeros((bb, H), jnp.float32)
    hf_seq = [None] * S                               # hidden outputs stay in vregs
    hb_seq = [None] * S
    for i in range(S):                                # statically unrolled
        tb = S - 1 - i
        hh = jnp.concatenate([h_f, h_b], axis=-1)     # (bb, 2H)
        g = jnp.dot(hh, wh_blk, preferred_element_type=jnp.float32)   # (bb, 8H)
        g_f = xg_f[:, i, :] + g[:, 0:G]
        g_b = xg_b[:, tb, :] + g[:, G:2 * G]

        i_fg = jax.nn.sigmoid(g_f[:, 0:H])
        f_fg = jax.nn.sigmoid(g_f[:, H:2 * H])
        gg_f = jnp.tanh(g_f[:, 2 * H:3 * H])
        o_fg = jax.nn.sigmoid(g_f[:, 3 * H:G])
        c_f = f_fg * c_f + i_fg * gg_f
        h_f = o_fg * jnp.tanh(c_f)

        i_bg = jax.nn.sigmoid(g_b[:, 0:H])
        f_bg = jax.nn.sigmoid(g_b[:, H:2 * H])
        gg_b = jnp.tanh(g_b[:, 2 * H:3 * H])
        o_bg = jax.nn.sigmoid(g_b[:, 3 * H:G])
        c_b = f_bg * c_b + i_bg * gg_b
        h_b = o_bg * jnp.tanh(c_b)

        hf_seq[i] = h_f
        hb_seq[tb] = h_b

    # ---------------- dropout: identity at inference -------------------------
    # ---------------- hidden2tag: two hoisted matmuls on the in-vreg hiddens -
    hf_all = jnp.concatenate(hf_seq, axis=0)          # (S*bb, H), time-major
    hb_all = jnp.concatenate(hb_seq, axis=0)          # (S*bb, H), time-major
    emis = (jnp.dot(hf_all, wtf_ref[...], preferred_element_type=jnp.float32)
            + jnp.dot(hb_all, wtb_ref[...], preferred_element_type=jnp.float32)
            + bt_ref[...]).reshape(S, bb, T)

    # ---------------- CRF Viterbi decode (no mask -> all steps valid) --------
    # TODO(synk): at larger T, fold the backpointer into the max reduction
    #             (packed value/index key) to save one XLU reduction per step.
    transT = transT_ref[...]
    frm_idx = jax.lax.broadcasted_iota(jnp.int32, (bb, T, T), 2)   # hoisted
    lane_T = jax.lax.broadcasted_iota(jnp.int32, (bb, T), 1)       # hoisted

    score = start_ref[...] + emis[0]                               # (bb, T)
    hist = []
    for t in range(1, S):                                          # unrolled
        # cand[b, to, frm] = score[b, frm] + transitions[frm, to] + e_t[b, to]
        cand = (score[:, None, :] + transT[None, :, :]
                + emis[t][:, :, None])                             # (bb, T, T)
        mx = jnp.max(cand, axis=-1)                                # one reduction
        bp = jnp.min(jnp.where(cand == mx[:, :, None], frm_idx, T), axis=-1)
        score = mx
        hist.append(bp.astype(jnp.int32))

    fin = score + end_ref[...]                                     # (bb, T)
    fm = jnp.max(fin, axis=-1, keepdims=True)
    cur = jnp.min(jnp.where(fin == fm, lane_T, T),
                  axis=-1, keepdims=True).astype(jnp.int32)        # (bb, 1)

    # backtrack: tag[t-1] = hist[t][b, tag[t]]  (one-hot gather, unrolled)
    tags = [None] * S
    tags[S - 1] = cur
    for t in range(S - 1, 0, -1):
        cur = jnp.sum(jnp.where(lane_T == cur, hist[t - 1], 0),
                      axis=-1, keepdims=True).astype(jnp.int32)
        tags[t - 1] = cur

    # single store of the whole decoded block
    out_ref[...] = jnp.concatenate(tags, axis=1)                   # (bb, S)


def nerlstm_crf_forward(tokens, params, *, batch_blocks=1):
    """tokens: (B, S) int32 -> best tags (B, S) int32."""
    B, S = tokens.shape
    emb = jnp.take(params["embedding"], tokens, axis=0)            # (B, S, E) batch-major
    E = emb.shape[-1]
    H = params["whf"].shape[0]

    # Only split the batch across the grid when each block keeps >= 8
    # sublane-full rows (v7x 2-TC split); otherwise a single grid step.
    if batch_blocks > 1 and (B % batch_blocks != 0 or B // batch_blocks < 8):
        batch_blocks = 1
    bblk = B // batch_blocks                                       # batch tile per grid step

    # Block-diagonal recurrence weight, built once in the wrapper.
    zero = jnp.zeros((H, 4 * H), jnp.float32)
    wh_blk = jnp.concatenate(
        [jnp.concatenate([params["whf"], zero], axis=1),
         jnp.concatenate([zero, params["whb"]], axis=1)], axis=0)  # (2H, 8H)

    # hidden2tag weight split per direction (fwd rows / bwd rows).
    wtf = params["wt"][:H, :]                                      # (H, T)
    wtb = params["wt"][H:, :]                                      # (H, T)

    def full_spec(shape):
        n = len(shape)
        return pl.BlockSpec(shape, lambda b, n=n: (0,) * n)

    in_specs = [
        pl.BlockSpec((bblk, S, E), lambda b: (b, 0, 0)),           # emb, batch-tiled
        full_spec(params["wif"].shape), full_spec(params["bf"].shape),
        full_spec(params["wib"].shape), full_spec(params["bb"].shape),
        full_spec(wh_blk.shape),
        full_spec(wtf.shape), full_spec(wtb.shape), full_spec(params["bt"].shape),
        full_spec(params["start"].shape), full_spec(params["end"].shape),
        full_spec(params["transT"].shape),
    ]

    out = pl.pallas_call(
        nerlstm_crf_kernel,
        out_shape=jax.ShapeDtypeStruct((B, S), jnp.int32),
        grid=(batch_blocks,),
        in_specs=in_specs,
        out_specs=pl.BlockSpec((bblk, S), lambda b: (b, 0)),
        compiler_params=pltpu.CompilerParams(
            dimension_semantics=("parallel",),         # v7x: 2 TCs split the batch
            vmem_limit_bytes=32 * 1024 * 1024,
        ),
    )(emb,
      params["wif"], params["bf"],
      params["wib"], params["bb"],
      wh_blk,
      wtf, wtb, params["bt"],
      params["start"], params["end"], params["transT"])
    return out                                                     # (B, S)


def init_params(key, vocab_size, embedding_dim, hidden_dim, tagset_size):
    """Deterministic synthetic parameters matching the module's shapes.

    PyTorch shapes: embedding (V, E); LSTM per-direction weight_ih (4H, E),
    weight_hh (4H, H), biases (4H,); hidden2tag (T, 2H) + (T,);
    CRF start/end (T,), transitions (T, T).  Stored pre-transposed for the kernel.
    """
    H = hidden_dim // 2
    ks = jax.random.split(key, 12)

    def rnd(k, shape, scale=0.1):
        return jax.random.normal(k, shape, dtype=jnp.float32) * scale

    p = {}
    p["embedding"] = rnd(ks[0], (vocab_size, embedding_dim), 0.5)
    p["wif"] = rnd(ks[1], (embedding_dim, 4 * H))        # weight_ih_l0.T
    p["whf"] = rnd(ks[2], (H, 4 * H))                    # weight_hh_l0.T
    p["bf"] = rnd(ks[3], (1, 4 * H))                     # b_ih_l0 + b_hh_l0
    p["wib"] = rnd(ks[4], (embedding_dim, 4 * H))        # reverse direction
    p["whb"] = rnd(ks[5], (H, 4 * H))
    p["bb"] = rnd(ks[6], (1, 4 * H))
    p["wt"] = rnd(ks[7], (2 * H, tagset_size))           # hidden2tag weight.T (fused)
    p["bt"] = rnd(ks[8], (1, tagset_size))
    p["start"] = rnd(ks[9], (1, tagset_size))            # CRF start_transitions
    p["end"] = rnd(ks[10], (1, tagset_size))             # CRF end_transitions
    p["transT"] = rnd(ks[11], (tagset_size, tagset_size))  # transitions.T
    return p


def reference_forward(tokens, params):
    """Pure-JAX reference replicating embedding -> BiLSTM -> linear -> Viterbi."""
    emb = jnp.take(params["embedding"], tokens, axis=0)            # (B, S, E)
    B, S, E = emb.shape
    H = params["whf"].shape[0]
    T = params["transT"].shape[0]

    def lstm(wi, wh, b, reverse):
        xg = (emb.reshape(B * S, E) @ wi + b).reshape(B, S, 4 * H)
        h = jnp.zeros((B, H), jnp.float32)
        c = jnp.zeros((B, H), jnp.float32)
        outs = [None] * S
        order = range(S - 1, -1, -1) if reverse else range(S)
        for t in order:
            g = xg[:, t, :] + h @ wh
            i_g = jax.nn.sigmoid(g[:, :H])
            f_g = jax.nn.sigmoid(g[:, H:2 * H])
            g_g = jnp.tanh(g[:, 2 * H:3 * H])
            o_g = jax.nn.sigmoid(g[:, 3 * H:])
            c = f_g * c + i_g * g_g
            h = o_g * jnp.tanh(c)
            outs[t] = h
        return jnp.stack(outs, axis=1)                             # (B, S, H)

    hf = lstm(params["wif"], params["whf"], params["bf"], False)
    hb = lstm(params["wib"], params["whb"], params["bb"], True)
    h2 = jnp.concatenate([hf, hb], axis=-1).reshape(B * S, 2 * H)
    emis = (h2 @ params["wt"] + params["bt"]).reshape(B, S, T)

    trans = params["transT"].T                                     # (from, to)
    score = params["start"] + emis[:, 0, :]
    hist = []
    for t in range(1, S):
        cand = score[:, :, None] + trans[None] + emis[:, t, :][:, None, :]  # (B, frm, to)
        hist.append(jnp.argmax(cand, axis=1))
        score = jnp.max(cand, axis=1)
    score = score + params["end"]
    best = jnp.argmax(score, axis=-1)
    tags = [best]
    for bp in reversed(hist):
        best = jnp.take_along_axis(bp, best[:, None], axis=1)[:, 0]
        tags.append(best)
    tags.reverse()
    return jnp.stack(tags, axis=1).astype(jnp.int32)               # (B, S)


if __name__ == "__main__":
    B, S = 2, 8
    embedding_dim, hidden_dim, tagset_size = 16, 32, 5
    vocab_size = 50 + 1  # len(word2id) + 1

    key = jax.random.PRNGKey(0)
    pkey, dkey = jax.random.split(key)
    params = init_params(pkey, vocab_size, embedding_dim, hidden_dim, tagset_size)
    tokens = jax.random.randint(dkey, (B, S), 0, vocab_size, dtype=jnp.int32)

    tags = nerlstm_crf_forward(tokens, params)
    tags = jax.block_until_ready(tags)

    ref = reference_forward(tokens, params)
    assert tags.shape == (B, S) and tags.dtype == jnp.int32
    np.testing.assert_array_equal(np.asarray(tags), np.asarray(ref))
    print("KERNEL_OK")
</pallas_src>

<mosaic_0001>
module attributes {stable_mosaic.version = 11 : i64} {
  func.func @nerlstm_crf_kernel(%arg0: i32, %arg1: memref<2x8x16xf32, #tpu.memory_space<vmem>>, %arg2: memref<16x64xf32, #tpu.memory_space<vmem>>, %arg3: memref<1x64xf32, #tpu.memory_space<vmem>>, %arg4: memref<16x64xf32, #tpu.memory_space<vmem>>, %arg5: memref<1x64xf32, #tpu.memory_space<vmem>>, %arg6: memref<32x128xf32, #tpu.memory_space<vmem>>, %arg7: memref<16x5xf32, #tpu.memory_space<vmem>>, %arg8: memref<16x5xf32, #tpu.memory_space<vmem>>, %arg9: memref<1x5xf32, #tpu.memory_space<vmem>>, %arg10: memref<1x5xf32, #tpu.memory_space<vmem>>, %arg11: memref<1x5xf32, #tpu.memory_space<vmem>>, %arg12: memref<5x5xf32, #tpu.memory_space<vmem>>, %arg13: memref<2x8xi32, #tpu.memory_space<vmem>>) attributes {dimension_semantics = [#tpu.dimension_semantics<parallel>], iteration_bounds = array<i64: 1>, scalar_prefetch = 0 : i64, scratch_operands = 0 : i64, tpu.core_type = #tpu.core_type<tc>, window_params = [{transform_indices = @transform_0, window_bounds = array<i64: 2, 8, 16>}, {pipeline_mode = #tpu.pipeline_mode<synchronous>, transform_indices = @transform_1, window_bounds = array<i64: 16, 64>}, {pipeline_mode = #tpu.pipeline_mode<synchronous>, transform_indices = @transform_2, window_bounds = array<i64: 1, 64>}, {pipeline_mode = #tpu.pipeline_mode<synchronous>, transform_indices = @transform_3, window_bounds = array<i64: 16, 64>}, {pipeline_mode = #tpu.pipeline_mode<synchronous>, transform_indices = @transform_4, window_bounds = array<i64: 1, 64>}, {pipeline_mode = #tpu.pipeline_mode<synchronous>, transform_indices = @transform_5, window_bounds = array<i64: 32, 128>}, {pipeline_mode = #tpu.pipeline_mode<synchronous>, transform_indices = @transform_6, window_bounds = array<i64: 16, 5>}, {pipeline_mode = #tpu.pipeline_mode<synchronous>, transform_indices = @transform_7, window_bounds = array<i64: 16, 5>}, {pipeline_mode = #tpu.pipeline_mode<synchronous>, transform_indices = @transform_8, window_bounds = array<i64: 1, 5>}, {pipeline_mode = #tpu.pipeline_mode<synchronous>, transform_indices = @transform_9, window_bounds = array<i64: 1, 5>}, {pipeline_mode = #tpu.pipeline_mode<synchronous>, transform_indices = @transform_10, window_bounds = array<i64: 1, 5>}, {pipeline_mode = #tpu.pipeline_mode<synchronous>, transform_indices = @transform_11, window_bounds = array<i64: 5, 5>}, {transform_indices = @transform_12, window_bounds = array<i64: 2, 8>}]} {
    %c0 = arith.constant 0 : index
    %c0_0 = arith.constant 0 : index
    %c0_1 = arith.constant 0 : index
    %0 = vector.load %arg1[%c0, %c0_0, %c0_1] : memref<2x8x16xf32, #tpu.memory_space<vmem>>, vector<2x8x16xf32>
    %1 = vector.shape_cast %0 : vector<2x8x16xf32> to vector<16x16xf32>
    %c0_2 = arith.constant 0 : index
    %c0_3 = arith.constant 0 : index
    %2 = vector.load %arg2[%c0_2, %c0_3] : memref<16x64xf32, #tpu.memory_space<vmem>>, vector<16x64xf32>
    %cst = arith.constant dense<0.000000e+00> : vector<16x64xf32>
    %3 = tpu.matmul %1, %2, %cst {dimension_numbers = #tpu.dot_dimension_numbers<[1], [0], [0], [1], [0, 0, 1, 1], [], []>} : vector<16x16xf32>, vector<16x64xf32>, vector<16x64xf32> -> vector<16x64xf32>
    %c0_4 = arith.constant 0 : index
    %c0_5 = arith.constant 0 : index
    %4 = vector.load %arg3[%c0_4, %c0_5] : memref<1x64xf32, #tpu.memory_space<vmem>>, vector<1x64xf32>
    %5 = vector.broadcast %4 : vector<1x64xf32> to vector<16x64xf32>
    %6 = arith.addf %3, %5 : vector<16x64xf32>
    %7 = vector.shape_cast %6 : vector<16x64xf32> to vector<2x8x64xf32>
    %c0_6 = arith.constant 0 : index
    %c0_7 = arith.constant 0 : index
    %8 = vector.load %arg4[%c0_6, %c0_7] : memref<16x64xf32, #tpu.memory_space<vmem>>, vector<16x64xf32>
    %cst_8 = arith.constant dense<0.000000e+00> : vector<16x64xf32>
    %9 = tpu.matmul %1, %8, %cst_8 {dimension_numbers = #tpu.dot_dimension_numbers<[1], [0], [0], [1], [0, 0, 1, 1], [], []>} : vector<16x16xf32>, vector<16x64xf32>, vector<16x64xf32> -> vector<16x64xf32>
    %c0_9 = arith.constant 0 : index
    %c0_10 = arith.constant 0 : index
    %10 = vector.load %arg5[%c0_9, %c0_10] : memref<1x64xf32, #tpu.memory_space<vmem>>, vector<1x64xf32>
    %11 = vector.broadcast %10 : vector<1x64xf32> to vector<16x64xf32>
    %12 = arith.addf %9, %11 : vector<16x64xf32>
    %13 = vector.shape_cast %12 : vector<16x64xf32> to vector<2x8x64xf32>
    %c0_11 = arith.constant 0 : index
    %c0_12 = arith.constant 0 : index
    %14 = vector.load %arg6[%c0_11, %c0_12] : memref<32x128xf32, #tpu.memory_space<vmem>>, vector<32x128xf32>
    %cst_13 = arith.constant 0.000000e+00 : f32
    %15 = vector.broadcast %cst_13 : f32 to vector<2x16xf32>
    %cst_14 = arith.constant 0.000000e+00 : f32
    %16 = vector.broadcast %cst_14 : f32 to vector<2x16xf32>
    %cst_15 = arith.constant 0.000000e+00 : f32
    %17 = vector.broadcast %cst_15 : f32 to vector<2x16xf32>
    %cst_16 = arith.constant 0.000000e+00 : f32
    %18 = vector.broadcast %cst_16 : f32 to vector<2x16xf32>
    %19 = tpu.concatenate %15, %17 in 1 : vector<2x16xf32>, vector<2x16xf32> -> vector<2x32xf32>
    %cst_17 = arith.constant dense<0.000000e+00> : vector<2x128xf32>
    %20 = tpu.matmul %19, %14, %cst_17 {dimension_numbers = #tpu.dot_dimension_numbers<[1], [0], [0], [1], [0, 0, 1, 1], [], []>} : vector<2x32xf32>, vector<32x128xf32>, vector<2x128xf32> -> vector<2x128xf32>
    %21 = vector.extract_strided_slice %7 {offsets = [0, 0, 0], sizes = [2, 1, 64], strides = [1, 1, 1]} : vector<2x8x64xf32> to vector<2x1x64xf32>
    %22 = vector.shape_cast %21 : vector<2x1x64xf32> to vector<2x64xf32>
    %23 = vector.extract_strided_slice %20 {offsets = [0, 0], sizes = [2, 64], strides = [1, 1]} : vector<2x128xf32> to vector<2x64xf32>
    %24 = arith.addf %22, %23 : vector<2x64xf32>
    %25 = vector.extract_strided_slice %13 {offsets = [0, 7, 0], sizes = [2, 1, 64], strides = [1, 1, 1]} : vector<2x8x64xf32> to vector<2x1x64xf32>
    %26 = vector.shape_cast %25 : vector<2x1x64xf32> to vector<2x64xf32>
    %27 = vector.extract_strided_slice %20 {offsets = [0, 64], sizes = [2, 64], strides = [1, 1]} : vector<2x128xf32> to vector<2x64xf32>
    %28 = arith.addf %26, %27 : vector<2x64xf32>
    %29 = vector.extract_strided_slice %24 {offsets = [0, 0], sizes = [2, 16], strides = [1, 1]} : vector<2x64xf32> to vector<2x16xf32>
    %30 = arith.negf %29 : vector<2x16xf32>
    %31 = math.exp %30 : vector<2x16xf32>
    %cst_18 = arith.constant 1.000000e+00 : f32
    %32 = vector.broadcast %cst_18 : f32 to vector<2x16xf32>
    %33 = arith.addf %32, %31 : vector<2x16xf32>
    %34 = arith.divf %32, %33 : vector<2x16xf32>
    %35 = vector.extract_strided_slice %24 {offsets = [0, 16], sizes = [2, 16], strides = [1, 1]} : vector<2x64xf32> to vector<2x16xf32>
    %36 = arith.negf %35 : vector<2x16xf32>
    %37 = math.exp %36 : vector<2x16xf32>
    %cst_19 = arith.constant 1.000000e+00 : f32
    %38 = vector.broadcast %cst_19 : f32 to vector<2x16xf32>
    %39 = arith.addf %38, %37 : vector<2x16xf32>
    %40 = arith.divf %38, %39 : vector<2x16xf32>
    %41 = vector.extract_strided_slice %24 {offsets = [0, 32], sizes = [2, 16], strides = [1, 1]} : vector<2x64xf32> to vector<2x16xf32>
    %42 = math.tanh %41 : vector<2x16xf32>
    %43 = vector.extract_strided_slice %24 {offsets = [0, 48], sizes = [2, 16], strides = [1, 1]} : vector<2x64xf32> to vector<2x16xf32>
    %44 = arith.negf %43 : vector<2x16xf32>
    %45 = math.exp %44 : vector<2x16xf32>
    %cst_20 = arith.constant 1.000000e+00 : f32
    %46 = vector.broadcast %cst_20 : f32 to vector<2x16xf32>
    %47 = arith.addf %46, %45 : vector<2x16xf32>
    %48 = arith.divf %46, %47 : vector<2x16xf32>
    %49 = arith.mulf %40, %16 : vector<2x16xf32>
    %50 = arith.mulf %34, %42 : vector<2x16xf32>
    %51 = arith.addf %49, %50 : vector<2x16xf32>
    %52 = math.tanh %51 : vector<2x16xf32>
    %53 = arith.mulf %48, %52 : vector<2x16xf32>
    %54 = vector.extract_strided_slice %28 {offsets = [0, 0], sizes = [2, 16], strides = [1, 1]} : vector<2x64xf32> to vector<2x16xf32>
    %55 = arith.negf %54 : vector<2x16xf32>
    %56 = math.exp %55 : vector<2x16xf32>
    %cst_21 = arith.constant 1.000000e+00 : f32
    %57 = vector.broadcast %cst_21 : f32 to vector<2x16xf32>
    %58 = arith.addf %57, %56 : vector<2x16xf32>
    %59 = arith.divf %57, %58 : vector<2x16xf32>
    %60 = vector.extract_strided_slice %28 {offsets = [0, 16], sizes = [2, 16], strides = [1, 1]} : vector<2x64xf32> to vector<2x16xf32>
    %61 = arith.negf %60 : vector<2x16xf32>
    %62 = math.exp %61 : vector<2x16xf32>
    %cst_22 = arith.constant 1.000000e+00 : f32
    %63 = vector.broadcast %cst_22 : f32 to vector<2x16xf32>
    %64 = arith.addf %63, %62 : vector<2x16xf32>
    %65 = arith.divf %63, %64 : vector<2x16xf32>
    %66 = vector.extract_strided_slice %28 {offsets = [0, 32], sizes = [2, 16], strides = [1, 1]} : vector<2x64xf32> to vector<2x16xf32>
    %67 = math.tanh %66 : vector<2x16xf32>
    %68 = vector.extract_strided_slice %28 {offsets = [0, 48], sizes = [2, 16], strides = [1, 1]} : vector<2x64xf32> to vector<2x16xf32>
    %69 = arith.negf %68 : vector<2x16xf32>
    %70 = math.exp %69 : vector<2x16xf32>
    %cst_23 = arith.constant 1.000000e+00 : f32
    %71 = vector.broadcast %cst_23 : f32 to vector<2x16xf32>
    %72 = arith.addf %71, %70 : vector<2x16xf32>
    %73 = arith.divf %71, %72 : vector<2x16xf32>
    %74 = arith.mulf %65, %18 : vector<2x16xf32>
    %75 = arith.mulf %59, %67 : vector<2x16xf32>
    %76 = arith.addf %74, %75 : vector<2x16xf32>
    %77 = math.tanh %76 : vector<2x16xf32>
    %78 = arith.mulf %73, %77 : vector<2x16xf32>
    %79 = tpu.concatenate %53, %78 in 1 : vector<2x16xf32>, vector<2x16xf32> -> vector<2x32xf32>
    %cst_24 = arith.constant dense<0.000000e+00> : vector<2x128xf32>
    %80 = tpu.matmul %79, %14, %cst_24 {dimension_numbers = #tpu.dot_dimension_numbers<[1], [0], [0], [1], [0, 0, 1, 1], [], []>} : vector<2x32xf32>, vector<32x128xf32>, vector<2x128xf32> -> vector<2x128xf32>
    %81 = vector.extract_strided_slice %7 {offsets = [0, 1, 0], sizes = [2, 1, 64], strides = [1, 1, 1]} : vector<2x8x64xf32> to vector<2x1x64xf32>
    %82 = vector.shape_cast %81 : vector<2x1x64xf32> to vector<2x64xf32>
    %83 = vector.extract_strided_slice %80 {offsets = [0, 0], sizes = [2, 64], strides = [1, 1]} : vector<2x128xf32> to vector<2x64xf32>
    %84 = arith.addf %82, %83 : vector<2x64xf32>
    %85 = vector.extract_strided_slice %13 {offsets = [0, 6, 0], sizes = [2, 1, 64], strides = [1, 1, 1]} : vector<2x8x64xf32> to vector<2x1x64xf32>
    %86 = vector.shape_cast %85 : vector<2x1x64xf32> to vector<2x64xf32>
    %87 = vector.extract_strided_slice %80 {offsets = [0, 64], sizes = [2, 64], strides = [1, 1]} : vector<2x128xf32> to vector<2x64xf32>
    %88 = arith.addf %86, %87 : vector<2x64xf32>
    %89 = vector.extract_strided_slice %84 {offsets = [0, 0], sizes = [2, 16], strides = [1, 1]} : vector<2x64xf32> to vector<2x16xf32>
    %90 = arith.negf %89 : vector<2x16xf32>
    %91 = math.exp %90 : vector<2x16xf32>
    %cst_25 = arith.constant 1.000000e+00 : f32
    %92 = vector.broadcast %cst_25 : f32 to vector<2x16xf32>
    %93 = arith.addf %92, %91 : vector<2x16xf32>
    %94 = arith.divf %92, %93 : vector<2x16xf32>
    %95 = vector.extract_strided_slice %84 {offsets = [0, 16], sizes = [2, 16], strides = [1, 1]} : vector<2x64xf32> to vector<2x16xf32>
    %96 = arith.negf %95 : vector<2x16xf32>
    %97 = math.exp %96 : vector<2x16xf32>
    %cst_26 = arith.constant 1.000000e+00 : f32
    %98 = vector.broadcast %cst_26 : f32 to vector<2x16xf32>
    %99 = arith.addf %98, %97 : vector<2x16xf32>
    %100 = arith.divf %98, %99 : vector<2x16xf32>
    %101 = vector.extract_strided_slice %84 {offsets = [0, 32], sizes = [2, 16], strides = [1, 1]} : vector<2x64xf32> to vector<2x16xf32>
    %102 = math.tanh %101 : vector<2x16xf32>
    %103 = vector.extract_strided_slice %84 {offsets = [0, 48], sizes = [2, 16], strides = [1, 1]} : vector<2x64xf32> to vector<2x16xf32>
    %104 = arith.negf %103 : vector<2x16xf32>
    %105 = math.exp %104 : vector<2x16xf32>
    %cst_27 = arith.constant 1.000000e+00 : f32
    %106 = vector.broadcast %cst_27 : f32 to vector<2x16xf32>
    %107 = arith.addf %106, %105 : vector<2x16xf32>
    %108 = arith.divf %106, %107 : vector<2x16xf32>
    %109 = arith.mulf %100, %51 : vector<2x16xf32>
    %110 = arith.mulf %94, %102 : vector<2x16xf32>
    %111 = arith.addf %109, %110 : vector<2x16xf32>
    %112 = math.tanh %111 : vector<2x16xf32>
    %113 = arith.mulf %108, %112 : vector<2x16xf32>
    %114 = vector.extract_strided_slice %88 {offsets = [0, 0], sizes = [2, 16], strides = [1, 1]} : vector<2x64xf32> to vector<2x16xf32>
    %115 = arith.negf %114 : vector<2x16xf32>
    %116 = math.exp %115 : vector<2x16xf32>
    %cst_28 = arith.constant 1.000000e+00 : f32
    %117 = vector.broadcast %cst_28 : f32 to vector<2x16xf32>
    %118 = arith.addf %117, %116 : vector<2x16xf32>
    %119 = arith.divf %117, %118 : vector<2x16xf32>
    %120 = vector.extract_strided_slice %88 {offsets = [0, 16], sizes = [2, 16], strides = [1, 1]} : vector<2x64xf32> to vector<2x16xf32>
    %121 = arith.negf %120 : vector<2x16xf32>
    %122 = math.exp %121 : vector<2x16xf32>
    %cst_29 = arith.constant 1.000000e+00 : f32
    %123 = vector.broadcast %cst_29 : f32 to vector<2x16xf32>
    %124 = arith.addf %123, %122 : vector<2x16xf32>
    %125 = arith.divf %123, %124 : vector<2x16xf32>
    %126 = vector.extract_strided_slice %88 {offsets = [0, 32], sizes = [2, 16], strides = [1, 1]} : vector<2x64xf32> to vector<2x16xf32>
    %127 = math.tanh %126 : vector<2x16xf32>
    %128 = vector.extract_strided_slice %88 {offsets = [0, 48], sizes = [2, 16], strides = [1, 1]} : vector<2x64xf32> to vector<2x16xf32>
    %129 = arith.negf %128 : vector<2x16xf32>
    %130 = math.exp %129 : vector<2x16xf32>
    %cst_30 = arith.constant 1.000000e+00 : f32
    %131 = vector.broadcast %cst_30 : f32 to vector<2x16xf32>
    %132 = arith.addf %131, %130 : vector<2x16xf32>
    %133 = arith.divf %131, %132 : vector<2x16xf32>
    %134 = arith.mulf %125, %76 : vector<2x16xf32>
    %135 = arith.mulf %119, %127 : vector<2x16xf32>
    %136 = arith.addf %134, %135 : vector<2x16xf32>
    %137 = math.tanh %136 : vector<2x16xf32>
    %138 = arith.mulf %133, %137 : vector<2x16xf32>
    %139 = tpu.concatenate %113, %138 in 1 : vector<2x16xf32>, vector<2x16xf32> -> vector<2x32xf32>
    %cst_31 = arith.constant dense<0.000000e+00> : vector<2x128xf32>
    %140 = tpu.matmul %139, %14, %cst_31 {dimension_numbers = #tpu.dot_dimension_numbers<[1], [0], [0], [1], [0, 0, 1, 1], [], []>} : vector<2x32xf32>, vector<32x128xf32>, vector<2x128xf32> -> vector<2x128xf32>
    %141 = vector.extract_strided_slice %7 {offsets = [0, 2, 0], sizes = [2, 1, 64], strides = [1, 1, 1]} : vector<2x8x64xf32> to vector<2x1x64xf32>
    %142 = vector.shape_cast %141 : vector<2x1x64xf32> to vector<2x64xf32>
    %143 = vector.extract_strided_slice %140 {offsets = [0, 0], sizes = [2, 64], strides = [1, 1]} : vector<2x128xf32> to vector<2x64xf32>
    %144 = arith.addf %142, %143 : vector<2x64xf32>
    %145 = vector.extract_strided_slice %13 {offsets = [0, 5, 0], sizes = [2, 1, 64], strides = [1, 1, 1]} : vector<2x8x64xf32> to vector<2x1x64xf32>
    %146 = vector.shape_cast %145 : vector<2x1x64xf32> to vector<2x64xf32>
    %147 = vector.extract_strided_slice %140 {offsets = [0, 64], sizes = [2, 64], strides = [1, 1]} : vector<2x128xf32> to vector<2x64xf32>
    %148 = arith.addf %146, %147 : vector<2x64xf32>
    %149 = vector.extract_strided_slice %144 {offsets = [0, 0], sizes = [2, 16], strides = [1, 1]} : vector<2x64xf32> to vector<2x16xf32>
    %150 = arith.negf %149 : vector<2x16xf32>
    %151 = math.exp %150 : vector<2x16xf32>
    %cst_32 = arith.constant 1.000000e+00 : f32
    %152 = vector.broadcast %cst_32 : f32 to vector<2x16xf32>
    %153 = arith.addf %152, %151 : vector<2x16xf32>
    %154 = arith.divf %152, %153 : vector<2x16xf32>
    %155 = vector.extract_strided_slice %144 {offsets = [0, 16], sizes = [2, 16], strides = [1, 1]} : vector<2x64xf32> to vector<2x16xf32>
    %156 = arith.negf %155 : vector<2x16xf32>
    %157 = math.exp %156 : vector<2x16xf32>
    %cst_33 = arith.constant 1.000000e+00 : f32
    %158 = vector.broadcast %cst_33 : f32 to vector<2x16xf32>
    %159 = arith.addf %158, %157 : vector<2x16xf32>
    %160 = arith.divf %158, %159 : vector<2x16xf32>
    %161 = vector.extract_strided_slice %144 {offsets = [0, 32], sizes = [2, 16], strides = [1, 1]} : vector<2x64xf32> to vector<2x16xf32>
    %162 = math.tanh %161 : vector<2x16xf32>
    %163 = vector.extract_strided_slice %144 {offsets = [0, 48], sizes = [2, 16], strides = [1, 1]} : vector<2x64xf32> to vector<2x16xf32>
    %164 = arith.negf %163 : vector<2x16xf32>
    %165 = math.exp %164 : vector<2x16xf32>
    %cst_34 = arith.constant 1.000000e+00 : f32
    %166 = vector.broadcast %cst_34 : f32 to vector<2x16xf32>
    %167 = arith.addf %166, %165 : vector<2x16xf32>
    %168 = arith.divf %166, %167 : vector<2x16xf32>
    %169 = arith.mulf %160, %111 : vector<2x16xf32>
    %170 = arith.mulf %154, %162 : vector<2x16xf32>
    %171 = arith.addf %169, %170 : vector<2x16xf32>
    %172 = math.tanh %171 : vector<2x16xf32>
    %173 = arith.mulf %168, %172 : vector<2x16xf32>
    %174 = vector.extract_strided_slice %148 {offsets = [0, 0], sizes = [2, 16], strides = [1, 1]} : vector<2x64xf32> to vector<2x16xf32>
    %175 = arith.negf %174 : vector<2x16xf32>
    %176 = math.exp %175 : vector<2x16xf32>
    %cst_35 = arith.constant 1.000000e+00 : f32
    %177 = vector.broadcast %cst_35 : f32 to vector<2x16xf32>
    %178 = arith.addf %177, %176 : vector<2x16xf32>
    %179 = arith.divf %177, %178 : vector<2x16xf32>
    %180 = vector.extract_strided_slice %148 {offsets = [0, 16], sizes = [2, 16], strides = [1, 1]} : vector<2x64xf32> to vector<2x16xf32>
    %181 = arith.negf %180 : vector<2x16xf32>
    %182 = math.exp %181 : vector<2x16xf32>
    %cst_36 = arith.constant 1.000000e+00 : f32
    %183 = vector.broadcast %cst_36 : f32 to vector<2x16xf32>
    %184 = arith.addf %183, %182 : vector<2x16xf32>
    %185 = arith.divf %183, %184 : vector<2x16xf32>
    %186 = vector.extract_strided_slice %148 {offsets = [0, 32], sizes = [2, 16], strides = [1, 1]} : vector<2x64xf32> to vector<2x16xf32>
    %187 = math.tanh %186 : vector<2x16xf32>
    %188 = vector.extract_strided_slice %148 {offsets = [0, 48], sizes = [2, 16], strides = [1, 1]} : vector<2x64xf32> to vector<2x16xf32>
    %189 = arith.negf %188 : vector<2x16xf32>
    %190 = math.exp %189 : vector<2x16xf32>
    %cst_37 = arith.constant 1.000000e+00 : f32
    %191 = vector.broadcast %cst_37 : f32 to vector<2x16xf32>
    %192 = arith.addf %191, %190 : vector<2x16xf32>
    %193 = arith.divf %191, %192 : vector<2x16xf32>
    %194 = arith.mulf %185, %136 : vector<2x16xf32>
    %195 = arith.mulf %179, %187 : vector<2x16xf32>
    %196 = arith.addf %194, %195 : vector<2x16xf32>
    %197 = math.tanh %196 : vector<2x16xf32>
    %198 = arith.mulf %193, %197 : vector<2x16xf32>
    %199 = tpu.concatenate %173, %198 in 1 : vector<2x16xf32>, vector<2x16xf32> -> vector<2x32xf32>
    %cst_38 = arith.constant dense<0.000000e+00> : vector<2x128xf32>
    %200 = tpu.matmul %199, %14, %cst_38 {dimension_numbers = #tpu.dot_dimension_numbers<[1], [0], [0], [1], [0, 0, 1, 1], [], []>} : vector<2x32xf32>, vector<32x128xf32>, vector<2x128xf32> -> vector<2x128xf32>
    %201 = vector.extract_strided_slice %7 {offsets = [0, 3, 0], sizes = [2, 1, 64], strides = [1, 1, 1]} : vector<2x8x64xf32> to vector<2x1x64xf32>
    %202 = vector.shape_cast %201 : vector<2x1x64xf32> to vector<2x64xf32>
    %203 = vector.extract_strided_slice %200 {offsets = [0, 0], sizes = [2, 64], strides = [1, 1]} : vector<2x128xf32> to vector<2x64xf32>
    %204 = arith.addf %202, %203 : vector<2x64xf32>
    %205 = vector.extract_strided_slice %13 {offsets = [0, 4, 0], sizes = [2, 1, 64], strides = [1, 1, 1]} : vector<2x8x64xf32> to vector<2x1x64xf32>
    %206 = vector.shape_cast %205 : vector<2x1x64xf32> to vector<2x64xf32>
    %207 = vector.extract_strided_slice %200 {offsets = [0, 64], sizes = [2, 64], strides = [1, 1]} : vector<2x128xf32> to vector<2x64xf32>
    %208 = arith.addf %206, %207 : vector<2x64xf32>
    %209 = vector.extract_strided_slice %204 {offsets = [0, 0], sizes = [2, 16], strides = [1, 1]} : vector<2x64xf32> to vector<2x16xf32>
    %210 = arith.negf %209 : vector<2x16xf32>
    %211 = math.exp %210 : vector<2x16xf32>
    %cst_39 = arith.constant 1.000000e+00 : f32
    %212 = vector.broadcast %cst_39 : f32 to vector<2x16xf32>
    %213 = arith.addf %212, %211 : vector<2x16xf32>
    %214 = arith.divf %212, %213 : vector<2x16xf32>
    %215 = vector.extract_strided_slice %204 {offsets = [0, 16], sizes = [2, 16], strides = [1, 1]} : vector<2x64xf32> to vector<2x16xf32>
    %216 = arith.negf %215 : vector<2x16xf32>
    %217 = math.exp %216 : vector<2x16xf32>
    %cst_40 = arith.constant 1.000000e+00 : f32
    %218 = vector.broadcast %cst_40 : f32 to vector<2x16xf32>
    %219 = arith.addf %218, %217 : vector<2x16xf32>
    %220 = arith.divf %218, %219 : vector<2x16xf32>
    %221 = vector.extract_strided_slice %204 {offsets = [0, 32], sizes = [2, 16], strides = [1, 1]} : vector<2x64xf32> to vector<2x16xf32>
    %222 = math.tanh %221 : vector<2x16xf32>
    %223 = vector.extract_strided_slice %204 {offsets = [0, 48], sizes = [2, 16], strides = [1, 1]} : vector<2x64xf32> to vector<2x16xf32>
    %224 = arith.negf %223 : vector<2x16xf32>
    %225 = math.exp %224 : vector<2x16xf32>
    %cst_41 = arith.constant 1.000000e+00 : f32
    %226 = vector.broadcast %cst_41 : f32 to vector<2x16xf32>
    %227 = arith.addf %226, %225 : vector<2x16xf32>
    %228 = arith.divf %226, %227 : vector<2x16xf32>
    %229 = arith.mulf %220, %171 : vector<2x16xf32>
    %230 = arith.mulf %214, %222 : vector<2x16xf32>
    %231 = arith.addf %229, %230 : vector<2x16xf32>
    %232 = math.tanh %231 : vector<2x16xf32>
    %233 = arith.mulf %228, %232 : vector<2x16xf32>
    %234 = vector.extract_strided_slice %208 {offsets = [0, 0], sizes = [2, 16], strides = [1, 1]} : vector<2x64xf32> to vector<2x16xf32>
    %235 = arith.negf %234 : vector<2x16xf32>
    %236 = math.exp %235 : vector<2x16xf32>
    %cst_42 = arith.constant 1.000000e+00 : f32
    %237 = vector.broadcast %cst_42 : f32 to vector<2x16xf32>
    %238 = arith.addf %237, %236 : vector<2x16xf32>
    %239 = arith.divf %237, %238 : vector<2x16xf32>
    %240 = vector.extract_strided_slice %208 {offsets = [0, 16], sizes = [2, 16], strides = [1, 1]} : vector<2x64xf32> to vector<2x16xf32>
    %241 = arith.negf %240 : vector<2x16xf32>
    %242 = math.exp %241 : vector<2x16xf32>
    %cst_43 = arith.constant 1.000000e+00 : f32
    %243 = vector.broadcast %cst_43 : f32 to vector<2x16xf32>
    %244 = arith.addf %243, %242 : vector<2x16xf32>
    %245 = arith.divf %243, %244 : vector<2x16xf32>
    %246 = vector.extract_strided_slice %208 {offsets = [0, 32], sizes = [2, 16], strides = [1, 1]} : vector<2x64xf32> to vector<2x16xf32>
    %247 = math.tanh %246 : vector<2x16xf32>
    %248 = vector.extract_strided_slice %208 {offsets = [0, 48], sizes = [2, 16], strides = [1, 1]} : vector<2x64xf32> to vector<2x16xf32>
    %249 = arith.negf %248 : vector<2x16xf32>
    %250 = math.exp %249 : vector<2x16xf32>
    %cst_44 = arith.constant 1.000000e+00 : f32
    %251 = vector.broadcast %cst_44 : f32 to vector<2x16xf32>
    %252 = arith.addf %251, %250 : vector<2x16xf32>
    %253 = arith.divf %251, %252 : vector<2x16xf32>
    %254 = arith.mulf %245, %196 : vector<2x16xf32>
    %255 = arith.mulf %239, %247 : vector<2x16xf32>
    %256 = arith.addf %254, %255 : vector<2x16xf32>
    %257 = math.tanh %256 : vector<2x16xf32>
    %258 = arith.mulf %253, %257 : vector<2x16xf32>
    %259 = tpu.concatenate %233, %258 in 1 : vector<2x16xf32>, vector<2x16xf32> -> vector<2x32xf32>
    %cst_45 = arith.constant dense<0.000000e+00> : vector<2x128xf32>
    %260 = tpu.matmul %259, %14, %cst_45 {dimension_numbers = #tpu.dot_dimension_numbers<[1], [0], [0], [1], [0, 0, 1, 1], [], []>} : vector<2x32xf32>, vector<32x128xf32>, vector<2x128xf32> -> vector<2x128xf32>
    %261 = vector.extract_strided_slice %7 {offsets = [0, 4, 0], sizes = [2, 1, 64], strides = [1, 1, 1]} : vector<2x8x64xf32> to vector<2x1x64xf32>
    %262 = vector.shape_cast %261 : vector<2x1x64xf32> to vector<2x64xf32>
    %263 = vector.extract_strided_slice %260 {offsets = [0, 0], sizes = [2, 64], strides = [1, 1]} : vector<2x128xf32> to vector<2x64xf32>
    %264 = arith.addf %262, %263 : vector<2x64xf32>
    %265 = vector.extract_strided_slice %13 {offsets = [0, 3, 0], sizes = [2, 1, 64], strides = [1, 1, 1]} : vector<2x8x64xf32> to vector<2x1x64xf32>
    %266 = vector.shape_cast %265 : vector<2x1x64xf32> to vector<2x64xf32>
    %267 = vector.extract_strided_slice %260 {offsets = [0, 64], sizes = [2, 64], strides = [1, 1]} : vector<2x128xf32> to vector<2x64xf32>
    %268 = arith.addf %266, %267 : vector<2x64xf32>
    %269 = vector.extract_strided_slice %264 {offsets = [0, 0], sizes = [2, 16], strides = [1, 1]} : vector<2x64xf32> to vector<2x16xf32>
    %270 = arith.negf %269 : vector<2x16xf32>
    %271 = math.exp %270 : vector<2x16xf32>
    %cst_46 = arith.constant 1.000000e+00 : f32
    %272 = vector.broadcast %cst_46 : f32 to vector<2x16xf32>
    %273 = arith.addf %272, %271 : vector<2x16xf32>
    %274 = arith.divf %272, %273 : vector<2x16xf32>
    %275 = vector.extract_strided_slice %264 {offsets = [0, 16], sizes = [2, 16], strides = [1, 1]} : vector<2x64xf32> to vector<2x16xf32>
    %276 = arith.negf %275 : vector<2x16xf32>
    %277 = math.exp %276 : vector<2x16xf32>
    %cst_47 = arith.constant 1.000000e+00 : f32
    %278 = vector.broadcast %cst_47 : f32 to vector<2x16xf32>
    %279 = arith.addf %278, %277 : vector<2x16xf32>
    %280 = arith.divf %278, %279 : vector<2x16xf32>
    %281 = vector.extract_strided_slice %264 {offsets = [0, 32], sizes = [2, 16], strides = [1, 1]} : vector<2x64xf32> to vector<2x16xf32>
    %282 = math.tanh %281 : vector<2x16xf32>
    %283 = vector.extract_strided_slice %264 {offsets = [0, 48], sizes = [2, 16], strides = [1, 1]} : vector<2x64xf32> to vector<2x16xf32>
    %284 = arith.negf %283 : vector<2x16xf32>
    %285 = math.exp %284 : vector<2x16xf32>
    %cst_48 = arith.constant 1.000000e+00 : f32
    %286 = vector.broadcast %cst_48 : f32 to vector<2x16xf32>
    %287 = arith.addf %286, %285 : vector<2x16xf32>
    %288 = arith.divf %286, %287 : vector<2x16xf32>
    %289 = arith.mulf %280, %231 : vector<2x16xf32>
    %290 = arith.mulf %274, %282 : vector<2x16xf32>
    %291 = arith.addf %289, %290 : vector<2x16xf32>
    %292 = math.tanh %291 : vector<2x16xf32>
    %293 = arith.mulf %288, %292 : vector<2x16xf32>
    %294 = vector.extract_strided_slice %268 {offsets = [0, 0], sizes = [2, 16], strides = [1, 1]} : vector<2x64xf32> to vector<2x16xf32>
    %295 = arith.negf %294 : vector<2x16xf32>
    %296 = math.exp %295 : vector<2x16xf32>
    %cst_49 = arith.constant 1.000000e+00 : f32
    %297 = vector.broadcast %cst_49 : f32 to vector<2x16xf32>
    %298 = arith.addf %297, %296 : vector<2x16xf32>
    %299 = arith.divf %297, %298 : vector<2x16xf32>
    %300 = vector.extract_strided_slice %268 {offsets = [0, 16], sizes = [2, 16], strides = [1, 1]} : vector<2x64xf32> to vector<2x16xf32>
    %301 = arith.negf %300 : vector<2x16xf32>
    %302 = math.exp %301 : vector<2x16xf32>
    %cst_50 = arith.constant 1.000000e+00 : f32
    %303 = vector.broadcast %cst_50 : f32 to vector<2x16xf32>
    %304 = arith.addf %303, %302 : vector<2x16xf32>
    %305 = arith.divf %303, %304 : vector<2x16xf32>
    %306 = vector.extract_strided_slice %268 {offsets = [0, 32], sizes = [2, 16], strides = [1, 1]} : vector<2x64xf32> to vector<2x16xf32>
    %307 = math.tanh %306 : vector<2x16xf32>
    %308 = vector.extract_strided_slice %268 {offsets = [0, 48], sizes = [2, 16], strides = [1, 1]} : vector<2x64xf32> to vector<2x16xf32>
    %309 = arith.negf %308 : vector<2x16xf32>
    %310 = math.exp %309 : vector<2x16xf32>
    %cst_51 = arith.constant 1.000000e+00 : f32
    %311 = vector.broadcast %cst_51 : f32 to vector<2x16xf32>
    %312 = arith.addf %311, %310 : vector<2x16xf32>
    %313 = arith.divf %311, %312 : vector<2x16xf32>
    %314 = arith.mulf %305, %256 : vector<2x16xf32>
    %315 = arith.mulf %299, %307 : vector<2x16xf32>
    %316 = arith.addf %314, %315 : vector<2x16xf32>
    %317 = math.tanh %316 : vector<2x16xf32>
    %318 = arith.mulf %313, %317 : vector<2x16xf32>
    %319 = tpu.concatenate %293, %318 in 1 : vector<2x16xf32>, vector<2x16xf32> -> vector<2x32xf32>
    %cst_52 = arith.constant dense<0.000000e+00> : vector<2x128xf32>
    %320 = tpu.matmul %319, %14, %cst_52 {dimension_numbers = #tpu.dot_dimension_numbers<[1], [0], [0], [1], [0, 0, 1, 1], [], []>} : vector<2x32xf32>, vector<32x128xf32>, vector<2x128xf32> -> vector<2x128xf32>
    %321 = vector.extract_strided_slice %7 {offsets = [0, 5, 0], sizes = [2, 1, 64], strides = [1, 1, 1]} : vector<2x8x64xf32> to vector<2x1x64xf32>
    %322 = vector.shape_cast %321 : vector<2x1x64xf32> to vector<2x64xf32>
    %323 = vector.extract_strided_slice %320 {offsets = [0, 0], sizes = [2, 64], strides = [1, 1]} : vector<2x128xf32> to vector<2x64xf32>
    %324 = arith.addf %322, %323 : vector<2x64xf32>
    %325 = vector.extract_strided_slice %13 {offsets = [0, 2, 0], sizes = [2, 1, 64], strides = [1, 1, 1]} : vector<2x8x64xf32> to vector<2x1x64xf32>
    %326 = vector.shape_cast %325 : vector<2x1x64xf32> to vector<2x64xf32>
    %327 = vector.extract_strided_slice %320 {offsets = [0, 64], sizes = [2, 64], strides = [1, 1]} : vector<2x128xf32> to vector<2x64xf32>
    %328 = arith.addf %326, %327 : vector<2x64xf32>
    %329 = vector.extract_strided_slice %324 {offsets = [0, 0], sizes = [2, 16], strides = [1, 1]} : vector<2x64xf32> to vector<2x16xf32>
    %330 = arith.negf %329 : vector<2x16xf32>
    %331 = math.exp %330 : vector<2x16xf32>
    %cst_53 = arith.constant 1.000000e+00 : f32
    %332 = vector.broadcast %cst_53 : f32 to vector<2x16xf32>
    %333 = arith.addf %332, %331 : vector<2x16xf32>
    %334 = arith.divf %332, %333 : vector<2x16xf32>
    %335 = vector.extract_strided_slice %324 {offsets = [0, 16], sizes = [2, 16], strides = [1, 1]} : vector<2x64xf32> to vector<2x16xf32>
    %336 = arith.negf %335 : vector<2x16xf32>
    %337 = math.exp %336 : vector<2x16xf32>
    %cst_54 = arith.constant 1.000000e+00 : f32
    %338 = vector.broadcast %cst_54 : f32 to vector<2x16xf32>
    %339 = arith.addf %338, %337 : vector<2x16xf32>
    %340 = arith.divf %338, %339 : vector<2x16xf32>
    %341 = vector.extract_strided_slice %324 {offsets = [0, 32], sizes = [2, 16], strides = [1, 1]} : vector<2x64xf32> to vector<2x16xf32>
    %342 = math.tanh %341 : vector<2x16xf32>
    %343 = vector.extract_strided_slice %324 {offsets = [0, 48], sizes = [2, 16], strides = [1, 1]} : vector<2x64xf32> to vector<2x16xf32>
    %344 = arith.negf %343 : vector<2x16xf32>
    %345 = math.exp %344 : vector<2x16xf32>
    %cst_55 = arith.constant 1.000000e+00 : f32
    %346 = vector.broadcast %cst_55 : f32 to vector<2x16xf32>
    %347 = arith.addf %346, %345 : vector<2x16xf32>
    %348 = arith.divf %346, %347 : vector<2x16xf32>
    %349 = arith.mulf %340, %291 : vector<2x16xf32>
    %350 = arith.mulf %334, %342 : vector<2x16xf32>
    %351 = arith.addf %349, %350 : vector<2x16xf32>
    %352 = math.tanh %351 : vector<2x16xf32>
    %353 = arith.mulf %348, %352 : vector<2x16xf32>
    %354 = vector.extract_strided_slice %328 {offsets = [0, 0], sizes = [2, 16], strides = [1, 1]} : vector<2x64xf32> to vector<2x16xf32>
    %355 = arith.negf %354 : vector<2x16xf32>
    %356 = math.exp %355 : vector<2x16xf32>
    %cst_56 = arith.constant 1.000000e+00 : f32
    %357 = vector.broadcast %cst_56 : f32 to vector<2x16xf32>
    %358 = arith.addf %357, %356 : vector<2x16xf32>
    %359 = arith.divf %357, %358 : vector<2x16xf32>
    %360 = vector.extract_strided_slice %328 {offsets = [0, 16], sizes = [2, 16], strides = [1, 1]} : vector<2x64xf32> to vector<2x16xf32>
    %361 = arith.negf %360 : vector<2x16xf32>
    %362 = math.exp %361 : vector<2x16xf32>
    %cst_57 = arith.constant 1.000000e+00 : f32
    %363 = vector.broadcast %cst_57 : f32 to vector<2x16xf32>
    %364 = arith.addf %363, %362 : vector<2x16xf32>
    %365 = arith.divf %363, %364 : vector<2x16xf32>
    %366 = vector.extract_strided_slice %328 {offsets = [0, 32], sizes = [2, 16], strides = [1, 1]} : vector<2x64xf32> to vector<2x16xf32>
    %367 = math.tanh %366 : vector<2x16xf32>
    %368 = vector.extract_strided_slice %328 {offsets = [0, 48], sizes = [2, 16], strides = [1, 1]} : vector<2x64xf32> to vector<2x16xf32>
    %369 = arith.negf %368 : vector<2x16xf32>
    %370 = math.exp %369 : vector<2x16xf32>
    %cst_58 = arith.constant 1.000000e+00 : f32
    %371 = vector.broadcast %cst_58 : f32 to vector<2x16xf32>
    %372 = arith.addf %371, %370 : vector<2x16xf32>
    %373 = arith.divf %371, %372 : vector<2x16xf32>
    %374 = arith.mulf %365, %316 : vector<2x16xf32>
    %375 = arith.mulf %359, %367 : vector<2x16xf32>
    %376 = arith.addf %374, %375 : vector<2x16xf32>
    %377 = math.tanh %376 : vector<2x16xf32>
    %378 = arith.mulf %373, %377 : vector<2x16xf32>
    %379 = tpu.concatenate %353, %378 in 1 : vector<2x16xf32>, vector<2x16xf32> -> vector<2x32xf32>
    %cst_59 = arith.constant dense<0.000000e+00> : vector<2x128xf32>
    %380 = tpu.matmul %379, %14, %cst_59 {dimension_numbers = #tpu.dot_dimension_numbers<[1], [0], [0], [1], [0, 0, 1, 1], [], []>} : vector<2x32xf32>, vector<32x128xf32>, vector<2x128xf32> -> vector<2x128xf32>
    %381 = vector.extract_strided_slice %7 {offsets = [0, 6, 0], sizes = [2, 1, 64], strides = [1, 1, 1]} : vector<2x8x64xf32> to vector<2x1x64xf32>
    %382 = vector.shape_cast %381 : vector<2x1x64xf32> to vector<2x64xf32>
    %383 = vector.extract_strided_slice %380 {offsets = [0, 0], sizes = [2, 64], strides = [1, 1]} : vector<2x128xf32> to vector<2x64xf32>
    %384 = arith.addf %382, %383 : vector<2x64xf32>
    %385 = vector.extract_strided_slice %13 {offsets = [0, 1, 0], sizes = [2, 1, 64], strides = [1, 1, 1]} : vector<2x8x64xf32> to vector<2x1x64xf32>
    %386 = vector.shape_cast %385 : vector<2x1x64xf32> to vector<2x64xf32>
    %387 = vector.extract_strided_slice %380 {offsets = [0, 64], sizes = [2, 64], strides = [1, 1]} : vector<2x128xf32> to vector<2x64xf32>
    %388 = arith.addf %386, %387 : vector<2x64xf32>
    %389 = vector.extract_strided_slice %384 {offsets = [0, 0], sizes = [2, 16], strides = [1, 1]} : vector<2x64xf32> to vector<2x16xf32>
    %390 = arith.negf %389 : vector<2x16xf32>
    %391 = math.exp %390 : vector<2x16xf32>
    %cst_60 = arith.constant 1.000000e+00 : f32
    %392 = vector.broadcast %cst_60 : f32 to vector<2x16xf32>
    %393 = arith.addf %392, %391 : vector<2x16xf32>
    %394 = arith.divf %392, %393 : vector<2x16xf32>
    %395 = vector.extract_strided_slice %384 {offsets = [0, 16], sizes = [2, 16], strides = [1, 1]} : vector<2x64xf32> to vector<2x16xf32>
    %396 = arith.negf %395 : vector<2x16xf32>
    %397 = math.exp %396 : vector<2x16xf32>
    %cst_61 = arith.constant 1.000000e+00 : f32
    %398 = vector.broadcast %cst_61 : f32 to vector<2x16xf32>
    %399 = arith.addf %398, %397 : vector<2x16xf32>
    %400 = arith.divf %398, %399 : vector<2x16xf32>
    %401 = vector.extract_strided_slice %384 {offsets = [0, 32], sizes = [2, 16], strides = [1, 1]} : vector<2x64xf32> to vector<2x16xf32>
    %402 = math.tanh %401 : vector<2x16xf32>
    %403 = vector.extract_strided_slice %384 {offsets = [0, 48], sizes = [2, 16], strides = [1, 1]} : vector<2x64xf32> to vector<2x16xf32>
    %404 = arith.negf %403 : vector<2x16xf32>
    %405 = math.exp %404 : vector<2x16xf32>
    %cst_62 = arith.constant 1.000000e+00 : f32
    %406 = vector.broadcast %cst_62 : f32 to vector<2x16xf32>
    %407 = arith.addf %406, %405 : vector<2x16xf32>
    %408 = arith.divf %406, %407 : vector<2x16xf32>
    %409 = arith.mulf %400, %351 : vector<2x16xf32>
    %410 = arith.mulf %394, %402 : vector<2x16xf32>
    %411 = arith.addf %409, %410 : vector<2x16xf32>
    %412 = math.tanh %411 : vector<2x16xf32>
    %413 = arith.mulf %408, %412 : vector<2x16xf32>
    %414 = vector.extract_strided_slice %388 {offsets = [0, 0], sizes = [2, 16], strides = [1, 1]} : vector<2x64xf32> to vector<2x16xf32>
    %415 = arith.negf %414 : vector<2x16xf32>
    %416 = math.exp %415 : vector<2x16xf32>
    %cst_63 = arith.constant 1.000000e+00 : f32
    %417 = vector.broadcast %cst_63 : f32 to vector<2x16xf32>
    %418 = arith.addf %417, %416 : vector<2x16xf32>
    %419 = arith.divf %417, %418 : vector<2x16xf32>
    %420 = vector.extract_strided_slice %388 {offsets = [0, 16], sizes = [2, 16], strides = [1, 1]} : vector<2x64xf32> to vector<2x16xf32>
    %421 = arith.negf %420 : vector<2x16xf32>
    %422 = math.exp %421 : vector<2x16xf32>
    %cst_64 = arith.constant 1.000000e+00 : f32
    %423 = vector.broadcast %cst_64 : f32 to vector<2x16xf32>
    %424 = arith.addf %423, %422 : vector<2x16xf32>
    %425 = arith.divf %423, %424 : vector<2x16xf32>
    %426 = vector.extract_strided_slice %388 {offsets = [0, 32], sizes = [2, 16], strides = [1, 1]} : vector<2x64xf32> to vector<2x16xf32>
    %427 = math.tanh %426 : vector<2x16xf32>
    %428 = vector.extract_strided_slice %388 {offsets = [0, 48], sizes = [2, 16], strides = [1, 1]} : vector<2x64xf32> to vector<2x16xf32>
    %429 = arith.negf %428 : vector<2x16xf32>
    %430 = math.exp %429 : vector<2x16xf32>
    %cst_65 = arith.constant 1.000000e+00 : f32
    %431 = vector.broadcast %cst_65 : f32 to vector<2x16xf32>
    %432 = arith.addf %431, %430 : vector<2x16xf32>
    %433 = arith.divf %431, %432 : vector<2x16xf32>
    %434 = arith.mulf %425, %376 : vector<2x16xf32>
    %435 = arith.mulf %419, %427 : vector<2x16xf32>
    %436 = arith.addf %434, %435 : vector<2x16xf32>
    %437 = math.tanh %436 : vector<2x16xf32>
    %438 = arith.mulf %433, %437 : vector<2x16xf32>
    %439 = tpu.concatenate %413, %438 in 1 : vector<2x16xf32>, vector<2x16xf32> -> vector<2x32xf32>
    %cst_66 = arith.constant dense<0.000000e+00> : vector<2x128xf32>
    %440 = tpu.matmul %439, %14, %cst_66 {dimension_numbers = #tpu.dot_dimension_numbers<[1], [0], [0], [1], [0, 0, 1, 1], [], []>} : vector<2x32xf32>, vector<32x128xf32>, vector<2x128xf32> -> vector<2x128xf32>
    %441 = vector.extract_strided_slice %7 {offsets = [0, 7, 0], sizes = [2, 1, 64], strides = [1, 1, 1]} : vector<2x8x64xf32> to vector<2x1x64xf32>
    %442 = vector.shape_cast %441 : vector<2x1x64xf32> to vector<2x64xf32>
    %443 = vector.extract_strided_slice %440 {offsets = [0, 0], sizes = [2, 64], strides = [1, 1]} : vector<2x128xf32> to vector<2x64xf32>
    %444 = arith.addf %442, %443 : vector<2x64xf32>
    %445 = vector.extract_strided_slice %13 {offsets = [0, 0, 0], sizes = [2, 1, 64], strides = [1, 1, 1]} : vector<2x8x64xf32> to vector<2x1x64xf32>
    %446 = vector.shape_cast %445 : vector<2x1x64xf32> to vector<2x64xf32>
    %447 = vector.extract_strided_slice %440 {offsets = [0, 64], sizes = [2, 64], strides = [1, 1]} : vector<2x128xf32> to vector<2x64xf32>
    %448 = arith.addf %446, %447 : vector<2x64xf32>
    %449 = vector.extract_strided_slice %444 {offsets = [0, 0], sizes = [2, 16], strides = [1, 1]} : vector<2x64xf32> to vector<2x16xf32>
    %450 = arith.negf %449 : vector<2x16xf32>
    %451 = math.exp %450 : vector<2x16xf32>
    %cst_67 = arith.constant 1.000000e+00 : f32
    %452 = vector.broadcast %cst_67 : f32 to vector<2x16xf32>
    %453 = arith.addf %452, %451 : vector<2x16xf32>
    %454 = arith.divf %452, %453 : vector<2x16xf32>
    %455 = vector.extract_strided_slice %444 {offsets = [0, 16], sizes = [2, 16], strides = [1, 1]} : vector<2x64xf32> to vector<2x16xf32>
    %456 = arith.negf %455 : vector<2x16xf32>
    %457 = math.exp %456 : vector<2x16xf32>
    %cst_68 = arith.constant 1.000000e+00 : f32
    %458 = vector.broadcast %cst_68 : f32 to vector<2x16xf32>
    %459 = arith.addf %458, %457 : vector<2x16xf32>
    %460 = arith.divf %458, %459 : vector<2x16xf32>
    %461 = vector.extract_strided_slice %444 {offsets = [0, 32], sizes = [2, 16], strides = [1, 1]} : vector<2x64xf32> to vector<2x16xf32>
    %462 = math.tanh %461 : vector<2x16xf32>
    %463 = vector.extract_strided_slice %444 {offsets = [0, 48], sizes = [2, 16], strides = [1, 1]} : vector<2x64xf32> to vector<2x16xf32>
    %464 = arith.negf %463 : vector<2x16xf32>
    %465 = math.exp %464 : vector<2x16xf32>
    %cst_69 = arith.constant 1.000000e+00 : f32
    %466 = vector.broadcast %cst_69 : f32 to vector<2x16xf32>
    %467 = arith.addf %466, %465 : vector<2x16xf32>
    %468 = arith.divf %466, %467 : vector<2x16xf32>
    %469 = arith.mulf %460, %411 : vector<2x16xf32>
    %470 = arith.mulf %454, %462 : vector<2x16xf32>
    %471 = arith.addf %469, %470 : vector<2x16xf32>
    %472 = math.tanh %471 : vector<2x16xf32>
    %473 = arith.mulf %468, %472 : vector<2x16xf32>
    %474 = vector.extract_strided_slice %448 {offsets = [0, 0], sizes = [2, 16], strides = [1, 1]} : vector<2x64xf32> to vector<2x16xf32>
    %475 = arith.negf %474 : vector<2x16xf32>
    %476 = math.exp %475 : vector<2x16xf32>
    %cst_70 = arith.constant 1.000000e+00 : f32
    %477 = vector.broadcast %cst_70 : f32 to vector<2x16xf32>
    %478 = arith.addf %477, %476 : vector<2x16xf32>
    %479 = arith.divf %477, %478 : vector<2x16xf32>
    %480 = vector.extract_strided_slice %448 {offsets = [0, 16], sizes = [2, 16], strides = [1, 1]} : vector<2x64xf32> to vector<2x16xf32>
    %481 = arith.negf %480 : vector<2x16xf32>
    %482 = math.exp %481 : vector<2x16xf32>
    %cst_71 = arith.constant 1.000000e+00 : f32
    %483 = vector.broadcast %cst_71 : f32 to vector<2x16xf32>
    %484 = arith.addf %483, %482 : vector<2x16xf32>
    %485 = arith.divf %483, %484 : vector<2x16xf32>
    %486 = vector.extract_strided_slice %448 {offsets = [0, 32], sizes = [2, 16], strides = [1, 1]} : vector<2x64xf32> to vector<2x16xf32>
    %487 = math.tanh %486 : vector<2x16xf32>
    %488 = vector.extract_strided_slice %448 {offsets = [0, 48], sizes = [2, 16], strides = [1, 1]} : vector<2x64xf32> to vector<2x16xf32>
    %489 = arith.negf %488 : vector<2x16xf32>
    %490 = math.exp %489 : vector<2x16xf32>
    %cst_72 = arith.constant 1.000000e+00 : f32
    %491 = vector.broadcast %cst_72 : f32 to vector<2x16xf32>
    %492 = arith.addf %491, %490 : vector<2x16xf32>
    %493 = arith.divf %491, %492 : vector<2x16xf32>
    %494 = arith.mulf %485, %436 : vector<2x16xf32>
    %495 = arith.mulf %479, %487 : vector<2x16xf32>
    %496 = arith.addf %494, %495 : vector<2x16xf32>
    %497 = math.tanh %496 : vector<2x16xf32>
    %498 = arith.mulf %493, %497 : vector<2x16xf32>
    %499 = tpu.concatenate %53, %113, %173, %233, %293, %353, %413, %473 in 0 : vector<2x16xf32>, vector<2x16xf32>, vector<2x16xf32>, vector<2x16xf32>, vector<2x16xf32>, vector<2x16xf32>, vector<2x16xf32>, vector<2x16xf32> -> vector<16x16xf32>
    %500 = tpu.concatenate %498, %438, %378, %318, %258, %198, %138, %78 in 0 : vector<2x16xf32>, vector<2x16xf32>, vector<2x16xf32>, vector<2x16xf32>, vector<2x16xf32>, vector<2x16xf32>, vector<2x16xf32>, vector<2x16xf32> -> vector<16x16xf32>
    %c0_73 = arith.constant 0 : index
    %c0_74 = arith.constant 0 : index
    %501 = vector.load %arg7[%c0_73, %c0_74] : memref<16x5xf32, #tpu.memory_space<vmem>>, vector<16x5xf32>
    %cst_75 = arith.constant dense<0.000000e+00> : vector<16x5xf32>
    %502 = tpu.matmul %499, %501, %cst_75 {dimension_numbers = #tpu.dot_dimension_numbers<[1], [0], [0], [1], [0, 0, 1, 1], [], []>} : vector<16x16xf32>, vector<16x5xf32>, vector<16x5xf32> -> vector<16x5xf32>
    %c0_76 = arith.constant 0 : index
    %c0_77 = arith.constant 0 : index
    %503 = vector.load %arg8[%c0_76, %c0_77] : memref<16x5xf32, #tpu.memory_space<vmem>>, vector<16x5xf32>
    %cst_78 = arith.constant dense<0.000000e+00> : vector<16x5xf32>
    %504 = tpu.matmul %500, %503, %cst_78 {dimension_numbers = #tpu.dot_dimension_numbers<[1], [0], [0], [1], [0, 0, 1, 1], [], []>} : vector<16x16xf32>, vector<16x5xf32>, vector<16x5xf32> -> vector<16x5xf32>
    %505 = arith.addf %502, %504 : vector<16x5xf32>
    %c0_79 = arith.constant 0 : index
    %c0_80 = arith.constant 0 : index
    %506 = vector.load %arg9[%c0_79, %c0_80] : memref<1x5xf32, #tpu.memory_space<vmem>>, vector<1x5xf32>
    %507 = vector.broadcast %506 : vector<1x5xf32> to vector<16x5xf32>
    %508 = arith.addf %505, %507 : vector<16x5xf32>
    %509 = vector.shape_cast %508 : vector<16x5xf32> to vector<8x2x5xf32>
    %c0_81 = arith.constant 0 : index
    %c0_82 = arith.constant 0 : index
    %510 = vector.load %arg12[%c0_81, %c0_82] : memref<5x5xf32, #tpu.memory_space<vmem>>, vector<5x5xf32>
    %511 = tpu.iota {dimensions = array<i32: 2>} : vector<2x5x5xi32>
    %512 = tpu.iota {dimensions = array<i32: 1>} : vector<2x5xi32>
    %c0_83 = arith.constant 0 : index
    %c0_84 = arith.constant 0 : index
    %513 = vector.load %arg10[%c0_83, %c0_84] : memref<1x5xf32, #tpu.memory_space<vmem>>, vector<1x5xf32>
    %514 = vector.extract_strided_slice %509 {offsets = [0, 0, 0], sizes = [1, 2, 5], strides = [1, 1, 1]} : vector<8x2x5xf32> to vector<1x2x5xf32>
    %515 = vector.shape_cast %514 : vector<1x2x5xf32> to vector<2x5xf32>
    %516 = vector.broadcast %513 : vector<1x5xf32> to vector<2x5xf32>
    %517 = arith.addf %516, %515 : vector<2x5xf32>
    %518 = vector.shape_cast %517 : vector<2x5xf32> to vector<2x1x5xf32>
    %519 = vector.shape_cast %510 : vector<5x5xf32> to vector<1x5x5xf32>
    %520 = vector.broadcast %518 : vector<2x1x5xf32> to vector<2x5x5xf32>
    %521 = vector.broadcast %519 : vector<1x5x5xf32> to vector<2x5x5xf32>
    %522 = arith.addf %520, %521 : vector<2x5x5xf32>
    %523 = vector.extract_strided_slice %509 {offsets = [1, 0, 0], sizes = [1, 2, 5], strides = [1, 1, 1]} : vector<8x2x5xf32> to vector<1x2x5xf32>
    %524 = vector.shape_cast %523 : vector<1x2x5xf32> to vector<2x5xf32>
    %525 = vector.shape_cast %524 : vector<2x5xf32> to vector<2x5x1xf32>
    %526 = vector.broadcast %525 : vector<2x5x1xf32> to vector<2x5x5xf32>
    %527 = arith.addf %522, %526 : vector<2x5x5xf32>
    %cst_85 = arith.constant dense<0xFF800000> : vector<2x5xf32>
    %528 = vector.multi_reduction <maximumf>, %527, %cst_85 [2] : vector<2x5x5xf32> to vector<2x5xf32>
    %529 = vector.shape_cast %528 : vector<2x5xf32> to vector<2x5x1xf32>
    %530 = vector.broadcast %529 : vector<2x5x1xf32> to vector<2x5x5xf32>
    %531 = arith.cmpf oeq, %527, %530 : vector<2x5x5xf32>
    %c5_i32 = arith.constant 5 : i32
    %532 = vector.broadcast %c5_i32 : i32 to vector<2x5x5xi32>
    %533 = arith.select %531, %511, %532 : vector<2x5x5xi1>, vector<2x5x5xi32>
    %cst_86 = arith.constant dense<2147483647> : vector<2x5xi32>
    %534 = vector.multi_reduction <minsi>, %533, %cst_86 [2] : vector<2x5x5xi32> to vector<2x5xi32>
    %535 = vector.shape_cast %528 : vector<2x5xf32> to vector<2x1x5xf32>
    %536 = vector.shape_cast %510 : vector<5x5xf32> to vector<1x5x5xf32>
    %537 = vector.broadcast %535 : vector<2x1x5xf32> to vector<2x5x5xf32>
    %538 = vector.broadcast %536 : vector<1x5x5xf32> to vector<2x5x5xf32>
    %539 = arith.addf %537, %538 : vector<2x5x5xf32>
    %540 = vector.extract_strided_slice %509 {offsets = [2, 0, 0], sizes = [1, 2, 5], strides = [1, 1, 1]} : vector<8x2x5xf32> to vector<1x2x5xf32>
    %541 = vector.shape_cast %540 : vector<1x2x5xf32> to vector<2x5xf32>
    %542 = vector.shape_cast %541 : vector<2x5xf32> to vector<2x5x1xf32>
    %543 = vector.broadcast %542 : vector<2x5x1xf32> to vector<2x5x5xf32>
    %544 = arith.addf %539, %543 : vector<2x5x5xf32>
    %cst_87 = arith.constant dense<0xFF800000> : vector<2x5xf32>
    %545 = vector.multi_reduction <maximumf>, %544, %cst_87 [2] : vector<2x5x5xf32> to vector<2x5xf32>
    %546 = vector.shape_cast %545 : vector<2x5xf32> to vector<2x5x1xf32>
    %547 = vector.broadcast %546 : vector<2x5x1xf32> to vector<2x5x5xf32>
    %548 = arith.cmpf oeq, %544, %547 : vector<2x5x5xf32>
    %c5_i32_88 = arith.constant 5 : i32
    %549 = vector.broadcast %c5_i32_88 : i32 to vector<2x5x5xi32>
    %550 = arith.select %548, %511, %549 : vector<2x5x5xi1>, vector<2x5x5xi32>
    %cst_89 = arith.constant dense<2147483647> : vector<2x5xi32>
    %551 = vector.multi_reduction <minsi>, %550, %cst_89 [2] : vector<2x5x5xi32> to vector<2x5xi32>
    %552 = vector.shape_cast %545 : vector<2x5xf32> to vector<2x1x5xf32>
    %553 = vector.shape_cast %510 : vector<5x5xf32> to vector<1x5x5xf32>
    %554 = vector.broadcast %552 : vector<2x1x5xf32> to vector<2x5x5xf32>
    %555 = vector.broadcast %553 : vector<1x5x5xf32> to vector<2x5x5xf32>
    %556 = arith.addf %554, %555 : vector<2x5x5xf32>
    %557 = vector.extract_strided_slice %509 {offsets = [3, 0, 0], sizes = [1, 2, 5], strides = [1, 1, 1]} : vector<8x2x5xf32> to vector<1x2x5xf32>
    %558 = vector.shape_cast %557 : vector<1x2x5xf32> to vector<2x5xf32>
    %559 = vector.shape_cast %558 : vector<2x5xf32> to vector<2x5x1xf32>
    %560 = vector.broadcast %559 : vector<2x5x1xf32> to vector<2x5x5xf32>
    %561 = arith.addf %556, %560 : vector<2x5x5xf32>
    %cst_90 = arith.constant dense<0xFF800000> : vector<2x5xf32>
    %562 = vector.multi_reduction <maximumf>, %561, %cst_90 [2] : vector<2x5x5xf32> to vector<2x5xf32>
    %563 = vector.shape_cast %562 : vector<2x5xf32> to vector<2x5x1xf32>
    %564 = vector.broadcast %563 : vector<2x5x1xf32> to vector<2x5x5xf32>
    %565 = arith.cmpf oeq, %561, %564 : vector<2x5x5xf32>
    %c5_i32_91 = arith.constant 5 : i32
    %566 = vector.broadcast %c5_i32_91 : i32 to vector<2x5x5xi32>
    %567 = arith.select %565, %511, %566 : vector<2x5x5xi1>, vector<2x5x5xi32>
    %cst_92 = arith.constant dense<2147483647> : vector<2x5xi32>
    %568 = vector.multi_reduction <minsi>, %567, %cst_92 [2] : vector<2x5x5xi32> to vector<2x5xi32>
    %569 = vector.shape_cast %562 : vector<2x5xf32> to vector<2x1x5xf32>
    %570 = vector.shape_cast %510 : vector<5x5xf32> to vector<1x5x5xf32>
    %571 = vector.broadcast %569 : vector<2x1x5xf32> to vector<2x5x5xf32>
    %572 = vector.broadcast %570 : vector<1x5x5xf32> to vector<2x5x5xf32>
    %573 = arith.addf %571, %572 : vector<2x5x5xf32>
    %574 = vector.extract_strided_slice %509 {offsets = [4, 0, 0], sizes = [1, 2, 5], strides = [1, 1, 1]} : vector<8x2x5xf32> to vector<1x2x5xf32>
    %575 = vector.shape_cast %574 : vector<1x2x5xf32> to vector<2x5xf32>
    %576 = vector.shape_cast %575 : vector<2x5xf32> to vector<2x5x1xf32>
    %577 = vector.broadcast %576 : vector<2x5x1xf32> to vector<2x5x5xf32>
    %578 = arith.addf %573, %577 : vector<2x5x5xf32>
    %cst_93 = arith.constant dense<0xFF800000> : vector<2x5xf32>
    %579 = vector.multi_reduction <maximumf>, %578, %cst_93 [2] : vector<2x5x5xf32> to vector<2x5xf32>
    %580 = vector.shape_cast %579 : vector<2x5xf32> to vector<2x5x1xf32>
    %581 = vector.broadcast %580 : vector<2x5x1xf32> to vector<2x5x5xf32>
    %582 = arith.cmpf oeq, %578, %581 : vector<2x5x5xf32>
    %c5_i32_94 = arith.constant 5 : i32
    %583 = vector.broadcast %c5_i32_94 : i32 to vector<2x5x5xi32>
    %584 = arith.select %582, %511, %583 : vector<2x5x5xi1>, vector<2x5x5xi32>
    %cst_95 = arith.constant dense<2147483647> : vector<2x5xi32>
    %585 = vector.multi_reduction <minsi>, %584, %cst_95 [2] : vector<2x5x5xi32> to vector<2x5xi32>
    %586 = vector.shape_cast %579 : vector<2x5xf32> to vector<2x1x5xf32>
    %587 = vector.shape_cast %510 : vector<5x5xf32> to vector<1x5x5xf32>
    %588 = vector.broadcast %586 : vector<2x1x5xf32> to vector<2x5x5xf32>
    %589 = vector.broadcast %587 : vector<1x5x5xf32> to vector<2x5x5xf32>
    %590 = arith.addf %588, %589 : vector<2x5x5xf32>
    %591 = vector.extract_strided_slice %509 {offsets = [5, 0, 0], sizes = [1, 2, 5], strides = [1, 1, 1]} : vector<8x2x5xf32> to vector<1x2x5xf32>
    %592 = vector.shape_cast %591 : vector<1x2x5xf32> to vector<2x5xf32>
    %593 = vector.shape_cast %592 : vector<2x5xf32> to vector<2x5x1xf32>
    %594 = vector.broadcast %593 : vector<2x5x1xf32> to vector<2x5x5xf32>
    %595 = arith.addf %590, %594 : vector<2x5x5xf32>
    %cst_96 = arith.constant dense<0xFF800000> : vector<2x5xf32>
    %596 = vector.multi_reduction <maximumf>, %595, %cst_96 [2] : vector<2x5x5xf32> to vector<2x5xf32>
    %597 = vector.shape_cast %596 : vector<2x5xf32> to vector<2x5x1xf32>
    %598 = vector.broadcast %597 : vector<2x5x1xf32> to vector<2x5x5xf32>
    %599 = arith.cmpf oeq, %595, %598 : vector<2x5x5xf32>
    %c5_i32_97 = arith.constant 5 : i32
    %600 = vector.broadcast %c5_i32_97 : i32 to vector<2x5x5xi32>
    %601 = arith.select %599, %511, %600 : vector<2x5x5xi1>, vector<2x5x5xi32>
    %cst_98 = arith.constant dense<2147483647> : vector<2x5xi32>
    %602 = vector.multi_reduction <minsi>, %601, %cst_98 [2] : vector<2x5x5xi32> to vector<2x5xi32>
    %603 = vector.shape_cast %596 : vector<2x5xf32> to vector<2x1x5xf32>
    %604 = vector.shape_cast %510 : vector<5x5xf32> to vector<1x5x5xf32>
    %605 = vector.broadcast %603 : vector<2x1x5xf32> to vector<2x5x5xf32>
    %606 = vector.broadcast %604 : vector<1x5x5xf32> to vector<2x5x5xf32>
    %607 = arith.addf %605, %606 : vector<2x5x5xf32>
    %608 = vector.extract_strided_slice %509 {offsets = [6, 0, 0], sizes = [1, 2, 5], strides = [1, 1, 1]} : vector<8x2x5xf32> to vector<1x2x5xf32>
    %609 = vector.shape_cast %608 : vector<1x2x5xf32> to vector<2x5xf32>
    %610 = vector.shape_cast %609 : vector<2x5xf32> to vector<2x5x1xf32>
    %611 = vector.broadcast %610 : vector<2x5x1xf32> to vector<2x5x5xf32>
    %612 = arith.addf %607, %611 : vector<2x5x5xf32>
    %cst_99 = arith.constant dense<0xFF800000> : vector<2x5xf32>
    %613 = vector.multi_reduction <maximumf>, %612, %cst_99 [2] : vector<2x5x5xf32> to vector<2x5xf32>
    %614 = vector.shape_cast %613 : vector<2x5xf32> to vector<2x5x1xf32>
    %615 = vector.broadcast %614 : vector<2x5x1xf32> to vector<2x5x5xf32>
    %616 = arith.cmpf oeq, %612, %615 : vector<2x5x5xf32>
    %c5_i32_100 = arith.constant 5 : i32
    %617 = vector.broadcast %c5_i32_100 : i32 to vector<2x5x5xi32>
    %618 = arith.select %616, %511, %617 : vector<2x5x5xi1>, vector<2x5x5xi32>
    %cst_101 = arith.constant dense<2147483647> : vector<2x5xi32>
    %619 = vector.multi_reduction <minsi>, %618, %cst_101 [2] : vector<2x5x5xi32> to vector<2x5xi32>
    %620 = vector.shape_cast %613 : vector<2x5xf32> to vector<2x1x5xf32>
    %621 = vector.shape_cast %510 : vector<5x5xf32> to vector<1x5x5xf32>
    %622 = vector.broadcast %620 : vector<2x1x5xf32> to vector<2x5x5xf32>
    %623 = vector.broadcast %621 : vector<1x5x5xf32> to vector<2x5x5xf32>
    %624 = arith.addf %622, %623 : vector<2x5x5xf32>
    %625 = vector.extract_strided_slice %509 {offsets = [7, 0, 0], sizes = [1, 2, 5], strides = [1, 1, 1]} : vector<8x2x5xf32> to vector<1x2x5xf32>
    %626 = vector.shape_cast %625 : vector<1x2x5xf32> to vector<2x5xf32>
    %627 = vector.shape_cast %626 : vector<2x5xf32> to vector<2x5x1xf32>
    %628 = vector.broadcast %627 : vector<2x5x1xf32> to vector<2x5x5xf32>
    %629 = arith.addf %624, %628 : vector<2x5x5xf32>
    %cst_102 = arith.constant dense<0xFF800000> : vector<2x5xf32>
    %630 = vector.multi_reduction <maximumf>, %629, %cst_102 [2] : vector<2x5x5xf32> to vector<2x5xf32>
    %631 = vector.shape_cast %630 : vector<2x5xf32> to vector<2x5x1xf32>
    %632 = vector.broadcast %631 : vector<2x5x1xf32> to vector<2x5x5xf32>
    %633 = arith.cmpf oeq, %629, %632 : vector<2x5x5xf32>
    %c5_i32_103 = arith.constant 5 : i32
    %634 = vector.broadcast %c5_i32_103 : i32 to vector<2x5x5xi32>
    %635 = arith.select %633, %511, %634 : vector<2x5x5xi1>, vector<2x5x5xi32>
    %cst_104 = arith.constant dense<2147483647> : vector<2x5xi32>
    %636 = vector.multi_reduction <minsi>, %635, %cst_104 [2] : vector<2x5x5xi32> to vector<2x5xi32>
    %c0_105 = arith.constant 0 : index
    %c0_106 = arith.constant 0 : index
    %637 = vector.load %arg11[%c0_105, %c0_106] : memref<1x5xf32, #tpu.memory_space<vmem>>, vector<1x5xf32>
    %638 = vector.broadcast %637 : vector<1x5xf32> to vector<2x5xf32>
    %639 = arith.addf %630, %638 : vector<2x5xf32>
    %cst_107 = arith.constant dense<0xFF800000> : vector<2xf32>
    %640 = vector.multi_reduction <maximumf>, %639, %cst_107 [1] : vector<2x5xf32> to vector<2xf32>
    %641 = vector.shape_cast %640 : vector<2xf32> to vector<2x1xf32>
    %642 = vector.broadcast %641 : vector<2x1xf32> to vector<2x5xf32>
    %643 = arith.cmpf oeq, %639, %642 : vector<2x5xf32>
    %c5_i32_108 = arith.constant 5 : i32
    %644 = vector.broadcast %c5_i32_108 : i32 to vector<2x5xi32>
    %645 = arith.select %643, %512, %644 : vector<2x5xi1>, vector<2x5xi32>
    %cst_109 = arith.constant dense<2147483647> : vector<2xi32>
    %646 = vector.multi_reduction <minsi>, %645, %cst_109 [1] : vector<2x5xi32> to vector<2xi32>
    %647 = vector.shape_cast %646 : vector<2xi32> to vector<2x1xi32>
    %648 = vector.broadcast %647 : vector<2x1xi32> to vector<2x5xi32>
    %649 = arith.cmpi eq, %512, %648 : vector<2x5xi32>
    %c0_i32 = arith.constant 0 : i32
    %650 = vector.broadcast %c0_i32 : i32 to vector<2x5xi32>
    %651 = arith.select %649, %636, %650 : vector<2x5xi1>, vector<2x5xi32>
    %cst_110 = arith.constant dense<0> : vector<2xi32>
    %652 = vector.multi_reduction <add>, %651, %cst_110 [1] : vector<2x5xi32> to vector<2xi32>
    %653 = vector.shape_cast %652 : vector<2xi32> to vector<2x1xi32>
    %654 = vector.broadcast %653 : vector<2x1xi32> to vector<2x5xi32>
    %655 = arith.cmpi eq, %512, %654 : vector<2x5xi32>
    %c0_i32_111 = arith.constant 0 : i32
    %656 = vector.broadcast %c0_i32_111 : i32 to vector<2x5xi32>
    %657 = arith.select %655, %619, %656 : vector<2x5xi1>, vector<2x5xi32>
    %cst_112 = arith.constant dense<0> : vector<2xi32>
    %658 = vector.multi_reduction <add>, %657, %cst_112 [1] : vector<2x5xi32> to vector<2xi32>
    %659 = vector.shape_cast %658 : vector<2xi32> to vector<2x1xi32>
    %660 = vector.broadcast %659 : vector<2x1xi32> to vector<2x5xi32>
    %661 = arith.cmpi eq, %512, %660 : vector<2x5xi32>
    %c0_i32_113 = arith.constant 0 : i32
    %662 = vector.broadcast %c0_i32_113 : i32 to vector<2x5xi32>
    %663 = arith.select %661, %602, %662 : vector<2x5xi1>, vector<2x5xi32>
    %cst_114 = arith.constant dense<0> : vector<2xi32>
    %664 = vector.multi_reduction <add>, %663, %cst_114 [1] : vector<2x5xi32> to vector<2xi32>
    %665 = vector.shape_cast %664 : vector<2xi32> to vector<2x1xi32>
    %666 = vector.broadcast %665 : vector<2x1xi32> to vector<2x5xi32>
    %667 = arith.cmpi eq, %512, %666 : vector<2x5xi32>
    %c0_i32_115 = arith.constant 0 : i32
    %668 = vector.broadcast %c0_i32_115 : i32 to vector<2x5xi32>
    %669 = arith.select %667, %585, %668 : vector<2x5xi1>, vector<2x5xi32>
    %cst_116 = arith.constant dense<0> : vector<2xi32>
    %670 = vector.multi_reduction <add>, %669, %cst_116 [1] : vector<2x5xi32> to vector<2xi32>
    %671 = vector.shape_cast %670 : vector<2xi32> to vector<2x1xi32>
    %672 = vector.broadcast %671 : vector<2x1xi32> to vector<2x5xi32>
    %673 = arith.cmpi eq, %512, %672 : vector<2x5xi32>
    %c0_i32_117 = arith.constant 0 : i32
    %674 = vector.broadcast %c0_i32_117 : i32 to vector<2x5xi32>
    %675 = arith.select %673, %568, %674 : vector<2x5xi1>, vector<2x5xi32>
    %cst_118 = arith.constant dense<0> : vector<2xi32>
    %676 = vector.multi_reduction <add>, %675, %cst_118 [1] : vector<2x5xi32> to vector<2xi32>
    %677 = vector.shape_cast %676 : vector<2xi32> to vector<2x1xi32>
    %678 = vector.broadcast %677 : vector<2x1xi32> to vector<2x5xi32>
    %679 = arith.cmpi eq, %512, %678 : vector<2x5xi32>
    %c0_i32_119 = arith.constant 0 : i32
    %680 = vector.broadcast %c0_i32_119 : i32 to vector<2x5xi32>
    %681 = arith.select %679, %551, %680 : vector<2x5xi1>, vector<2x5xi32>
    %cst_120 = arith.constant dense<0> : vector<2xi32>
    %682 = vector.multi_reduction <add>, %681, %cst_120 [1] : vector<2x5xi32> to vector<2xi32>
    %683 = vector.shape_cast %682 : vector<2xi32> to vector<2x1xi32>
    %684 = vector.broadcast %683 : vector<2x1xi32> to vector<2x5xi32>
    %685 = arith.cmpi eq, %512, %684 : vector<2x5xi32>
    %c0_i32_121 = arith.constant 0 : i32
    %686 = vector.broadcast %c0_i32_121 : i32 to vector<2x5xi32>
    %687 = arith.select %685, %534, %686 : vector<2x5xi1>, vector<2x5xi32>
    %cst_122 = arith.constant dense<0> : vector<2xi32>
    %688 = vector.multi_reduction <add>, %687, %cst_122 [1] : vector<2x5xi32> to vector<2xi32>
    %689 = vector.shape_cast %688 : vector<2xi32> to vector<2x1xi32>
    %690 = tpu.concatenate %689, %683, %677, %671, %665, %659, %653, %647 in 1 : vector<2x1xi32>, vector<2x1xi32>, vector<2x1xi32>, vector<2x1xi32>, vector<2x1xi32>, vector<2x1xi32>, vector<2x1xi32>, vector<2x1xi32> -> vector<2x8xi32>
    %c0_123 = arith.constant 0 : index
    %c0_124 = arith.constant 0 : index
    %691 = vector.load %arg13[%c0_123, %c0_124] : memref<2x8xi32, #tpu.memory_space<vmem>>, vector<2x8xi32>
    tpu.vector_store %arg13[%c0_123, %c0_124], %690 {strides = array<i32>} : memref<2x8xi32, #tpu.memory_space<vmem>>, vector<2x8xi32>,
    return
  }
  func.func @transform_0(%arg0: i32) -> (i32, i32, i32) {
    %c0_i32 = arith.constant 0 : i32
    %c0_i32_0 = arith.constant 0 : i32
    %c0_i32_1 = arith.constant 0 : i32
    return %arg0, %c0_i32, %c0_i32_0 : i32, i32, i32
  }
  func.func @transform_1(%arg0: i32) -> (i32, i32) {
    %c0_i32 = arith.constant 0 : i32
    %c0_i32_0 = arith.constant 0 : i32
    %c0_i32_1 = arith.constant 0 : i32
    return %c0_i32, %c0_i32_0 : i32, i32
  }
  func.func @transform_2(%arg0: i32) -> (i32, i32) {
    %c0_i32 = arith.constant 0 : i32
    %c0_i32_0 = arith.constant 0 : i32
    %c0_i32_1 = arith.constant 0 : i32
    return %c0_i32, %c0_i32_0 : i32, i32
  }
  func.func @transform_3(%arg0: i32) -> (i32, i32) {
    %c0_i32 = arith.constant 0 : i32
    %c0_i32_0 = arith.constant 0 : i32
    %c0_i32_1 = arith.constant 0 : i32
    return %c0_i32, %c0_i32_0 : i32, i32
  }
  func.func @transform_4(%arg0: i32) -> (i32, i32) {
    %c0_i32 = arith.constant 0 : i32
    %c0_i32_0 = arith.constant 0 : i32
    %c0_i32_1 = arith.constant 0 : i32
    return %c0_i32, %c0_i32_0 : i32, i32
  }
  func.func @transform_5(%arg0: i32) -> (i32, i32) {
    %c0_i32 = arith.constant 0 : i32
    %c0_i32_0 = arith.constant 0 : i32
    %c0_i32_1 = arith.constant 0 : i32
    return %c0_i32, %c0_i32_0 : i32, i32
  }
  func.func @transform_6(%arg0: i32) -> (i32, i32) {
    %c0_i32 = arith.constant 0 : i32
    %c0_i32_0 = arith.constant 0 : i32
    %c0_i32_1 = arith.constant 0 : i32
    return %c0_i32, %c0_i32_0 : i32, i32
  }
  func.func @transform_7(%arg0: i32) -> (i32, i32) {
    %c0_i32 = arith.constant 0 : i32
    %c0_i32_0 = arith.constant 0 : i32
    %c0_i32_1 = arith.constant 0 : i32
    return %c0_i32, %c0_i32_0 : i32, i32
  }
  func.func @transform_8(%arg0: i32) -> (i32, i32) {
    %c0_i32 = arith.constant 0 : i32
    %c0_i32_0 = arith.constant 0 : i32
    %c0_i32_1 = arith.constant 0 : i32
    return %c0_i32, %c0_i32_0 : i32, i32
  }
  func.func @transform_9(%arg0: i32) -> (i32, i32) {
    %c0_i32 = arith.constant 0 : i32
    %c0_i32_0 = arith.constant 0 : i32
    %c0_i32_1 = arith.constant 0 : i32
    return %c0_i32, %c0_i32_0 : i32, i32
  }
  func.func @transform_10(%arg0: i32) -> (i32, i32) {
    %c0_i32 = arith.constant 0 : i32
    %c0_i32_0 = arith.constant 0 : i32
    %c0_i32_1 = arith.constant 0 : i32
    return %c0_i32, %c0_i32_0 : i32, i32
  }
  func.func @transform_11(%arg0: i32) -> (i32, i32) {
    %c0_i32 = arith.constant 0 : i32
    %c0_i32_0 = arith.constant 0 : i32
    %c0_i32_1 = arith.constant 0 : i32
    return %c0_i32, %c0_i32_0 : i32, i32
  }
  func.func @transform_12(%arg0: i32) -> (i32, i32) {
    %c0_i32 = arith.constant 0 : i32
    %c0_i32_0 = arith.constant 0 : i32
    return %arg0, %c0_i32 : i32, i32
  }
}

</mosaic_0001>

<llo_original>
// kernel: tpu_custom_call.1
$region0: #{tpu_custom_call.1}
  #allocation0 [shape = 'u32[]', space=smem, size = 0x4, offset = 0x4, fixed_abs, tag = 'smem constant byte address 0x4 - core index']
  #allocation1 [shape = 'u32[144,128]{1,0:T(1,128)}', space=vmem, size = 0x12000, scoped, tag = 'internal scratch']
  %s0 = inlined_call_operand.vmem [shape: f32[2,8,16], index: 0, kind: input, shape index: {}]
  %s1 = inlined_call_operand.hbm [shape: f32[16,64], index: 1, kind: input, shape index: {}]
  %s2 = inlined_call_operand.hbm [shape: f32[1,64], index: 2, kind: input, shape index: {}]
  %s3 = inlined_call_operand.hbm [shape: f32[16,64], index: 3, kind: input, shape index: {}]
  %s4 = inlined_call_operand.hbm [shape: f32[1,64], index: 4, kind: input, shape index: {}]
  %s5 = inlined_call_operand.vmem [shape: f32[32,128], index: 5, kind: input, shape index: {}]
  %s6 = inlined_call_operand.vmem [shape: f32[16,5], index: 6, kind: input, shape index: {}]
  %s7 = inlined_call_operand.vmem [shape: f32[16,5], index: 7, kind: input, shape index: {}]
  %s8 = inlined_call_operand.hbm [shape: f32[1,5], index: 8, kind: input, shape index: {}]
  %s9 = inlined_call_operand.hbm [shape: f32[1,5], index: 9, kind: input, shape index: {}]
  %s10 = inlined_call_operand.vmem [shape: f32[1,5], index: 10, kind: input, shape index: {}]
  %s11 = inlined_call_operand.vmem [shape: f32[5,5], index: 11, kind: input, shape index: {}]
  %s12 = inlined_call_operand.hbm [shape: s32[2,8], index: 12, kind: output, shape index: {}]
  %s13 = sld [smem:[#allocation0]]
  $region82: #{tpu_custom_call.1} parent=0
    _
  %s15 = ssub.s32 1, %s13
  %s16 = scalar_select 0, %s15, %s13
  $region1: #{tpu_custom_call.1} parent=0
    #allocation2 [shape = 'u8[8192]{0}', space=vmem, size = 0x2000, scoped, tag = 'input window, operand 1, single buffered']
    #allocation3 [shape = 's32[1]{0}', space=sflag, size = 0x4, scoped, tag = 'scoped memory for tpu_custom_call.1']
    #allocation4 [shape = 's32[1]{0}', space=sflag, size = 0x4, scoped, tag = 'scoped memory for tpu_custom_call.1']
    #allocation5 [shape = 'u8[512]{0}', space=vmem, size = 0x400, scoped, tag = 'input window, operand 2, single buffered']
    #allocation6 [shape = 's32[1]{0}', space=sflag, size = 0x4, scoped, tag = 'scoped memory for tpu_custom_call.1']
    #allocation7 [shape = 'u8[8192]{0}', space=vmem, size = 0x2000, scoped, tag = 'input window, operand 3, single buffered']
    #allocation8 [shape = 'u8[512]{0}', space=vmem, size = 0x400, scoped, tag = 'input window, operand 4, single buffered']
    #allocation9 [shape = 's32[1]{0}', space=sflag, size = 0x4, scoped, tag = 'scoped memory for tpu_custom_call.1']
    #allocation10 [shape = 'u8[512]{0}', space=vmem, size = 0x400, scoped, tag = 'input window, operand 8, single buffered']
    #allocation11 [shape = 'u8[512]{0}', space=vmem, size = 0x400, scoped, tag = 'input window, operand 9, single buffered']
    #allocation12 [shape = 's32[1]{0}', space=sflag, size = 0x4, scoped, tag = 'scoped memory for tpu_custom_call.1']
    #allocation13 [shape = 'u8[1024]{0}', space=vmem, size = 0x400, scoped, tag = 'output window, operand 0, single buffered']
    %17 = vsyncpa [#allocation3], 0
    %18 = vsyncpa [#allocation6], 0
    %19 = vsyncpa [#allocation9], 0
    %20 = vsyncpa [#allocation12], 0
    %21 = vsyncpa [#allocation4], 0
    // Predicated region
    $region2: #{tpu_custom_call.1} parent=1 // pred_check
      _
    $region3: #{tpu_custom_call.1} parent=1 // pred_check_branch
      %23 = sbr.rel (0) target = $region5
    $region4: #{tpu_custom_call.1} parent=1 // pred_region
      _
    $region5: #{tpu_custom_call.1} parent=1 // pred_fallthru
      _
    // Predicated region
    $region6: #{tpu_custom_call.1} parent=1 // pred_check
      _
    $region7: #{tpu_custom_call.1} parent=1 // pred_check_branch
      %25 = sbr.rel (0) target = $region9
    $region8: #{tpu_custom_call.1} parent=1 // pred_region
      %s27 = ssub.s32 256, 256
      %28 = vsyncadd [#allocation3], %s27
      %s29 = sshll.u32 [#allocation2], 4
      %s30 = int_to_ptr.vmem [resolvable:$true] %s29
      %35 = dma.hbm_to_vmem [thread:$0]  %s1, 256, %s30, [#allocation3], 128, 128, 8
    $region9: #{tpu_custom_call.1} parent=1 // pred_fallthru
      _
    // Predicated region
    $region10: #{tpu_custom_call.1} parent=1 // pred_check
      _
    $region11: #{tpu_custom_call.1} parent=1 // pred_check_branch
      %37 = sbr.rel (0) target = $region13
    $region12: #{tpu_custom_call.1} parent=1 // pred_region
      %s39 = ssub.s32 16, 16
      %40 = vsyncadd [#allocation6], %s39
      %s42 = sshll.u32 [#allocation5], 4
      %s43 = int_to_ptr.vmem [resolvable:$true] %s42
      %45 = dma.hbm_to_vmem [thread:$0]  %s2, 16, %s43, [#allocation6]
    $region13: #{tpu_custom_call.1} parent=1 // pred_fallthru
      _
    // Predicated region
    $region14: #{tpu_custom_call.1} parent=1 // pred_check
      _
    $region15: #{tpu_custom_call.1} parent=1 // pred_check_branch
      %47 = sbr.rel (0) target = $region17
    $region16: #{tpu_custom_call.1} parent=1 // pred_region
      %s49 = ssub.s32 256, 256
      %50 = vsyncadd [#allocation6], %s49
      %s51 = sshll.u32 [#allocation7], 4
      %s52 = int_to_ptr.vmem [resolvable:$true] %s51
      %57 = dma.hbm_to_vmem [thread:$0]  %s3, 256, %s52, [#allocation6], 128, 128, 8
    $region17: #{tpu_custom_call.1} parent=1 // pred_fallthru
      _
    // Predicated region
    $region18: #{tpu_custom_call.1} parent=1 // pred_check
      _
    $region19: #{tpu_custom_call.1} parent=1 // pred_check_branch
      %59 = sbr.rel (0) target = $region21
    $region20: #{tpu_custom_call.1} parent=1 // pred_region
      %s61 = ssub.s32 16, 16
      %62 = vsyncadd [#allocation9], %s61
      %s64 = sshll.u32 [#allocation8], 4
      %s65 = int_to_ptr.vmem [resolvable:$true] %s64
      %67 = dma.hbm_to_vmem [thread:$0]  %s4, 16, %s65, [#allocation9]
    $region21: #{tpu_custom_call.1} parent=1 // pred_fallthru
      _
    // Predicated region
    $region22: #{tpu_custom_call.1} parent=1 // pred_check
      _
    $region23: #{tpu_custom_call.1} parent=1 // pred_check_branch
      %69 = sbr.rel (0) target = $region25
    $region24: #{tpu_custom_call.1} parent=1 // pred_region
      _
    $region25: #{tpu_custom_call.1} parent=1 // pred_fallthru
      _
    // Predicated region
    $region26: #{tpu_custom_call.1} parent=1 // pred_check
      _
    $region27: #{tpu_custom_call.1} parent=1 // pred_check_branch
      %71 = sbr.rel (0) target = $region29
    $region28: #{tpu_custom_call.1} parent=1 // pred_region
      _
    $region29: #{tpu_custom_call.1} parent=1 // pred_fallthru
      _
    // Predicated region
    $region30: #{tpu_custom_call.1} parent=1 // pred_check
      _
    $region31: #{tpu_custom_call.1} parent=1 // pred_check_branch
      %73 = sbr.rel (0) target = $region33
    $region32: #{tpu_custom_call.1} parent=1 // pred_region
      _
    $region33: #{tpu_custom_call.1} parent=1 // pred_fallthru
      _
    // Predicated region
    $region34: #{tpu_custom_call.1} parent=1 // pred_check
      _
    $region35: #{tpu_custom_call.1} parent=1 // pred_check_branch
      %75 = sbr.rel (0) target = $region37
    $region36: #{tpu_custom_call.1} parent=1 // pred_region
      %s77 = ssub.s32 16, 16
      %78 = vsyncadd [#allocation9], %s77
      %s80 = sshll.u32 [#allocation10], 4
      %s81 = int_to_ptr.vmem [resolvable:$true] %s80
      %83 = dma.hbm_to_vmem [thread:$0]  %s8, 16, %s81, [#allocation9]
    $region37: #{tpu_custom_call.1} parent=1 // pred_fallthru
      _
    // Predicated region
    $region38: #{tpu_custom_call.1} parent=1 // pred_check
      _
    $region39: #{tpu_custom_call.1} parent=1 // pred_check_branch
      %85 = sbr.rel (0) target = $region41
    $region40: #{tpu_custom_call.1} parent=1 // pred_region
      %s87 = ssub.s32 16, 16
      %88 = vsyncadd [#allocation12], %s87
      %s90 = sshll.u32 [#allocation11], 4
      %s91 = int_to_ptr.vmem [resolvable:$true] %s90
      %93 = dma.hbm_to_vmem [thread:$0]  %s9, 16, %s91, [#allocation12]
    $region41: #{tpu_custom_call.1} parent=1 // pred_fallthru
      _
    // Predicated region
    $region42: #{tpu_custom_call.1} parent=1 // pred_check
      _
    $region43: #{tpu_custom_call.1} parent=1 // pred_check_branch
      %95 = sbr.rel (0) target = $region45
    $region44: #{tpu_custom_call.1} parent=1 // pred_region
      _
    $region45: #{tpu_custom_call.1} parent=1 // pred_fallthru
      _
    // Predicated region
    $region46: #{tpu_custom_call.1} parent=1 // pred_check
      _
    $region47: #{tpu_custom_call.1} parent=1 // pred_check_branch
      %97 = sbr.rel (0) target = $region49
    $region48: #{tpu_custom_call.1} parent=1 // pred_region
      _
    $region49: #{tpu_custom_call.1} parent=1 // pred_fallthru
      _
    // Predicated region
    $region50: #{tpu_custom_call.1} parent=1 // pred_check
      _
    $region51: #{tpu_custom_call.1} parent=1 // pred_check_branch
      %99 = sbr.rel (0) target = $region53
    $region52: #{tpu_custom_call.1} parent=1 // pred_region
      %100 = dma.done [#allocation3], 256
    $region53: #{tpu_custom_call.1} parent=1 // pred_fallthru
      _
    // Predicated region
    $region54: #{tpu_custom_call.1} parent=1 // pred_check
      _
    $region55: #{tpu_custom_call.1} parent=1 // pred_check_branch
      %102 = sbr.rel (0) target = $region57
    $region56: #{tpu_custom_call.1} parent=1 // pred_region
      %103 = dma.done [#allocation6], 16
    $region57: #{tpu_custom_call.1} parent=1 // pred_fallthru
      _
    // Predicated region
    $region58: #{tpu_custom_call.1} parent=1 // pred_check
      _
    $region59: #{tpu_custom_call.1} parent=1 // pred_check_branch
      %105 = sbr.rel (0) target = $region61
    $region60: #{tpu_custom_call.1} parent=1 // pred_region
      %106 = dma.done [#allocation6], 256
    $region61: #{tpu_custom_call.1} parent=1 // pred_fallthru
      _
    // Predicated region
    $region62: #{tpu_custom_call.1} parent=1 // pred_check
      _
    $region63: #{tpu_custom_call.1} parent=1 // pred_check_branch
      %108 = sbr.rel (0) target = $region65
    $region64: #{tpu_custom_call.1} parent=1 // pred_region
      %109 = dma.done [#allocation9], 16
    $region65: #{tpu_custom_call.1} parent=1 // pred_fallthru
      _
    // Predicated region
    $region66: #{tpu_custom_call.1} parent=1 // pred_check
      _
    $region67: #{tpu_custom_call.1} parent=1 // pred_check_branch
      %111 = sbr.rel (0) target = $region69
    $region68: #{tpu_custom_call.1} parent=1 // pred_region
      %112 = dma.done [#allocation9], 16
    $region69: #{tpu_custom_call.1} parent=1 // pred_fallthru
      _
    // Predicated region
    $region70: #{tpu_custom_call.1} parent=1 // pred_check
      _
    $region71: #{tpu_custom_call.1} parent=1 // pred_check_branch
      %114 = sbr.rel (0) target = $region73
    $region72: #{tpu_custom_call.1} parent=1 // pred_region
      %115 = dma.done [#allocation12], 16
    $region73: #{tpu_custom_call.1} parent=1 // pred_fallthru
      _
    %v116 = vld [vmem:[%s0] sm:$0xff]
    %v117 = vld [vmem:[%s0 + $0x8] sm:$0xff]
    %v118 = vld [vmem:[#allocation2] sm:$0xff]
    %v119 = vld [vmem:[#allocation2 + $0x8] sm:$0xff]
    %v120 = vld [vmem:[#allocation5] sm:$0x1]
    %v122 = vlaneseq
    %v123 = vshrl.u32 %v122, 7
    %v124 = vsub.s32 0, %v123
    %v125 = vrot.slane %v120, %v124
    %vm127 = vcmask 130048
    %v129 = vsel %vm127, %v116, 0
    %v132 = vsel %vm127, %v117, 0
    %134 = vmatprep.subr.mxu0 0.0
    %135 = vmatpush1.msra.mxu0 0.0
    %136 = vmatprep.subr.mxu0 0.0
    %137 = vmatpush1.msra.mxu0 0.0
    %138 = vmatprep.subr.mxu0 0.0
    %139 = vmatpush1.msra.mxu0 0.0
    %140 = vmatprep.subr.mxu0 0.0
    %141 = vmatpush1.msra.mxu0 0.0
    %142 = vmatprep.subr.mxu0 0.0
    %143 = vmatpush1.msra.mxu0 0.0
    %144 = vmatprep.subr.mxu0 0.0
    %145 = vmatpush1.msra.mxu0 0.0
    %146 = vmatprep.subr.mxu0 0.0
    %147 = vmatpush1.msra.mxu0 0.0
    %148 = vmatprep.subr.mxu0 0.0
    %149 = vmatpush1.msra.mxu0 0.0
    %150 = vmatprep.subr.mxu0 0.0
    %151 = vmatpush1.msra.mxu0 0.0
    %152 = vmatprep.subr.mxu0 0.0
    %153 = vmatpush1.msra.mxu0 0.0
    %154 = vmatprep.subr.mxu0 0.0
    %155 = vmatpush1.msra.mxu0 0.0
    %156 = vmatprep.subr.mxu0 0.0
    %157 = vmatpush1.msra.mxu0 0.0
    %158 = vmatprep.subr.mxu0 0.0
    %159 = vmatpush1.msra.mxu0 0.0
    %160 = vmatprep.subr.mxu0 0.0
    %161 = vmatpush1.msra.mxu0 0.0
    %162 = vmatprep.subr.mxu0 0.0
    %163 = vmatpush1.msra.mxu0 %v119
    %164 = vmatprep.subr.mxu0 0.0
    %165 = vmatpush1.msra.mxu0 %v118
    %166 = vmatprep.subr.mxu0 0.0
    %167 = vmatpush2.msra.mxu0 0.0
    %168 = vmatprep.subr.mxu0 0.0
    %169 = vmatpush2.msra.mxu0 0.0
    %170 = vmatprep.subr.mxu0 0.0
    %171 = vmatpush2.msra.mxu0 0.0
    %172 = vmatprep.subr.mxu0 0.0
    %173 = vmatpush2.msra.mxu0 0.0
    %174 = vmatprep.subr.mxu0 0.0
    %175 = vmatpush2.msra.mxu0 0.0
    %176 = vmatprep.subr.mxu0 0.0
    %177 = vmatpush2.msra.mxu0 0.0
    %178 = vmatprep.subr.mxu0 0.0
    %179 = vmatpush2.msra.mxu0 0.0
    %180 = vmatprep.subr.mxu0 0.0
    %181 = vmatpush2.msra.mxu0 0.0
    %182 = vmatprep.subr.mxu0 0.0
    %183 = vmatpush2.msra.mxu0 0.0
    %184 = vmatprep.subr.mxu0 0.0
    %185 = vmatpush2.msra.mxu0 0.0
    %186 = vmatprep.subr.mxu0 0.0
    %187 = vmatpush2.msra.mxu0 0.0
    %188 = vmatprep.subr.mxu0 0.0
    %189 = vmatpush2.msra.mxu0 0.0
    %190 = vmatprep.subr.mxu0 0.0
    %191 = vmatpush2.msra.mxu0 0.0
    %192 = vmatprep.subr.mxu0 0.0
    %193 = vmatpush2.msra.mxu0 0.0
    %194 = vmatprep.subr.mxu0 0.0
    %195 = vmatpush2.msra.mxu0 0.0
    %196 = vmatprep.subr.mxu0 0.0
    %197 = vmatpush2.msra.mxu0 0.0
    %198 = vmatprep.mubr.f32.mxu0 0.0
    %199 = vmatmul.mubr.f32.gmra.mxu0 %v129
    %v200 = vpop.f32.mrf.mxu0
    %v201 = vadd.f32 %v125, %v200
    %v202 = vpop.f32.mrf.mxu0
    %203 = vmatprep.mubr.f32.mxu0 0.0
    %204 = vmatmul.mubr.f32.gmra.mxu0 %v132
    %v205 = vpop.f32.mrf.mxu0
    %v206 = vadd.f32 %v125, %v205
    %v207 = vpop.f32.mrf.mxu0
    %208 = vdwg.mxu0
    %v209 = vld [vmem:[#allocation7] sm:$0xff]
    %v210 = vld [vmem:[#allocation7 + $0x8] sm:$0xff]
    %v211 = vld [vmem:[#allocation8] sm:$0x1]
    %v213 = vlaneseq
    %v214 = vshrl.u32 %v213, 7
    %v215 = vsub.s32 0, %v214
    %v216 = vrot.slane %v211, %v215
    %218 = vmatprep.subr.mxu0 0.0
    %219 = vmatpush1.msra.mxu0 0.0
    %220 = vmatprep.subr.mxu0 0.0
    %221 = vmatpush1.msra.mxu0 0.0
    %222 = vmatprep.subr.mxu0 0.0
    %223 = vmatpush1.msra.mxu0 0.0
    %224 = vmatprep.subr.mxu0 0.0
    %225 = vmatpush1.msra.mxu0 0.0
    %226 = vmatprep.subr.mxu0 0.0
    %227 = vmatpush1.msra.mxu0 0.0
    %228 = vmatprep.subr.mxu0 0.0
    %229 = vmatpush1.msra.mxu0 0.0
    %230 = vmatprep.subr.mxu0 0.0
    %231 = vmatpush1.msra.mxu0 0.0
    %232 = vmatprep.subr.mxu0 0.0
    %233 = vmatpush1.msra.mxu0 0.0
    %234 = vmatprep.subr.mxu0 0.0
    %235 = vmatpush1.msra.mxu0 0.0
    %236 = vmatprep.subr.mxu0 0.0
    %237 = vmatpush1.msra.mxu0 0.0
    %238 = vmatprep.subr.mxu0 0.0
    %239 = vmatpush1.msra.mxu0 0.0
    %240 = vmatprep.subr.mxu0 0.0
    %241 = vmatpush1.msra.mxu0 0.0
    %242 = vmatprep.subr.mxu0 0.0
    %243 = vmatpush1.msra.mxu0 0.0
    %244 = vmatprep.subr.mxu0 0.0
    %245 = vmatpush1.msra.mxu0 0.0
    %246 = vmatprep.subr.mxu0 0.0
    %247 = vmatpush1.msra.mxu0 %v210
    %248 = vmatprep.subr.mxu0 0.0
    %249 = vmatpush1.msra.mxu0 %v209
    %250 = vmatprep.subr.mxu0 0.0
    %251 = vmatpush2.msra.mxu0 0.0
    %252 = vmatprep.subr.mxu0 0.0
    %253 = vmatpush2.msra.mxu0 0.0
    %254 = vmatprep.subr.mxu0 0.0
    %255 = vmatpush2.msra.mxu0 0.0
    %256 = vmatprep.subr.mxu0 0.0
    %257 = vmatpush2.msra.mxu0 0.0
    %258 = vmatprep.subr.mxu0 0.0
    %259 = vmatpush2.msra.mxu0 0.0
    %260 = vmatprep.subr.mxu0 0.0
    %261 = vmatpush2.msra.mxu0 0.0
    %262 = vmatprep.subr.mxu0 0.0
    %263 = vmatpush2.msra.mxu0 0.0
    %264 = vmatprep.subr.mxu0 0.0
    %265 = vmatpush2.msra.mxu0 0.0
    %266 = vmatprep.subr.mxu0 0.0
    %267 = vmatpush2.msra.mxu0 0.0
    %268 = vmatprep.subr.mxu0 0.0
    %269 = vmatpush2.msra.mxu0 0.0
    %270 = vmatprep.subr.mxu0 0.0
    %271 = vmatpush2.msra.mxu0 0.0
    %272 = vmatprep.subr.mxu0 0.0
    %273 = vmatpush2.msra.mxu0 0.0
    %274 = vmatprep.subr.mxu0 0.0
    %275 = vmatpush2.msra.mxu0 0.0
    %276 = vmatprep.subr.mxu0 0.0
    %277 = vmatpush2.msra.mxu0 0.0
    %278 = vmatprep.subr.mxu0 0.0
    %279 = vmatpush2.msra.mxu0 0.0
    %280 = vmatprep.subr.mxu0 0.0
    %281 = vmatpush2.msra.mxu0 0.0
    %282 = vmatprep.mubr.f32.mxu0 0.0
    %283 = vmatmul.mubr.f32.gmra.mxu0 %v129
    %v284 = vpop.f32.mrf.mxu0
    %v285 = vadd.f32 %v216, %v284
    %v286 = vpop.f32.mrf.mxu0
    %287 = vmatprep.mubr.f32.mxu0 0.0
    %288 = vmatmul.mubr.f32.gmra.mxu0 %v132
    %v289 = vpop.f32.mrf.mxu0
    %v290 = vadd.f32 %v216, %v289
    %v291 = vpop.f32.mrf.mxu0
    %292 = vdwg.mxu0
    %v293 = vld [vmem:[%s5] sm:$0xff]
    %v294 = vld [vmem:[%s5 + $0x8] sm:$0xff]
    %v295 = vld [vmem:[%s5 + $0x10] sm:$0xff]
    %v296 = vld [vmem:[%s5 + $0x18] sm:$0xff]
    %vm297 = vcmask 261120
    %v299 = vsel %vm297, 0.0, 0
    %301 = vmatprep.subr.mxu0 0.0
    %302 = vmatpush1.msra.mxu0 0.0
    %303 = vmatprep.subr.mxu0 0.0
    %304 = vmatpush1.msra.mxu0 0.0
    %305 = vmatprep.subr.mxu0 0.0
    %306 = vmatpush1.msra.mxu0 0.0
    %307 = vmatprep.subr.mxu0 0.0
    %308 = vmatpush1.msra.mxu0 0.0
    %309 = vmatprep.subr.mxu0 0.0
    %310 = vmatpush1.msra.mxu0 0.0
    %311 = vmatprep.subr.mxu0 0.0
    %312 = vmatpush1.msra.mxu0 0.0
    %313 = vmatprep.subr.mxu0 0.0
    %314 = vmatpush1.msra.mxu0 0.0
    %315 = vmatprep.subr.mxu0 0.0
    %316 = vmatpush1.msra.mxu0 0.0
    %317 = vmatprep.subr.mxu0 0.0
    %318 = vmatpush1.msra.mxu0 0.0
    %319 = vmatprep.subr.mxu0 0.0
    %320 = vmatpush1.msra.mxu0 0.0
    %321 = vmatprep.subr.mxu0 0.0
    %322 = vmatpush1.msra.mxu0 0.0
    %323 = vmatprep.subr.mxu0 0.0
    %324 = vmatpush1.msra.mxu0 0.0
    %325 = vmatprep.subr.mxu0 0.0
    %326 = vmatpush1.msra.mxu0 %v296
    %327 = vmatprep.subr.mxu0 0.0
    %328 = vmatpush1.msra.mxu0 %v295
    %329 = vmatprep.subr.mxu0 0.0
    %330 = vmatpush1.msra.mxu0 %v294
    %331 = vmatprep.subr.mxu0 0.0
    %332 = vmatpush1.msra.mxu0 %v293
    %333 = vmatprep.subr.mxu0 0.0
    %334 = vmatpush2.msra.mxu0 0.0
    %335 = vmatprep.subr.mxu0 0.0
    %336 = vmatpush2.msra.mxu0 0.0
    %337 = vmatprep.subr.mxu0 0.0
    %338 = vmatpush2.msra.mxu0 0.0
    %339 = vmatprep.subr.mxu0 0.0
    %340 = vmatpush2.msra.mxu0 0.0
    %341 = vmatprep.subr.mxu0 0.0
    %342 = vmatpush2.msra.mxu0 0.0
    %343 = vmatprep.subr.mxu0 0.0
    %344 = vmatpush2.msra.mxu0 0.0
    %345 = vmatprep.subr.mxu0 0.0
    %346 = vmatpush2.msra.mxu0 0.0
    %347 = vmatprep.subr.mxu0 0.0
    %348 = vmatpush2.msra.mxu0 0.0
    %349 = vmatprep.subr.mxu0 0.0
    %350 = vmatpush2.msra.mxu0 0.0
    %351 = vmatprep.subr.mxu0 0.0
    %352 = vmatpush2.msra.mxu0 0.0
    %353 = vmatprep.subr.mxu0 0.0
    %354 = vmatpush2.msra.mxu0 0.0
    %355 = vmatprep.subr.mxu0 0.0
    %356 = vmatpush2.msra.mxu0 0.0
    %357 = vmatprep.subr.mxu0 0.0
    %358 = vmatpush2.msra.mxu0 0.0
    %359 = vmatprep.subr.mxu0 0.0
    %360 = vmatpush2.msra.mxu0 0.0
    %361 = vmatprep.subr.mxu0 0.0
    %362 = vmatpush2.msra.mxu0 0.0
    %363 = vmatprep.subr.mxu0 0.0
    %364 = vmatpush2.msra.mxu0 0.0
    %365 = vmatprep.mubr.f32.mxu0 0.0
    %366 = vmatmul.mubr.f32.gmra.mxu0 %v299
    %v367 = vpop.f32.mrf.mxu0
    %v368 = vadd.f32 0.0, %v367
    %v369 = vpop.f32.mrf.mxu0
    %370 = vdwg.mxu0
    %v372 = vrot.slane %v368, 1
    %v375 = vadd.f32 %v201, %v368
    %v376 = vadd.f32 %v206, %v372
    %v377 = vrot.slane %v368, 2
    %378 = vrot.lane.b32.xlu0 %v372, 64
    %v379 = vpop.permute.xlu0 %378
    %380 = vrot.lane.b32.xlu0 %v377, 64
    %v381 = vpop.permute.xlu0 %380
    %v384 = vadd.f32 %v285, %v379
    %v385 = vadd.f32 %v290, %v381
    %v386 = vxor.u32 %v375, 2147483648
    %v387 = vxor.u32 %v376, 2147483648
    %v388 = vmul.f32 %v386, 1.442695
    %v389 = vpow.pop %v388
    %v390 = vmul.f32 %v387, 1.442695
    %v391 = vpow.pop %v390
    %v392 = vadd.f32 %v389, 1.0
    %v393 = vadd.f32 %v391, 1.0
    %v394 = vrcp.pop %v392
    %v395 = vmul.f32 1.0, %v394
    %v396 = vrcp.pop %v393
    %v397 = vmul.f32 1.0, %v396
    %v398 = vtanh.pop %v375
    %v399 = vtanh.pop %v376
    %v400 = vmul.f32 %v395, 0.0
    %v401 = vmul.f32 %v397, 0.0
    %404 = vrot.lane.b32.xlu0 %v398, 96
    %v405 = vpop.permute.xlu0 %404
    %406 = vrot.lane.b32.xlu0 %v399, 96
    %v407 = vpop.permute.xlu0 %406
    %v410 = vmul.f32 %v395, %v405
    %v411 = vmul.f32 %v397, %v407
    %414 = vrot.lane.b32.xlu0 %v410, 16
    %v415 = vpop.permute.xlu0 %414
    %416 = vrot.lane.b32.xlu0 %v411, 16
    %v417 = vpop.permute.xlu0 %416
    %v420 = vadd.f32 %v400, %v415
    %v421 = vadd.f32 %v401, %v417
    %v422 = vtanh.pop %v420
    %v423 = vtanh.pop %v421
    %426 = vrot.lane.b32.xlu0 %v422, 32
    %v427 = vpop.permute.xlu0 %426
    %428 = vrot.lane.b32.xlu0 %v423, 32
    %v429 = vpop.permute.xlu0 %428
    %v432 = vmul.f32 %v395, %v427
    %v433 = vmul.f32 %v397, %v429
    %v434 = vxor.u32 %v384, 2147483648
    %v435 = vxor.u32 %v385, 2147483648
    %v436 = vmul.f32 %v434, 1.442695
    %v437 = vpow.pop %v436
    %v438 = vmul.f32 %v435, 1.442695
    %v439 = vpow.pop %v438
    %v440 = vadd.f32 %v437, 1.0
    %v441 = vadd.f32 %v439, 1.0
    %v442 = vrcp.pop %v440
    %v443 = vmul.f32 1.0, %v442
    %v444 = vrcp.pop %v441
    %v445 = vmul.f32 1.0, %v444
    %v446 = vtanh.pop %v384
    %v447 = vtanh.pop %v385
    %v448 = vmul.f32 %v443, 0.0
    %v449 = vmul.f32 %v445, 0.0
    %452 = vrot.lane.b32.xlu0 %v446, 96
    %v453 = vpop.permute.xlu0 %452
    %454 = vrot.lane.b32.xlu0 %v447, 96
    %v455 = vpop.permute.xlu0 %454
    %v458 = vmul.f32 %v443, %v453
    %v459 = vmul.f32 %v445, %v455
    %462 = vrot.lane.b32.xlu0 %v458, 16
    %v463 = vpop.permute.xlu0 %462
    %464 = vrot.lane.b32.xlu0 %v459, 16
    %v465 = vpop.permute.xlu0 %464
    %v468 = vadd.f32 %v448, %v463
    %v469 = vadd.f32 %v449, %v465
    %v470 = vtanh.pop %v468
    %v471 = vtanh.pop %v469
    %474 = vrot.lane.b32.xlu0 %v470, 32
    %v475 = vpop.permute.xlu0 %474
    %476 = vrot.lane.b32.xlu0 %v471, 32
    %v477 = vpop.permute.xlu0 %476
    %v480 = vmul.f32 %v443, %v475
    %v481 = vmul.f32 %v445, %v477
    %v484 = vrot.slane %v433, 7
    %vm485 = vcmask 1041409
    %v486 = vsel %vm485, %v484, %v432
    %487 = vrot.lane.b32.xlu0 %v486, 80
    %v488 = vpop.permute.xlu0 %487
    %v492 = vrot.slane %v480, 7
    %v493 = vrot.slane %v481, 6
    %v494 = vsel %vm485, %v493, %v492
    %495 = vrot.lane.b32.xlu0 %v494, 96
    %v496 = vpop.permute.xlu0 %495
    %v498 = vsel %vm127, %v488, %v496
    %v500 = vsel %vm297, %v498, 0
    %502 = vmatprep.subr.mxu0 0.0
    %503 = vmatpush1.msra.mxu0 0.0
    %504 = vmatprep.subr.mxu0 0.0
    %505 = vmatpush1.msra.mxu0 0.0
    %506 = vmatprep.subr.mxu0 0.0
    %507 = vmatpush1.msra.mxu0 0.0
    %508 = vmatprep.subr.mxu0 0.0
    %509 = vmatpush1.msra.mxu0 0.0
    %510 = vmatprep.subr.mxu0 0.0
    %511 = vmatpush1.msra.mxu0 0.0
    %512 = vmatprep.subr.mxu0 0.0
    %513 = vmatpush1.msra.mxu0 0.0
    %514 = vmatprep.subr.mxu0 0.0
    %515 = vmatpush1.msra.mxu0 0.0
    %516 = vmatprep.subr.mxu0 0.0
    %517 = vmatpush1.msra.mxu0 0.0
    %518 = vmatprep.subr.mxu0 0.0
    %519 = vmatpush1.msra.mxu0 0.0
    %520 = vmatprep.subr.mxu0 0.0
    %521 = vmatpush1.msra.mxu0 0.0
    %522 = vmatprep.subr.mxu0 0.0
    %523 = vmatpush1.msra.mxu0 0.0
    %524 = vmatprep.subr.mxu0 0.0
    %525 = vmatpush1.msra.mxu0 0.0
    %526 = vmatprep.subr.mxu0 0.0
    %527 = vmatpush1.msra.mxu0 %v296
    %528 = vmatprep.subr.mxu0 0.0
    %529 = vmatpush1.msra.mxu0 %v295
    %530 = vmatprep.subr.mxu0 0.0
    %531 = vmatpush1.msra.mxu0 %v294
    %532 = vmatprep.subr.mxu0 0.0
    %533 = vmatpush1.msra.mxu0 %v293
    %534 = vmatprep.subr.mxu0 0.0
    %535 = vmatpush2.msra.mxu0 0.0
    %536 = vmatprep.subr.mxu0 0.0
    %537 = vmatpush2.msra.mxu0 0.0
    %538 = vmatprep.subr.mxu0 0.0
    %539 = vmatpush2.msra.mxu0 0.0
    %540 = vmatprep.subr.mxu0 0.0
    %541 = vmatpush2.msra.mxu0 0.0
    %542 = vmatprep.subr.mxu0 0.0
    %543 = vmatpush2.msra.mxu0 0.0
    %544 = vmatprep.subr.mxu0 0.0
    %545 = vmatpush2.msra.mxu0 0.0
    %546 = vmatprep.subr.mxu0 0.0
    %547 = vmatpush2.msra.mxu0 0.0
    %548 = vmatprep.subr.mxu0 0.0
    %549 = vmatpush2.msra.mxu0 0.0
    %550 = vmatprep.subr.mxu0 0.0
    %551 = vmatpush2.msra.mxu0 0.0
    %552 = vmatprep.subr.mxu0 0.0
    %553 = vmatpush2.msra.mxu0 0.0
    %554 = vmatprep.subr.mxu0 0.0
    %555 = vmatpush2.msra.mxu0 0.0
    %556 = vmatprep.subr.mxu0 0.0
    %557 = vmatpush2.msra.mxu0 0.0
    %558 = vmatprep.subr.mxu0 0.0
    %559 = vmatpush2.msra.mxu0 0.0
    %560 = vmatprep.subr.mxu0 0.0
    %561 = vmatpush2.msra.mxu0 0.0
    %562 = vmatprep.subr.mxu0 0.0
    %563 = vmatpush2.msra.mxu0 0.0
    %564 = vmatprep.subr.mxu0 0.0
    %565 = vmatpush2.msra.mxu0 0.0
    %566 = vmatprep.mubr.f32.mxu0 0.0
    %567 = vmatmul.mubr.f32.gmra.mxu0 %v500
    %v568 = vpop.f32.mrf.mxu0
    %v569 = vadd.f32 0.0, %v568
    %v570 = vpop.f32.mrf.mxu0
    %571 = vdwg.mxu0
    %v573 = vrot.slane %v569, 7
    %v576 = vadd.f32 %v201, %v573
    %v577 = vadd.f32 %v206, %v569
    %v578 = vrot.slane %v569, 2
    %v579 = vrot.slane %v569, 3
    %580 = vrot.lane.b32.xlu0 %v578, 64
    %v581 = vpop.permute.xlu0 %580
    %582 = vrot.lane.b32.xlu0 %v579, 64
    %v583 = vpop.permute.xlu0 %582
    %v586 = vadd.f32 %v285, %v581
    %v587 = vadd.f32 %v290, %v583
    %v588 = vxor.u32 %v576, 2147483648
    %v589 = vxor.u32 %v577, 2147483648
    %v590 = vmul.f32 %v588, 1.442695
    %v591 = vpow.pop %v590
    %v592 = vmul.f32 %v589, 1.442695
    %v593 = vpow.pop %v592
    %v594 = vadd.f32 %v591, 1.0
    %v595 = vadd.f32 %v593, 1.0
    %v596 = vrcp.pop %v594
    %v597 = vmul.f32 1.0, %v596
    %v598 = vrcp.pop %v595
    %v599 = vmul.f32 1.0, %v598
    %v600 = vtanh.pop %v576
    %v601 = vtanh.pop %v577
    %v604 = vrot.slane %v420, 7
    %v605 = vrot.slane %v421, 7
    %v608 = vmul.f32 %v597, %v604
    %v609 = vmul.f32 %v599, %v605
    %612 = vrot.lane.b32.xlu0 %v600, 96
    %v613 = vpop.permute.xlu0 %612
    %614 = vrot.lane.b32.xlu0 %v601, 96
    %v615 = vpop.permute.xlu0 %614
    %v618 = vmul.f32 %v597, %v613
    %v619 = vmul.f32 %v599, %v615
    %622 = vrot.lane.b32.xlu0 %v618, 16
    %v623 = vpop.permute.xlu0 %622
    %624 = vrot.lane.b32.xlu0 %v619, 16
    %v625 = vpop.permute.xlu0 %624
    %v628 = vadd.f32 %v608, %v623
    %v629 = vadd.f32 %v609, %v625
    %v630 = vtanh.pop %v628
    %v631 = vtanh.pop %v629
    %634 = vrot.lane.b32.xlu0 %v630, 32
    %v635 = vpop.permute.xlu0 %634
    %636 = vrot.lane.b32.xlu0 %v631, 32
    %v637 = vpop.permute.xlu0 %636
    %v640 = vmul.f32 %v597, %v635
    %v641 = vmul.f32 %v599, %v637
    %v642 = vxor.u32 %v586, 2147483648
    %v643 = vxor.u32 %v587, 2147483648
    %v644 = vmul.f32 %v642, 1.442695
    %v645 = vpow.pop %v644
    %v646 = vmul.f32 %v643, 1.442695
    %v647 = vpow.pop %v646
    %v648 = vadd.f32 %v645, 1.0
    %v649 = vadd.f32 %v647, 1.0
    %v650 = vrcp.pop %v648
    %v651 = vmul.f32 1.0, %v650
    %v652 = vrcp.pop %v649
    %v653 = vmul.f32 1.0, %v652
    %v654 = vtanh.pop %v586
    %v655 = vtanh.pop %v587
    %v658 = vrot.slane %v468, 1
    %v659 = vrot.slane %v469, 1
    %v662 = vmul.f32 %v651, %v658
    %v663 = vmul.f32 %v653, %v659
    %666 = vrot.lane.b32.xlu0 %v654, 96
    %v667 = vpop.permute.xlu0 %666
    %668 = vrot.lane.b32.xlu0 %v655, 96
    %v669 = vpop.permute.xlu0 %668
    %v672 = vmul.f32 %v651, %v667
    %v673 = vmul.f32 %v653, %v669
    %676 = vrot.lane.b32.xlu0 %v672, 16
    %v677 = vpop.permute.xlu0 %676
    %678 = vrot.lane.b32.xlu0 %v673, 16
    %v679 = vpop.permute.xlu0 %678
    %v682 = vadd.f32 %v662, %v677
    %v683 = vadd.f32 %v663, %v679
    %v684 = vtanh.pop %v682
    %v685 = vtanh.pop %v683
    %688 = vrot.lane.b32.xlu0 %v684, 32
    %v689 = vpop.permute.xlu0 %688
    %690 = vrot.lane.b32.xlu0 %v685, 32
    %v691 = vpop.permute.xlu0 %690
    %v694 = vmul.f32 %v651, %v689
    %v695 = vmul.f32 %v653, %v691
    %v698 = vrot.slane %v641, 7
    %vm699 = vcmask 1042434
    %v700 = vsel %vm699, %v698, %v640
    %701 = vrot.lane.b32.xlu0 %v700, 80
    %v702 = vpop.permute.xlu0 %701
    %v706 = vrot.slane %v694, 5
    %v707 = vrot.slane %v695, 4
    %v708 = vsel %vm699, %v707, %v706
    %709 = vrot.lane.b32.xlu0 %v708, 96
    %v710 = vpop.permute.xlu0 %709
    %v712 = vsel %vm127, %v702, %v710
    %v714 = vrot.slane %v712, 1
    %v715 = vsel %vm297, %v714, 0
    %717 = vmatprep.subr.mxu0 0.0
    %718 = vmatpush1.msra.mxu0 0.0
    %719 = vmatprep.subr.mxu0 0.0
    %720 = vmatpush1.msra.mxu0 0.0
    %721 = vmatprep.subr.mxu0 0.0
    %722 = vmatpush1.msra.mxu0 0.0
    %723 = vmatprep.subr.mxu0 0.0
    %724 = vmatpush1.msra.mxu0 0.0
    %725 = vmatprep.subr.mxu0 0.0
    %726 = vmatpush1.msra.mxu0 0.0
    %727 = vmatprep.subr.mxu0 0.0
    %728 = vmatpush1.msra.mxu0 0.0
    %729 = vmatprep.subr.mxu0 0.0
    %730 = vmatpush1.msra.mxu0 0.0
    %731 = vmatprep.subr.mxu0 0.0
    %732 = vmatpush1.msra.mxu0 0.0
    %733 = vmatprep.subr.mxu0 0.0
    %734 = vmatpush1.msra.mxu0 0.0
    %735 = vmatprep.subr.mxu0 0.0
    %736 = vmatpush1.msra.mxu0 0.0
    %737 = vmatprep.subr.mxu0 0.0
    %738 = vmatpush1.msra.mxu0 0.0
    %739 = vmatprep.subr.mxu0 0.0
    %740 = vmatpush1.msra.mxu0 0.0
    %741 = vmatprep.subr.mxu0 0.0
    %742 = vmatpush1.msra.mxu0 %v296
    %743 = vmatprep.subr.mxu0 0.0
    %744 = vmatpush1.msra.mxu0 %v295
    %745 = vmatprep.subr.mxu0 0.0
    %746 = vmatpush1.msra.mxu0 %v294
    %747 = vmatprep.subr.mxu0 0.0
    %748 = vmatpush1.msra.mxu0 %v293
    %749 = vmatprep.subr.mxu0 0.0
    %750 = vmatpush2.msra.mxu0 0.0
    %751 = vmatprep.subr.mxu0 0.0
    %752 = vmatpush2.msra.mxu0 0.0
    %753 = vmatprep.subr.mxu0 0.0
    %754 = vmatpush2.msra.mxu0 0.0
    %755 = vmatprep.subr.mxu0 0.0
    %756 = vmatpush2.msra.mxu0 0.0
    %757 = vmatprep.subr.mxu0 0.0
    %758 = vmatpush2.msra.mxu0 0.0
    %759 = vmatprep.subr.mxu0 0.0
    %760 = vmatpush2.msra.mxu0 0.0
    %761 = vmatprep.subr.mxu0 0.0
    %762 = vmatpush2.msra.mxu0 0.0
    %763 = vmatprep.subr.mxu0 0.0
    %764 = vmatpush2.msra.mxu0 0.0
    %765 = vmatprep.subr.mxu0 0.0
    %766 = vmatpush2.msra.mxu0 0.0
    %767 = vmatprep.subr.mxu0 0.0
    %768 = vmatpush2.msra.mxu0 0.0
    %769 = vmatprep.subr.mxu0 0.0
    %770 = vmatpush2.msra.mxu0 0.0
    %771 = vmatprep.subr.mxu0 0.0
    %772 = vmatpush2.msra.mxu0 0.0
    %773 = vmatprep.subr.mxu0 0.0
    %774 = vmatpush2.msra.mxu0 0.0
    %775 = vmatprep.subr.mxu0 0.0
    %776 = vmatpush2.msra.mxu0 0.0
    %777 = vmatprep.subr.mxu0 0.0
    %778 = vmatpush2.msra.mxu0 0.0
    %779 = vmatprep.subr.mxu0 0.0
    %780 = vmatpush2.msra.mxu0 0.0
    %781 = vmatprep.mubr.f32.mxu0 0.0
    %782 = vmatmul.mubr.f32.gmra.mxu0 %v715
    %v783 = vpop.f32.mrf.mxu0
    %v784 = vadd.f32 0.0, %v783
    %v785 = vpop.f32.mrf.mxu0
    %786 = vdwg.mxu0
    %v788 = vrot.slane %v784, 6
    %v789 = vrot.slane %v784, 7
    %v792 = vadd.f32 %v201, %v788
    %v793 = vadd.f32 %v206, %v789
    %v794 = vrot.slane %v784, 3
    %v795 = vrot.slane %v784, 4
    %796 = vrot.lane.b32.xlu0 %v794, 64
    %v797 = vpop.permute.xlu0 %796
    %798 = vrot.lane.b32.xlu0 %v795, 64
    %v799 = vpop.permute.xlu0 %798
    %v802 = vadd.f32 %v285, %v797
    %v803 = vadd.f32 %v290, %v799
    %v804 = vxor.u32 %v792, 2147483648
    %v805 = vxor.u32 %v793, 2147483648
    %v806 = vmul.f32 %v804, 1.442695
    %v807 = vpow.pop %v806
    %v808 = vmul.f32 %v805, 1.442695
    %v809 = vpow.pop %v808
    %v810 = vadd.f32 %v807, 1.0
    %v811 = vadd.f32 %v809, 1.0
    %v812 = vrcp.pop %v810
    %v813 = vmul.f32 1.0, %v812
    %v814 = vrcp.pop %v811
    %v815 = vmul.f32 1.0, %v814
    %v816 = vtanh.pop %v792
    %v817 = vtanh.pop %v793
    %v820 = vrot.slane %v628, 7
    %v821 = vrot.slane %v629, 7
    %v824 = vmul.f32 %v813, %v820
    %v825 = vmul.f32 %v815, %v821
    %828 = vrot.lane.b32.xlu0 %v816, 96
    %v829 = vpop.permute.xlu0 %828
    %830 = vrot.lane.b32.xlu0 %v817, 96
    %v831 = vpop.permute.xlu0 %830
    %v834 = vmul.f32 %v813, %v829
    %v835 = vmul.f32 %v815, %v831
    %838 = vrot.lane.b32.xlu0 %v834, 16
    %v839 = vpop.permute.xlu0 %838
    %840 = vrot.lane.b32.xlu0 %v835, 16
    %v841 = vpop.permute.xlu0 %840
    %v844 = vadd.f32 %v824, %v839
    %v845 = vadd.f32 %v825, %v841
    %v846 = vtanh.pop %v844
    %v847 = vtanh.pop %v845
    %850 = vrot.lane.b32.xlu0 %v846, 32
    %v851 = vpop.permute.xlu0 %850
    %852 = vrot.lane.b32.xlu0 %v847, 32
    %v853 = vpop.permute.xlu0 %852
    %v856 = vmul.f32 %v813, %v851
    %v857 = vmul.f32 %v815, %v853
    %v858 = vxor.u32 %v802, 2147483648
    %v859 = vxor.u32 %v803, 2147483648
    %v860 = vmul.f32 %v858, 1.442695
    %v861 = vpow.pop %v860
    %v862 = vmul.f32 %v859, 1.442695
    %v863 = vpow.pop %v862
    %v864 = vadd.f32 %v861, 1.0
    %v865 = vadd.f32 %v863, 1.0
    %v866 = vrcp.pop %v864
    %v867 = vmul.f32 1.0, %v866
    %v868 = vrcp.pop %v865
    %v869 = vmul.f32 1.0, %v868
    %v870 = vtanh.pop %v802
    %v871 = vtanh.pop %v803
    %v874 = vrot.slane %v682, 1
    %v875 = vrot.slane %v683, 1
    %v878 = vmul.f32 %v867, %v874
    %v879 = vmul.f32 %v869, %v875
    %882 = vrot.lane.b32.xlu0 %v870, 96
    %v883 = vpop.permute.xlu0 %882
    %884 = vrot.lane.b32.xlu0 %v871, 96
    %v885 = vpop.permute.xlu0 %884
    %v888 = vmul.f32 %v867, %v883
    %v889 = vmul.f32 %v869, %v885
    %892 = vrot.lane.b32.xlu0 %v888, 16
    %v893 = vpop.permute.xlu0 %892
    %894 = vrot.lane.b32.xlu0 %v889, 16
    %v895 = vpop.permute.xlu0 %894
    %v898 = vadd.f32 %v878, %v893
    %v899 = vadd.f32 %v879, %v895
    %v900 = vtanh.pop %v898
    %v901 = vtanh.pop %v899
    %904 = vrot.lane.b32.xlu0 %v900, 32
    %v905 = vpop.permute.xlu0 %904
    %906 = vrot.lane.b32.xlu0 %v901, 32
    %v907 = vpop.permute.xlu0 %906
    %v910 = vmul.f32 %v867, %v905
    %v911 = vmul.f32 %v869, %v907
    %v914 = vrot.slane %v857, 7
    %vm915 = vcmask 1043459
    %v916 = vsel %vm915, %v914, %v856
    %917 = vrot.lane.b32.xlu0 %v916, 80
    %v918 = vpop.permute.xlu0 %917
    %v922 = vrot.slane %v910, 3
    %v923 = vrot.slane %v911, 2
    %v924 = vsel %vm915, %v923, %v922
    %925 = vrot.lane.b32.xlu0 %v924, 96
    %v926 = vpop.permute.xlu0 %925
    %v928 = vsel %vm127, %v918, %v926
    %v930 = vrot.slane %v928, 2
    %v931 = vsel %vm297, %v930, 0
    %933 = vmatprep.subr.mxu0 0.0
    %934 = vmatpush1.msra.mxu0 0.0
    %935 = vmatprep.subr.mxu0 0.0
    %936 = vmatpush1.msra.mxu0 0.0
    %937 = vmatprep.subr.mxu0 0.0
    %938 = vmatpush1.msra.mxu0 0.0
    %939 = vmatprep.subr.mxu0 0.0
    %940 = vmatpush1.msra.mxu0 0.0
    %941 = vmatprep.subr.mxu0 0.0
    %942 = vmatpush1.msra.mxu0 0.0
    %943 = vmatprep.subr.mxu0 0.0
    %944 = vmatpush1.msra.mxu0 0.0
    %945 = vmatprep.subr.mxu0 0.0
    %946 = vmatpush1.msra.mxu0 0.0
    %947 = vmatprep.subr.mxu0 0.0
    %948 = vmatpush1.msra.mxu0 0.0
    %949 = vmatprep.subr.mxu0 0.0
    %950 = vmatpush1.msra.mxu0 0.0
    %951 = vmatprep.subr.mxu0 0.0
    %952 = vmatpush1.msra.mxu0 0.0
    %953 = vmatprep.subr.mxu0 0.0
    %954 = vmatpush1.msra.mxu0 0.0
    %955 = vmatprep.subr.mxu0 0.0
    %956 = vmatpush1.msra.mxu0 0.0
    %957 = vmatprep.subr.mxu0 0.0
    %958 = vmatpush1.msra.mxu0 %v296
    %959 = vmatprep.subr.mxu0 0.0
    %960 = vmatpush1.msra.mxu0 %v295
    %961 = vmatprep.subr.mxu0 0.0
    %962 = vmatpush1.msra.mxu0 %v294
    %963 = vmatprep.subr.mxu0 0.0
    %964 = vmatpush1.msra.mxu0 %v293
    %965 = vmatprep.subr.mxu0 0.0
    %966 = vmatpush2.msra.mxu0 0.0
    %967 = vmatprep.subr.mxu0 0.0
    %968 = vmatpush2.msra.mxu0 0.0
    %969 = vmatprep.subr.mxu0 0.0
    %970 = vmatpush2.msra.mxu0 0.0
    %971 = vmatprep.subr.mxu0 0.0
    %972 = vmatpush2.msra.mxu0 0.0
    %973 = vmatprep.subr.mxu0 0.0
    %974 = vmatpush2.msra.mxu0 0.0
    %975 = vmatprep.subr.mxu0 0.0
    %976 = vmatpush2.msra.mxu0 0.0
    %977 = vmatprep.subr.mxu0 0.0
    %978 = vmatpush2.msra.mxu0 0.0
    %979 = vmatprep.subr.mxu0 0.0
    %980 = vmatpush2.msra.mxu0 0.0
    %981 = vmatprep.subr.mxu0 0.0
    %982 = vmatpush2.msra.mxu0 0.0
    %983 = vmatprep.subr.mxu0 0.0
    %984 = vmatpush2.msra.mxu0 0.0
    %985 = vmatprep.subr.mxu0 0.0
    %986 = vmatpush2.msra.mxu0 0.0
    %987 = vmatprep.subr.mxu0 0.0
    %988 = vmatpush2.msra.mxu0 0.0
    %989 = vmatprep.subr.mxu0 0.0
    %990 = vmatpush2.msra.mxu0 0.0
    %991 = vmatprep.subr.mxu0 0.0
    %992 = vmatpush2.msra.mxu0 0.0
    %993 = vmatprep.subr.mxu0 0.0
    %994 = vmatpush2.msra.mxu0 0.0
    %995 = vmatprep.subr.mxu0 0.0
    %996 = vmatpush2.msra.mxu0 0.0
    %997 = vmatprep.mubr.f32.mxu0 0.0
    %998 = vmatmul.mubr.f32.gmra.mxu0 %v931
    %v999 = vpop.f32.mrf.mxu0
    %v1000 = vadd.f32 0.0, %v999
    %v1001 = vpop.f32.mrf.mxu0
    %1002 = vdwg.mxu0
    %v1004 = vrot.slane %v1000, 5
    %v1005 = vrot.slane %v1000, 6
    %v1008 = vadd.f32 %v201, %v1004
    %v1009 = vadd.f32 %v206, %v1005
    %v1010 = vrot.slane %v1000, 4
    %1011 = vrot.lane.b32.xlu0 %v1010, 64
    %v1012 = vpop.permute.xlu0 %1011
    %1013 = vrot.lane.b32.xlu0 %v1004, 64
    %v1014 = vpop.permute.xlu0 %1013
    %v1017 = vadd.f32 %v285, %v1012
    %v1018 = vadd.f32 %v290, %v1014
    %v1019 = vxor.u32 %v1008, 2147483648
    %v1020 = vxor.u32 %v1009, 2147483648
    %v1021 = vmul.f32 %v1019, 1.442695
    %v1022 = vpow.pop %v1021
    %v1023 = vmul.f32 %v1020, 1.442695
    %v1024 = vpow.pop %v1023
    %v1025 = vadd.f32 %v1022, 1.0
    %v1026 = vadd.f32 %v1024, 1.0
    %v1027 = vrcp.pop %v1025
    %v1028 = vmul.f32 1.0, %v1027
    %v1029 = vrcp.pop %v1026
    %v1030 = vmul.f32 1.0, %v1029
    %v1031 = vtanh.pop %v1008
    %v1032 = vtanh.pop %v1009
    %v1035 = vrot.slane %v844, 7
    %v1036 = vrot.slane %v845, 7
    %v1039 = vmul.f32 %v1028, %v1035
    %v1040 = vmul.f32 %v1030, %v1036
    %1043 = vrot.lane.b32.xlu0 %v1031, 96
    %v1044 = vpop.permute.xlu0 %1043
    %1045 = vrot.lane.b32.xlu0 %v1032, 96
    %v1046 = vpop.permute.xlu0 %1045
    %v1049 = vmul.f32 %v1028, %v1044
    %v1050 = vmul.f32 %v1030, %v1046
    %1053 = vrot.lane.b32.xlu0 %v1049, 16
    %v1054 = vpop.permute.xlu0 %1053
    %1055 = vrot.lane.b32.xlu0 %v1050, 16
    %v1056 = vpop.permute.xlu0 %1055
    %v1059 = vadd.f32 %v1039, %v1054
    %v1060 = vadd.f32 %v1040, %v1056
    %v1061 = vtanh.pop %v1059
    %v1062 = vtanh.pop %v1060
    %1065 = vrot.lane.b32.xlu0 %v1061, 32
    %v1066 = vpop.permute.xlu0 %1065
    %1067 = vrot.lane.b32.xlu0 %v1062, 32
    %v1068 = vpop.permute.xlu0 %1067
    %v1071 = vmul.f32 %v1028, %v1066
    %v1072 = vmul.f32 %v1030, %v1068
    %v1073 = vxor.u32 %v1017, 2147483648
    %v1074 = vxor.u32 %v1018, 2147483648
    %v1075 = vmul.f32 %v1073, 1.442695
    %v1076 = vpow.pop %v1075
    %v1077 = vmul.f32 %v1074, 1.442695
    %v1078 = vpow.pop %v1077
    %v1079 = vadd.f32 %v1076, 1.0
    %v1080 = vadd.f32 %v1078, 1.0
    %v1081 = vrcp.pop %v1079
    %v1082 = vmul.f32 1.0, %v1081
    %v1083 = vrcp.pop %v1080
    %v1084 = vmul.f32 1.0, %v1083
    %v1085 = vtanh.pop %v1017
    %v1086 = vtanh.pop %v1018
    %v1089 = vrot.slane %v898, 1
    %v1090 = vrot.slane %v899, 1
    %v1093 = vmul.f32 %v1082, %v1089
    %v1094 = vmul.f32 %v1084, %v1090
    %1097 = vrot.lane.b32.xlu0 %v1085, 96
    %v1098 = vpop.permute.xlu0 %1097
    %1099 = vrot.lane.b32.xlu0 %v1086, 96
    %v1100 = vpop.permute.xlu0 %1099
    %v1103 = vmul.f32 %v1082, %v1098
    %v1104 = vmul.f32 %v1084, %v1100
    %1107 = vrot.lane.b32.xlu0 %v1103, 16
    %v1108 = vpop.permute.xlu0 %1107
    %1109 = vrot.lane.b32.xlu0 %v1104, 16
    %v1110 = vpop.permute.xlu0 %1109
    %v1113 = vadd.f32 %v1093, %v1108
    %v1114 = vadd.f32 %v1094, %v1110
    %v1115 = vtanh.pop %v1113
    %v1116 = vtanh.pop %v1114
    %1119 = vrot.lane.b32.xlu0 %v1115, 32
    %v1120 = vpop.permute.xlu0 %1119
    %1121 = vrot.lane.b32.xlu0 %v1116, 32
    %v1122 = vpop.permute.xlu0 %1121
    %v1125 = vmul.f32 %v1082, %v1120
    %v1126 = vmul.f32 %v1084, %v1122
    %v1129 = vrot.slane %v1072, 7
    %vm1130 = vcmask 1044484
    %v1131 = vsel %vm1130, %v1129, %v1071
    %1132 = vrot.lane.b32.xlu0 %v1131, 80
    %v1133 = vpop.permute.xlu0 %1132
    %v1137 = vrot.slane %v1125, 1
    %v1138 = vsel %vm1130, %v1126, %v1137
    %1139 = vrot.lane.b32.xlu0 %v1138, 96
    %v1140 = vpop.permute.xlu0 %1139
    %v1142 = vsel %vm127, %v1133, %v1140
    %v1144 = vrot.slane %v1142, 3
    %v1145 = vsel %vm297, %v1144, 0
    %1147 = vmatprep.subr.mxu0 0.0
    %1148 = vmatpush1.msra.mxu0 0.0
    %1149 = vmatprep.subr.mxu0 0.0
    %1150 = vmatpush1.msra.mxu0 0.0
    %1151 = vmatprep.subr.mxu0 0.0
    %1152 = vmatpush1.msra.mxu0 0.0
    %1153 = vmatprep.subr.mxu0 0.0
    %1154 = vmatpush1.msra.mxu0 0.0
    %1155 = vmatprep.subr.mxu0 0.0
    %1156 = vmatpush1.msra.mxu0 0.0
    %1157 = vmatprep.subr.mxu0 0.0
    %1158 = vmatpush1.msra.mxu0 0.0
    %1159 = vmatprep.subr.mxu0 0.0
    %1160 = vmatpush1.msra.mxu0 0.0
    %1161 = vmatprep.subr.mxu0 0.0
    %1162 = vmatpush1.msra.mxu0 0.0
    %1163 = vmatprep.subr.mxu0 0.0
    %1164 = vmatpush1.msra.mxu0 0.0
    %1165 = vmatprep.subr.mxu0 0.0
    %1166 = vmatpush1.msra.mxu0 0.0
    %1167 = vmatprep.subr.mxu0 0.0
    %1168 = vmatpush1.msra.mxu0 0.0
    %1169 = vmatprep.subr.mxu0 0.0
    %1170 = vmatpush1.msra.mxu0 0.0
    %1171 = vmatprep.subr.mxu0 0.0
    %1172 = vmatpush1.msra.mxu0 %v296
    %1173 = vmatprep.subr.mxu0 0.0
    %1174 = vmatpush1.msra.mxu0 %v295
    %1175 = vmatprep.subr.mxu0 0.0
    %1176 = vmatpush1.msra.mxu0 %v294
    %1177 = vmatprep.subr.mxu0 0.0
    %1178 = vmatpush1.msra.mxu0 %v293
    %1179 = vmatprep.subr.mxu0 0.0
    %1180 = vmatpush2.msra.mxu0 0.0
    %1181 = vmatprep.subr.mxu0 0.0
    %1182 = vmatpush2.msra.mxu0 0.0
    %1183 = vmatprep.subr.mxu0 0.0
    %1184 = vmatpush2.msra.mxu0 0.0
    %1185 = vmatprep.subr.mxu0 0.0
    %1186 = vmatpush2.msra.mxu0 0.0
    %1187 = vmatprep.subr.mxu0 0.0
    %1188 = vmatpush2.msra.mxu0 0.0
    %1189 = vmatprep.subr.mxu0 0.0
    %1190 = vmatpush2.msra.mxu0 0.0
    %1191 = vmatprep.subr.mxu0 0.0
    %1192 = vmatpush2.msra.mxu0 0.0
    %1193 = vmatprep.subr.mxu0 0.0
    %1194 = vmatpush2.msra.mxu0 0.0
    %1195 = vmatprep.subr.mxu0 0.0
    %1196 = vmatpush2.msra.mxu0 0.0
    %1197 = vmatprep.subr.mxu0 0.0
    %1198 = vmatpush2.msra.mxu0 0.0
    %1199 = vmatprep.subr.mxu0 0.0
    %1200 = vmatpush2.msra.mxu0 0.0
    %1201 = vmatprep.subr.mxu0 0.0
    %1202 = vmatpush2.msra.mxu0 0.0
    %1203 = vmatprep.subr.mxu0 0.0
    %1204 = vmatpush2.msra.mxu0 0.0
    %1205 = vmatprep.subr.mxu0 0.0
    %1206 = vmatpush2.msra.mxu0 0.0
    %1207 = vmatprep.subr.mxu0 0.0
    %1208 = vmatpush2.msra.mxu0 0.0
    %1209 = vmatprep.subr.mxu0 0.0
    %1210 = vmatpush2.msra.mxu0 0.0
    %1211 = vmatprep.mubr.f32.mxu0 0.0
    %1212 = vmatmul.mubr.f32.gmra.mxu0 %v1145
    %v1213 = vpop.f32.mrf.mxu0
    %v1214 = vadd.f32 0.0, %v1213
    %v1215 = vpop.f32.mrf.mxu0
    %1216 = vdwg.mxu0
    %v1218 = vrot.slane %v1214, 4
    %v1219 = vrot.slane %v1214, 5
    %v1222 = vadd.f32 %v201, %v1218
    %v1223 = vadd.f32 %v206, %v1219
    %v1224 = vrot.slane %v1214, 6
    %1225 = vrot.lane.b32.xlu0 %v1219, 64
    %v1226 = vpop.permute.xlu0 %1225
    %1227 = vrot.lane.b32.xlu0 %v1224, 64
    %v1228 = vpop.permute.xlu0 %1227
    %v1231 = vadd.f32 %v285, %v1226
    %v1232 = vadd.f32 %v290, %v1228
    %v1233 = vxor.u32 %v1222, 2147483648
    %v1234 = vxor.u32 %v1223, 2147483648
    %v1235 = vmul.f32 %v1233, 1.442695
    %v1236 = vpow.pop %v1235
    %v1237 = vmul.f32 %v1234, 1.442695
    %v1238 = vpow.pop %v1237
    %v1239 = vadd.f32 %v1236, 1.0
    %v1240 = vadd.f32 %v1238, 1.0
    %v1241 = vrcp.pop %v1239
    %v1242 = vmul.f32 1.0, %v1241
    %v1243 = vrcp.pop %v1240
    %v1244 = vmul.f32 1.0, %v1243
    %v1245 = vtanh.pop %v1222
    %v1246 = vtanh.pop %v1223
    %v1249 = vrot.slane %v1059, 7
    %v1250 = vrot.slane %v1060, 7
    %v1253 = vmul.f32 %v1242, %v1249
    %v1254 = vmul.f32 %v1244, %v1250
    %1257 = vrot.lane.b32.xlu0 %v1245, 96
    %v1258 = vpop.permute.xlu0 %1257
    %1259 = vrot.lane.b32.xlu0 %v1246, 96
    %v1260 = vpop.permute.xlu0 %1259
    %v1263 = vmul.f32 %v1242, %v1258
    %v1264 = vmul.f32 %v1244, %v1260
    %1267 = vrot.lane.b32.xlu0 %v1263, 16
    %v1268 = vpop.permute.xlu0 %1267
    %1269 = vrot.lane.b32.xlu0 %v1264, 16
    %v1270 = vpop.permute.xlu0 %1269
    %v1273 = vadd.f32 %v1253, %v1268
    %v1274 = vadd.f32 %v1254, %v1270
    %v1275 = vtanh.pop %v1273
    %v1276 = vtanh.pop %v1274
    %1279 = vrot.lane.b32.xlu0 %v1275, 32
    %v1280 = vpop.permute.xlu0 %1279
    %1281 = vrot.lane.b32.xlu0 %v1276, 32
    %v1282 = vpop.permute.xlu0 %1281
    %v1285 = vmul.f32 %v1242, %v1280
    %v1286 = vmul.f32 %v1244, %v1282
    %v1287 = vxor.u32 %v1231, 2147483648
    %v1288 = vxor.u32 %v1232, 2147483648
    %v1289 = vmul.f32 %v1287, 1.442695
    %v1290 = vpow.pop %v1289
    %v1291 = vmul.f32 %v1288, 1.442695
    %v1292 = vpow.pop %v1291
    %v1293 = vadd.f32 %v1290, 1.0
    %v1294 = vadd.f32 %v1292, 1.0
    %v1295 = vrcp.pop %v1293
    %v1296 = vmul.f32 1.0, %v1295
    %v1297 = vrcp.pop %v1294
    %v1298 = vmul.f32 1.0, %v1297
    %v1299 = vtanh.pop %v1231
    %v1300 = vtanh.pop %v1232
    %v1303 = vrot.slane %v1113, 1
    %v1304 = vrot.slane %v1114, 1
    %v1307 = vmul.f32 %v1296, %v1303
    %v1308 = vmul.f32 %v1298, %v1304
    %1311 = vrot.lane.b32.xlu0 %v1299, 96
    %v1312 = vpop.permute.xlu0 %1311
    %1313 = vrot.lane.b32.xlu0 %v1300, 96
    %v1314 = vpop.permute.xlu0 %1313
    %v1317 = vmul.f32 %v1296, %v1312
    %v1318 = vmul.f32 %v1298, %v1314
    %1321 = vrot.lane.b32.xlu0 %v1317, 16
    %v1322 = vpop.permute.xlu0 %1321
    %1323 = vrot.lane.b32.xlu0 %v1318, 16
    %v1324 = vpop.permute.xlu0 %1323
    %v1327 = vadd.f32 %v1307, %v1322
    %v1328 = vadd.f32 %v1308, %v1324
    %v1329 = vtanh.pop %v1327
    %v1330 = vtanh.pop %v1328
    %1333 = vrot.lane.b32.xlu0 %v1329, 32
    %v1334 = vpop.permute.xlu0 %1333
    %1335 = vrot.lane.b32.xlu0 %v1330, 32
    %v1336 = vpop.permute.xlu0 %1335
    %v1339 = vmul.f32 %v1296, %v1334
    %v1340 = vmul.f32 %v1298, %v1336
    %v1343 = vrot.slane %v1286, 7
    %vm1344 = vcmask 1045509
    %v1345 = vsel %vm1344, %v1343, %v1285
    %1346 = vrot.lane.b32.xlu0 %v1345, 80
    %v1347 = vpop.permute.xlu0 %1346
    %v1351 = vrot.slane %v1339, 7
    %v1352 = vrot.slane %v1340, 6
    %v1353 = vsel %vm1344, %v1352, %v1351
    %1354 = vrot.lane.b32.xlu0 %v1353, 96
    %v1355 = vpop.permute.xlu0 %1354
    %v1357 = vsel %vm127, %v1347, %v1355
    %v1359 = vrot.slane %v1357, 4
    %v1360 = vsel %vm297, %v1359, 0
    %1362 = vmatprep.subr.mxu0 0.0
    %1363 = vmatpush1.msra.mxu0 0.0
    %1364 = vmatprep.subr.mxu0 0.0
    %1365 = vmatpush1.msra.mxu0 0.0
    %1366 = vmatprep.subr.mxu0 0.0
    %1367 = vmatpush1.msra.mxu0 0.0
    %1368 = vmatprep.subr.mxu0 0.0
    %1369 = vmatpush1.msra.mxu0 0.0
    %1370 = vmatprep.subr.mxu0 0.0
    %1371 = vmatpush1.msra.mxu0 0.0
    %1372 = vmatprep.subr.mxu0 0.0
    %1373 = vmatpush1.msra.mxu0 0.0
    %1374 = vmatprep.subr.mxu0 0.0
    %1375 = vmatpush1.msra.mxu0 0.0
    %1376 = vmatprep.subr.mxu0 0.0
    %1377 = vmatpush1.msra.mxu0 0.0
    %1378 = vmatprep.subr.mxu0 0.0
    %1379 = vmatpush1.msra.mxu0 0.0
    %1380 = vmatprep.subr.mxu0 0.0
    %1381 = vmatpush1.msra.mxu0 0.0
    %1382 = vmatprep.subr.mxu0 0.0
    %1383 = vmatpush1.msra.mxu0 0.0
    %1384 = vmatprep.subr.mxu0 0.0
    %1385 = vmatpush1.msra.mxu0 0.0
    %1386 = vmatprep.subr.mxu0 0.0
    %1387 = vmatpush1.msra.mxu0 %v296
    %1388 = vmatprep.subr.mxu0 0.0
    %1389 = vmatpush1.msra.mxu0 %v295
    %1390 = vmatprep.subr.mxu0 0.0
    %1391 = vmatpush1.msra.mxu0 %v294
    %1392 = vmatprep.subr.mxu0 0.0
    %1393 = vmatpush1.msra.mxu0 %v293
    %1394 = vmatprep.subr.mxu0 0.0
    %1395 = vmatpush2.msra.mxu0 0.0
    %1396 = vmatprep.subr.mxu0 0.0
    %1397 = vmatpush2.msra.mxu0 0.0
    %1398 = vmatprep.subr.mxu0 0.0
    %1399 = vmatpush2.msra.mxu0 0.0
    %1400 = vmatprep.subr.mxu0 0.0
    %1401 = vmatpush2.msra.mxu0 0.0
    %1402 = vmatprep.subr.mxu0 0.0
    %1403 = vmatpush2.msra.mxu0 0.0
    %1404 = vmatprep.subr.mxu0 0.0
    %1405 = vmatpush2.msra.mxu0 0.0
    %1406 = vmatprep.subr.mxu0 0.0
    %1407 = vmatpush2.msra.mxu0 0.0
    %1408 = vmatprep.subr.mxu0 0.0
    %1409 = vmatpush2.msra.mxu0 0.0
    %1410 = vmatprep.subr.mxu0 0.0
    %1411 = vmatpush2.msra.mxu0 0.0
    %1412 = vmatprep.subr.mxu0 0.0
    %1413 = vmatpush2.msra.mxu0 0.0
    %1414 = vmatprep.subr.mxu0 0.0
    %1415 = vmatpush2.msra.mxu0 0.0
    %1416 = vmatprep.subr.mxu0 0.0
    %1417 = vmatpush2.msra.mxu0 0.0
    %1418 = vmatprep.subr.mxu0 0.0
    %1419 = vmatpush2.msra.mxu0 0.0
    %1420 = vmatprep.subr.mxu0 0.0
    %1421 = vmatpush2.msra.mxu0 0.0
    %1422 = vmatprep.subr.mxu0 0.0
    %1423 = vmatpush2.msra.mxu0 0.0
    %1424 = vmatprep.subr.mxu0 0.0
    %1425 = vmatpush2.msra.mxu0 0.0
    %1426 = vmatprep.mubr.f32.mxu0 0.0
    %1427 = vmatmul.mubr.f32.gmra.mxu0 %v1360
    %v1428 = vpop.f32.mrf.mxu0
    %v1429 = vadd.f32 0.0, %v1428
    %v1430 = vpop.f32.mrf.mxu0
    %1431 = vdwg.mxu0
    %v1433 = vrot.slane %v1429, 3
    %v1434 = vrot.slane %v1429, 4
    %v1437 = vadd.f32 %v201, %v1433
    %v1438 = vadd.f32 %v206, %v1434
    %v1439 = vrot.slane %v1429, 6
    %v1440 = vrot.slane %v1429, 7
    %1441 = vrot.lane.b32.xlu0 %v1439, 64
    %v1442 = vpop.permute.xlu0 %1441
    %1443 = vrot.lane.b32.xlu0 %v1440, 64
    %v1444 = vpop.permute.xlu0 %1443
    %v1447 = vadd.f32 %v285, %v1442
    %v1448 = vadd.f32 %v290, %v1444
    %v1449 = vxor.u32 %v1437, 2147483648
    %v1450 = vxor.u32 %v1438, 2147483648
    %v1451 = vmul.f32 %v1449, 1.442695
    %v1452 = vpow.pop %v1451
    %v1453 = vmul.f32 %v1450, 1.442695
    %v1454 = vpow.pop %v1453
    %v1455 = vadd.f32 %v1452, 1.0
    %v1456 = vadd.f32 %v1454, 1.0
    %v1457 = vrcp.pop %v1455
    %v1458 = vmul.f32 1.0, %v1457
    %v1459 = vrcp.pop %v1456
    %v1460 = vmul.f32 1.0, %v1459
    %v1461 = vtanh.pop %v1437
    %v1462 = vtanh.pop %v1438
    %v1465 = vrot.slane %v1273, 7
    %v1466 = vrot.slane %v1274, 7
    %v1469 = vmul.f32 %v1458, %v1465
    %v1470 = vmul.f32 %v1460, %v1466
    %1473 = vrot.lane.b32.xlu0 %v1461, 96
    %v1474 = vpop.permute.xlu0 %1473
    %1475 = vrot.lane.b32.xlu0 %v1462, 96
    %v1476 = vpop.permute.xlu0 %1475
    %v1479 = vmul.f32 %v1458, %v1474
    %v1480 = vmul.f32 %v1460, %v1476
    %1483 = vrot.lane.b32.xlu0 %v1479, 16
    %v1484 = vpop.permute.xlu0 %1483
    %1485 = vrot.lane.b32.xlu0 %v1480, 16
    %v1486 = vpop.permute.xlu0 %1485
    %v1489 = vadd.f32 %v1469, %v1484
    %v1490 = vadd.f32 %v1470, %v1486
    %v1491 = vtanh.pop %v1489
    %v1492 = vtanh.pop %v1490
    %1495 = vrot.lane.b32.xlu0 %v1491, 32
    %v1496 = vpop.permute.xlu0 %1495
    %1497 = vrot.lane.b32.xlu0 %v1492, 32
    %v1498 = vpop.permute.xlu0 %1497
    %v1501 = vmul.f32 %v1458, %v1496
    %v1502 = vmul.f32 %v1460, %v1498
    %v1503 = vxor.u32 %v1447, 2147483648
    %v1504 = vxor.u32 %v1448, 2147483648
    %v1505 = vmul.f32 %v1503, 1.442695
    %v1506 = vpow.pop %v1505
    %v1507 = vmul.f32 %v1504, 1.442695
    %v1508 = vpow.pop %v1507
    %v1509 = vadd.f32 %v1506, 1.0
    %v1510 = vadd.f32 %v1508, 1.0
    %v1511 = vrcp.pop %v1509
    %v1512 = vmul.f32 1.0, %v1511
    %v1513 = vrcp.pop %v1510
    %v1514 = vmul.f32 1.0, %v1513
    %v1515 = vtanh.pop %v1447
    %v1516 = vtanh.pop %v1448
    %v1519 = vrot.slane %v1327, 1
    %v1520 = vrot.slane %v1328, 1
    %v1523 = vmul.f32 %v1512, %v1519
    %v1524 = vmul.f32 %v1514, %v1520
    %1527 = vrot.lane.b32.xlu0 %v1515, 96
    %v1528 = vpop.permute.xlu0 %1527
    %1529 = vrot.lane.b32.xlu0 %v1516, 96
    %v1530 = vpop.permute.xlu0 %1529
    %v1533 = vmul.f32 %v1512, %v1528
    %v1534 = vmul.f32 %v1514, %v1530
    %1537 = vrot.lane.b32.xlu0 %v1533, 16
    %v1538 = vpop.permute.xlu0 %1537
    %1539 = vrot.lane.b32.xlu0 %v1534, 16
    %v1540 = vpop.permute.xlu0 %1539
    %v1543 = vadd.f32 %v1523, %v1538
    %v1544 = vadd.f32 %v1524, %v1540
    %v1545 = vtanh.pop %v1543
    %v1546 = vtanh.pop %v1544
    %1549 = vrot.lane.b32.xlu0 %v1545, 32
    %v1550 = vpop.permute.xlu0 %1549
    %1551 = vrot.lane.b32.xlu0 %v1546, 32
    %v1552 = vpop.permute.xlu0 %1551
    %v1555 = vmul.f32 %v1512, %v1550
    %v1556 = vmul.f32 %v1514, %v1552
    %v1559 = vrot.slane %v1502, 7
    %vm1560 = vcmask 1046534
    %v1561 = vsel %vm1560, %v1559, %v1501
    %1562 = vrot.lane.b32.xlu0 %v1561, 80
    %v1563 = vpop.permute.xlu0 %1562
    %v1567 = vrot.slane %v1555, 5
    %v1568 = vrot.slane %v1556, 4
    %v1569 = vsel %vm1560, %v1568, %v1567
    %1570 = vrot.lane.b32.xlu0 %v1569, 96
    %v1571 = vpop.permute.xlu0 %1570
    %v1573 = vsel %vm127, %v1563, %v1571
    %v1575 = vrot.slane %v1573, 5
    %v1576 = vsel %vm297, %v1575, 0
    %1578 = vmatprep.subr.mxu0 0.0
    %1579 = vmatpush1.msra.mxu0 0.0
    %1580 = vmatprep.subr.mxu0 0.0
    %1581 = vmatpush1.msra.mxu0 0.0
    %1582 = vmatprep.subr.mxu0 0.0
    %1583 = vmatpush1.msra.mxu0 0.0
    %1584 = vmatprep.subr.mxu0 0.0
    %1585 = vmatpush1.msra.mxu0 0.0
    %1586 = vmatprep.subr.mxu0 0.0
    %1587 = vmatpush1.msra.mxu0 0.0
    %1588 = vmatprep.subr.mxu0 0.0
    %1589 = vmatpush1.msra.mxu0 0.0
    %1590 = vmatprep.subr.mxu0 0.0
    %1591 = vmatpush1.msra.mxu0 0.0
    %1592 = vmatprep.subr.mxu0 0.0
    %1593 = vmatpush1.msra.mxu0 0.0
    %1594 = vmatprep.subr.mxu0 0.0
    %1595 = vmatpush1.msra.mxu0 0.0
    %1596 = vmatprep.subr.mxu0 0.0
    %1597 = vmatpush1.msra.mxu0 0.0
    %1598 = vmatprep.subr.mxu0 0.0
    %1599 = vmatpush1.msra.mxu0 0.0
    %1600 = vmatprep.subr.mxu0 0.0
    %1601 = vmatpush1.msra.mxu0 0.0
    %1602 = vmatprep.subr.mxu0 0.0
    %1603 = vmatpush1.msra.mxu0 %v296
    %1604 = vmatprep.subr.mxu0 0.0
    %1605 = vmatpush1.msra.mxu0 %v295
    %1606 = vmatprep.subr.mxu0 0.0
    %1607 = vmatpush1.msra.mxu0 %v294
    %1608 = vmatprep.subr.mxu0 0.0
    %1609 = vmatpush1.msra.mxu0 %v293
    %1610 = vmatprep.subr.mxu0 0.0
    %1611 = vmatpush2.msra.mxu0 0.0
    %1612 = vmatprep.subr.mxu0 0.0
    %1613 = vmatpush2.msra.mxu0 0.0
    %1614 = vmatprep.subr.mxu0 0.0
    %1615 = vmatpush2.msra.mxu0 0.0
    %1616 = vmatprep.subr.mxu0 0.0
    %1617 = vmatpush2.msra.mxu0 0.0
    %1618 = vmatprep.subr.mxu0 0.0
    %1619 = vmatpush2.msra.mxu0 0.0
    %1620 = vmatprep.subr.mxu0 0.0
    %1621 = vmatpush2.msra.mxu0 0.0
    %1622 = vmatprep.subr.mxu0 0.0
    %1623 = vmatpush2.msra.mxu0 0.0
    %1624 = vmatprep.subr.mxu0 0.0
    %1625 = vmatpush2.msra.mxu0 0.0
    %1626 = vmatprep.subr.mxu0 0.0
    %1627 = vmatpush2.msra.mxu0 0.0
    %1628 = vmatprep.subr.mxu0 0.0
    %1629 = vmatpush2.msra.mxu0 0.0
    %1630 = vmatprep.subr.mxu0 0.0
    %1631 = vmatpush2.msra.mxu0 0.0
    %1632 = vmatprep.subr.mxu0 0.0
    %1633 = vmatpush2.msra.mxu0 0.0
    %1634 = vmatprep.subr.mxu0 0.0
    %1635 = vmatpush2.msra.mxu0 0.0
    %1636 = vmatprep.subr.mxu0 0.0
    %1637 = vmatpush2.msra.mxu0 0.0
    %1638 = vmatprep.subr.mxu0 0.0
    %1639 = vmatpush2.msra.mxu0 0.0
    %1640 = vmatprep.subr.mxu0 0.0
    %1641 = vmatpush2.msra.mxu0 0.0
    %1642 = vmatprep.mubr.f32.mxu0 0.0
    %1643 = vmatmul.mubr.f32.gmra.mxu0 %v1576
    %v1644 = vpop.f32.mrf.mxu0
    %v1645 = vadd.f32 0.0, %v1644
    %v1646 = vpop.f32.mrf.mxu0
    %1647 = vdwg.mxu0
    %v1649 = vrot.slane %v1645, 2
    %v1650 = vrot.slane %v1645, 3
    %v1653 = vadd.f32 %v201, %v1649
    %v1654 = vadd.f32 %v206, %v1650
    %v1655 = vrot.slane %v1645, 7
    %1656 = vrot.lane.b32.xlu0 %v1655, 64
    %v1657 = vpop.permute.xlu0 %1656
    %1658 = vrot.lane.b32.xlu0 %v1645, 64
    %v1659 = vpop.permute.xlu0 %1658
    %v1662 = vadd.f32 %v285, %v1657
    %v1663 = vadd.f32 %v290, %v1659
    %v1664 = vxor.u32 %v1653, 2147483648
    %v1665 = vxor.u32 %v1654, 2147483648
    %v1666 = vmul.f32 %v1664, 1.442695
    %v1667 = vpow.pop %v1666
    %v1668 = vmul.f32 %v1665, 1.442695
    %v1669 = vpow.pop %v1668
    %v1670 = vadd.f32 %v1667, 1.0
    %v1671 = vadd.f32 %v1669, 1.0
    %v1672 = vrcp.pop %v1670
    %v1673 = vmul.f32 1.0, %v1672
    %v1674 = vrcp.pop %v1671
    %v1675 = vmul.f32 1.0, %v1674
    %v1676 = vtanh.pop %v1653
    %v1677 = vtanh.pop %v1654
    %v1680 = vrot.slane %v1489, 7
    %v1681 = vrot.slane %v1490, 7
    %v1684 = vmul.f32 %v1673, %v1680
    %v1685 = vmul.f32 %v1675, %v1681
    %1688 = vrot.lane.b32.xlu0 %v1676, 96
    %v1689 = vpop.permute.xlu0 %1688
    %1690 = vrot.lane.b32.xlu0 %v1677, 96
    %v1691 = vpop.permute.xlu0 %1690
    %v1694 = vmul.f32 %v1673, %v1689
    %v1695 = vmul.f32 %v1675, %v1691
    %1698 = vrot.lane.b32.xlu0 %v1694, 16
    %v1699 = vpop.permute.xlu0 %1698
    %1700 = vrot.lane.b32.xlu0 %v1695, 16
    %v1701 = vpop.permute.xlu0 %1700
    %v1704 = vadd.f32 %v1684, %v1699
    %v1705 = vadd.f32 %v1685, %v1701
    %v1706 = vtanh.pop %v1704
    %v1707 = vtanh.pop %v1705
    %1710 = vrot.lane.b32.xlu0 %v1706, 32
    %v1711 = vpop.permute.xlu0 %1710
    %1712 = vrot.lane.b32.xlu0 %v1707, 32
    %v1713 = vpop.permute.xlu0 %1712
    %v1716 = vmul.f32 %v1673, %v1711
    %v1717 = vmul.f32 %v1675, %v1713
    %v1718 = vxor.u32 %v1662, 2147483648
    %v1719 = vxor.u32 %v1663, 2147483648
    %v1720 = vmul.f32 %v1718, 1.442695
    %v1721 = vpow.pop %v1720
    %v1722 = vmul.f32 %v1719, 1.442695
    %v1723 = vpow.pop %v1722
    %v1724 = vadd.f32 %v1721, 1.0
    %v1725 = vadd.f32 %v1723, 1.0
    %v1726 = vrcp.pop %v1724
    %v1727 = vmul.f32 1.0, %v1726
    %v1728 = vrcp.pop %v1725
    %v1729 = vmul.f32 1.0, %v1728
    %v1730 = vtanh.pop %v1662
    %v1731 = vtanh.pop %v1663
    %v1734 = vrot.slane %v1543, 1
    %v1735 = vrot.slane %v1544, 1
    %v1738 = vmul.f32 %v1727, %v1734
    %v1739 = vmul.f32 %v1729, %v1735
    %1742 = vrot.lane.b32.xlu0 %v1730, 96
    %v1743 = vpop.permute.xlu0 %1742
    %1744 = vrot.lane.b32.xlu0 %v1731, 96
    %v1745 = vpop.permute.xlu0 %1744
    %v1748 = vmul.f32 %v1727, %v1743
    %v1749 = vmul.f32 %v1729, %v1745
    %1752 = vrot.lane.b32.xlu0 %v1748, 16
    %v1753 = vpop.permute.xlu0 %1752
    %1754 = vrot.lane.b32.xlu0 %v1749, 16
    %v1755 = vpop.permute.xlu0 %1754
    %v1758 = vadd.f32 %v1738, %v1753
    %v1759 = vadd.f32 %v1739, %v1755
    %v1760 = vtanh.pop %v1758
    %v1761 = vtanh.pop %v1759
    %1764 = vrot.lane.b32.xlu0 %v1760, 32
    %v1765 = vpop.permute.xlu0 %1764
    %1766 = vrot.lane.b32.xlu0 %v1761, 32
    %v1767 = vpop.permute.xlu0 %1766
    %v1770 = vmul.f32 %v1727, %v1765
    %v1771 = vmul.f32 %v1729, %v1767
    %v1774 = vrot.slane %v1717, 7
    %vm1775 = vcmask 1047559
    %v1776 = vsel %vm1775, %v1774, %v1716
    %1777 = vrot.lane.b32.xlu0 %v1776, 80
    %v1778 = vpop.permute.xlu0 %1777
    %v1782 = vrot.slane %v1770, 3
    %v1783 = vrot.slane %v1771, 2
    %v1784 = vsel %vm1775, %v1783, %v1782
    %1785 = vrot.lane.b32.xlu0 %v1784, 96
    %v1786 = vpop.permute.xlu0 %1785
    %v1788 = vsel %vm127, %v1778, %v1786
    %v1790 = vrot.slane %v1788, 6
    %v1791 = vsel %vm297, %v1790, 0
    %1793 = vmatprep.subr.mxu0 0.0
    %1794 = vmatpush1.msra.mxu0 0.0
    %1795 = vmatprep.subr.mxu0 0.0
    %1796 = vmatpush1.msra.mxu0 0.0
    %1797 = vmatprep.subr.mxu0 0.0
    %1798 = vmatpush1.msra.mxu0 0.0
    %1799 = vmatprep.subr.mxu0 0.0
    %1800 = vmatpush1.msra.mxu0 0.0
    %1801 = vmatprep.subr.mxu0 0.0
    %1802 = vmatpush1.msra.mxu0 0.0
    %1803 = vmatprep.subr.mxu0 0.0
    %1804 = vmatpush1.msra.mxu0 0.0
    %1805 = vmatprep.subr.mxu0 0.0
    %1806 = vmatpush1.msra.mxu0 0.0
    %1807 = vmatprep.subr.mxu0 0.0
    %1808 = vmatpush1.msra.mxu0 0.0
    %1809 = vmatprep.subr.mxu0 0.0
    %1810 = vmatpush1.msra.mxu0 0.0
    %1811 = vmatprep.subr.mxu0 0.0
    %1812 = vmatpush1.msra.mxu0 0.0
    %1813 = vmatprep.subr.mxu0 0.0
    %1814 = vmatpush1.msra.mxu0 0.0
    %1815 = vmatprep.subr.mxu0 0.0
    %1816 = vmatpush1.msra.mxu0 0.0
    %1817 = vmatprep.subr.mxu0 0.0
    %1818 = vmatpush1.msra.mxu0 %v296
    %1819 = vmatprep.subr.mxu0 0.0
    %1820 = vmatpush1.msra.mxu0 %v295
    %1821 = vmatprep.subr.mxu0 0.0
    %1822 = vmatpush1.msra.mxu0 %v294
    %1823 = vmatprep.subr.mxu0 0.0
    %1824 = vmatpush1.msra.mxu0 %v293
    %1825 = vmatprep.subr.mxu0 0.0
    %1826 = vmatpush2.msra.mxu0 0.0
    %1827 = vmatprep.subr.mxu0 0.0
    %1828 = vmatpush2.msra.mxu0 0.0
    %1829 = vmatprep.subr.mxu0 0.0
    %1830 = vmatpush2.msra.mxu0 0.0
    %1831 = vmatprep.subr.mxu0 0.0
    %1832 = vmatpush2.msra.mxu0 0.0
    %1833 = vmatprep.subr.mxu0 0.0
    %1834 = vmatpush2.msra.mxu0 0.0
    %1835 = vmatprep.subr.mxu0 0.0
    %1836 = vmatpush2.msra.mxu0 0.0
    %1837 = vmatprep.subr.mxu0 0.0
    %1838 = vmatpush2.msra.mxu0 0.0
    %1839 = vmatprep.subr.mxu0 0.0
    %1840 = vmatpush2.msra.mxu0 0.0
    %1841 = vmatprep.subr.mxu0 0.0
    %1842 = vmatpush2.msra.mxu0 0.0
    %1843 = vmatprep.subr.mxu0 0.0
    %1844 = vmatpush2.msra.mxu0 0.0
    %1845 = vmatprep.subr.mxu0 0.0
    %1846 = vmatpush2.msra.mxu0 0.0
    %1847 = vmatprep.subr.mxu0 0.0
    %1848 = vmatpush2.msra.mxu0 0.0
    %1849 = vmatprep.subr.mxu0 0.0
    %1850 = vmatpush2.msra.mxu0 0.0
    %1851 = vmatprep.subr.mxu0 0.0
    %1852 = vmatpush2.msra.mxu0 0.0
    %1853 = vmatprep.subr.mxu0 0.0
    %1854 = vmatpush2.msra.mxu0 0.0
    %1855 = vmatprep.subr.mxu0 0.0
    %1856 = vmatpush2.msra.mxu0 0.0
    %1857 = vmatprep.mubr.f32.mxu0 0.0
    %1858 = vmatmul.mubr.f32.gmra.mxu0 %v1791
    %v1859 = vpop.f32.mrf.mxu0
    %v1860 = vadd.f32 0.0, %v1859
    %v1861 = vpop.f32.mrf.mxu0
    %1862 = vdwg.mxu0
    %v1864 = vrot.slane %v1860, 1
    %v1865 = vrot.slane %v1860, 2
    %v1868 = vadd.f32 %v201, %v1864
    %v1869 = vadd.f32 %v206, %v1865
    %1870 = vrot.lane.b32.xlu0 %v1860, 64
    %v1871 = vpop.permute.xlu0 %1870
    %1872 = vrot.lane.b32.xlu0 %v1864, 64
    %v1873 = vpop.permute.xlu0 %1872
    %v1876 = vadd.f32 %v285, %v1871
    %v1877 = vadd.f32 %v290, %v1873
    %v1878 = vxor.u32 %v1868, 2147483648
    %v1879 = vxor.u32 %v1869, 2147483648
    %v1880 = vmul.f32 %v1878, 1.442695
    %v1881 = vpow.pop %v1880
    %v1882 = vmul.f32 %v1879, 1.442695
    %v1883 = vpow.pop %v1882
    %v1884 = vadd.f32 %v1881, 1.0
    %v1885 = vadd.f32 %v1883, 1.0
    %v1886 = vrcp.pop %v1884
    %v1887 = vmul.f32 1.0, %v1886
    %v1888 = vrcp.pop %v1885
    %v1889 = vmul.f32 1.0, %v1888
    %v1890 = vtanh.pop %v1868
    %v1891 = vtanh.pop %v1869
    %v1894 = vrot.slane %v1704, 7
    %v1895 = vrot.slane %v1705, 7
    %v1898 = vmul.f32 %v1887, %v1894
    %v1899 = vmul.f32 %v1889, %v1895
    %1902 = vrot.lane.b32.xlu0 %v1890, 96
    %v1903 = vpop.permute.xlu0 %1902
    %1904 = vrot.lane.b32.xlu0 %v1891, 96
    %v1905 = vpop.permute.xlu0 %1904
    %v1908 = vmul.f32 %v1887, %v1903
    %v1909 = vmul.f32 %v1889, %v1905
    %1912 = vrot.lane.b32.xlu0 %v1908, 16
    %v1913 = vpop.permute.xlu0 %1912
    %1914 = vrot.lane.b32.xlu0 %v1909, 16
    %v1915 = vpop.permute.xlu0 %1914
    %v1918 = vadd.f32 %v1898, %v1913
    %v1919 = vadd.f32 %v1899, %v1915
    %v1920 = vtanh.pop %v1918
    %v1921 = vtanh.pop %v1919
    %1924 = vrot.lane.b32.xlu0 %v1920, 32
    %v1925 = vpop.permute.xlu0 %1924
    %1926 = vrot.lane.b32.xlu0 %v1921, 32
    %v1927 = vpop.permute.xlu0 %1926
    %v1930 = vmul.f32 %v1887, %v1925
    %v1931 = vmul.f32 %v1889, %v1927
    %v1932 = vxor.u32 %v1876, 2147483648
    %v1933 = vxor.u32 %v1877, 2147483648
    %v1934 = vmul.f32 %v1932, 1.442695
    %v1935 = vpow.pop %v1934
    %v1936 = vmul.f32 %v1933, 1.442695
    %v1937 = vpow.pop %v1936
    %v1938 = vadd.f32 %v1935, 1.0
    %v1939 = vadd.f32 %v1937, 1.0
    %v1940 = vrcp.pop %v1938
    %v1941 = vmul.f32 1.0, %v1940
    %v1942 = vrcp.pop %v1939
    %v1943 = vmul.f32 1.0, %v1942
    %v1944 = vtanh.pop %v1876
    %v1945 = vtanh.pop %v1877
    %v1948 = vrot.slane %v1758, 1
    %v1949 = vrot.slane %v1759, 1
    %v1952 = vmul.f32 %v1941, %v1948
    %v1953 = vmul.f32 %v1943, %v1949
    %1956 = vrot.lane.b32.xlu0 %v1944, 96
    %v1957 = vpop.permute.xlu0 %1956
    %1958 = vrot.lane.b32.xlu0 %v1945, 96
    %v1959 = vpop.permute.xlu0 %1958
    %v1962 = vmul.f32 %v1941, %v1957
    %v1963 = vmul.f32 %v1943, %v1959
    %1966 = vrot.lane.b32.xlu0 %v1962, 16
    %v1967 = vpop.permute.xlu0 %1966
    %1968 = vrot.lane.b32.xlu0 %v1963, 16
    %v1969 = vpop.permute.xlu0 %1968
    %v1972 = vadd.f32 %v1952, %v1967
    %v1973 = vadd.f32 %v1953, %v1969
    %v1974 = vtanh.pop %v1972
    %v1975 = vtanh.pop %v1973
    %1978 = vrot.lane.b32.xlu0 %v1974, 32
    %v1979 = vpop.permute.xlu0 %1978
    %1980 = vrot.lane.b32.xlu0 %v1975, 32
    %v1981 = vpop.permute.xlu0 %1980
    %v1984 = vmul.f32 %v1941, %v1979
    %v1985 = vmul.f32 %v1943, %v1981
    %v1987 = vrot.slane %v640, 7
    %v1988 = vrot.slane %v641, 6
    %v1989 = vsel %vm915, %v1988, %v1987
    %v1991 = vrot.slane %v856, 6
    %v1992 = vrot.slane %v857, 5
    %v1993 = vsel %vm1344, %v1992, %v1991
    %v1995 = vrot.slane %v1071, 5
    %v1996 = vrot.slane %v1072, 4
    %v1997 = vsel %vm1775, %v1996, %v1995
    %v1999 = vrot.slane %v1285, 4
    %v2000 = vrot.slane %v1286, 3
    %v2001 = vsel %vm485, %v2000, %v1999
    %v2003 = vrot.slane %v1501, 3
    %v2004 = vrot.slane %v1502, 2
    %v2005 = vsel %vm915, %v2004, %v2003
    %v2007 = vrot.slane %v1716, 2
    %v2008 = vrot.slane %v1717, 1
    %v2009 = vsel %vm1344, %v2008, %v2007
    %v2013 = vrot.slane %v1930, 1
    %v2014 = vsel %vm1775, %v1931, %v2013
    %vm2016 = vcmask 1041408
    %v2017 = vsel %vm2016, %v486, %v1989
    %vm2018 = vcmask 1043456
    %v2019 = vsel %vm2018, %v2017, %v1993
    %vm2020 = vcmask 1045504
    %v2021 = vsel %vm2020, %v2019, %v1997
    %v2022 = vsel %vm2016, %v2001, %v2005
    %v2023 = vsel %vm2018, %v2022, %v2009
    %v2024 = vsel %vm2020, %v2023, %v2014
    %v2027 = vrot.slane %v1985, 7
    %v2028 = vsel %vm485, %v2027, %v1984
    %v2030 = vrot.slane %v1770, 7
    %v2031 = vrot.slane %v1771, 6
    %v2032 = vsel %vm915, %v2031, %v2030
    %v2034 = vrot.slane %v1555, 6
    %v2035 = vrot.slane %v1556, 5
    %v2036 = vsel %vm1344, %v2035, %v2034
    %v2038 = vrot.slane %v1339, 5
    %v2039 = vrot.slane %v1340, 4
    %v2040 = vsel %vm1775, %v2039, %v2038
    %v2042 = vrot.slane %v1125, 4
    %v2043 = vrot.slane %v1126, 3
    %v2044 = vsel %vm485, %v2043, %v2042
    %v2047 = vrot.slane %v694, 2
    %v2048 = vrot.slane %v695, 1
    %v2049 = vsel %vm1344, %v2048, %v2047
    %v2051 = vrot.slane %v480, 1
    %v2052 = vsel %vm1775, %v481, %v2051
    %v2054 = vsel %vm2016, %v2028, %v2032
    %v2055 = vsel %vm2018, %v2054, %v2036
    %v2056 = vsel %vm2020, %v2055, %v2040
    %v2057 = vsel %vm2016, %v2044, %v924
    %v2058 = vsel %vm2018, %v2057, %v2049
    %v2059 = vsel %vm2020, %v2058, %v2052
    %v2060 = vld [vmem:[%s6] sm:$0xff]
    %v2061 = vld [vmem:[%s6 + $0x8] sm:$0xff]
    %v2062 = vld [vmem:[%s7] sm:$0xff]
    %v2063 = vld [vmem:[%s7 + $0x8] sm:$0xff]
    %2066 = vrot.lane.b32.xlu0 %v2056, 80
    %v2067 = vpop.permute.xlu0 %2066
    %2068 = vrot.lane.b32.xlu0 %v2059, 80
    %v2069 = vpop.permute.xlu0 %2068
    %v2070 = vsel %vm127, %v2067, 0
    %v2072 = vsel %vm127, %v2069, 0
    %2074 = vmatprep.subr.mxu0 0.0
    %2075 = vmatpush1.msra.mxu0 0.0
    %2076 = vmatprep.subr.mxu0 0.0
    %2077 = vmatpush1.msra.mxu0 0.0
    %2078 = vmatprep.subr.mxu0 0.0
    %2079 = vmatpush1.msra.mxu0 0.0
    %2080 = vmatprep.subr.mxu0 0.0
    %2081 = vmatpush1.msra.mxu0 0.0
    %2082 = vmatprep.subr.mxu0 0.0
    %2083 = vmatpush1.msra.mxu0 0.0
    %2084 = vmatprep.subr.mxu0 0.0
    %2085 = vmatpush1.msra.mxu0 0.0
    %2086 = vmatprep.subr.mxu0 0.0
    %2087 = vmatpush1.msra.mxu0 0.0
    %2088 = vmatprep.subr.mxu0 0.0
    %2089 = vmatpush1.msra.mxu0 0.0
    %2090 = vmatprep.subr.mxu0 0.0
    %2091 = vmatpush1.msra.mxu0 0.0
    %2092 = vmatprep.subr.mxu0 0.0
    %2093 = vmatpush1.msra.mxu0 0.0
    %2094 = vmatprep.subr.mxu0 0.0
    %2095 = vmatpush1.msra.mxu0 0.0
    %2096 = vmatprep.subr.mxu0 0.0
    %2097 = vmatpush1.msra.mxu0 0.0
    %2098 = vmatprep.subr.mxu0 0.0
    %2099 = vmatpush1.msra.mxu0 0.0
    %2100 = vmatprep.subr.mxu0 0.0
    %2101 = vmatpush1.msra.mxu0 0.0
    %2102 = vmatprep.subr.mxu0 0.0
    %2103 = vmatpush1.msra.mxu0 %v2063
    %2104 = vmatprep.subr.mxu0 0.0
    %2105 = vmatpush1.msra.mxu0 %v2062
    %2106 = vmatprep.subr.mxu0 0.0
    %2107 = vmatpush2.msra.mxu0 0.0
    %2108 = vmatprep.subr.mxu0 0.0
    %2109 = vmatpush2.msra.mxu0 0.0
    %2110 = vmatprep.subr.mxu0 0.0
    %2111 = vmatpush2.msra.mxu0 0.0
    %2112 = vmatprep.subr.mxu0 0.0
    %2113 = vmatpush2.msra.mxu0 0.0
    %2114 = vmatprep.subr.mxu0 0.0
    %2115 = vmatpush2.msra.mxu0 0.0
    %2116 = vmatprep.subr.mxu0 0.0
    %2117 = vmatpush2.msra.mxu0 0.0
    %2118 = vmatprep.subr.mxu0 0.0
    %2119 = vmatpush2.msra.mxu0 0.0
    %2120 = vmatprep.subr.mxu0 0.0
    %2121 = vmatpush2.msra.mxu0 0.0
    %2122 = vmatprep.subr.mxu0 0.0
    %2123 = vmatpush2.msra.mxu0 0.0
    %2124 = vmatprep.subr.mxu0 0.0
    %2125 = vmatpush2.msra.mxu0 0.0
    %2126 = vmatprep.subr.mxu0 0.0
    %2127 = vmatpush2.msra.mxu0 0.0
    %2128 = vmatprep.subr.mxu0 0.0
    %2129 = vmatpush2.msra.mxu0 0.0
    %2130 = vmatprep.subr.mxu0 0.0
    %2131 = vmatpush2.msra.mxu0 0.0
    %2132 = vmatprep.subr.mxu0 0.0
    %2133 = vmatpush2.msra.mxu0 0.0
    %2134 = vmatprep.subr.mxu0 0.0
    %2135 = vmatpush2.msra.mxu0 0.0
    %2136 = vmatprep.subr.mxu0 0.0
    %2137 = vmatpush2.msra.mxu0 0.0
    %2138 = vmatprep.mubr.f32.mxu0 0.0
    %2139 = vmatmul.mubr.f32.gmra.mxu0 %v2070
    %v2140 = vpop.f32.mrf.mxu0
    %v2141 = vadd.f32 0.0, %v2140
    %v2142 = vpop.f32.mrf.mxu0
    %2143 = vmatprep.mubr.f32.mxu0 0.0
    %2144 = vmatmul.mubr.f32.gmra.mxu0 %v2072
    %v2145 = vpop.f32.mrf.mxu0
    %v2146 = vadd.f32 0.0, %v2145
    %v2147 = vpop.f32.mrf.mxu0
    %2148 = vdwg.mxu0
    %2151 = vrot.lane.b32.xlu0 %v2021, 80
    %v2152 = vpop.permute.xlu0 %2151
    %2153 = vrot.lane.b32.xlu0 %v2024, 80
    %v2154 = vpop.permute.xlu0 %2153
    %v2155 = vsel %vm127, %v2152, 0
    %v2157 = vsel %vm127, %v2154, 0
    %2159 = vmatprep.subr.mxu0 0.0
    %2160 = vmatpush1.msra.mxu0 0.0
    %2161 = vmatprep.subr.mxu0 0.0
    %2162 = vmatpush1.msra.mxu0 0.0
    %2163 = vmatprep.subr.mxu0 0.0
    %2164 = vmatpush1.msra.mxu0 0.0
    %2165 = vmatprep.subr.mxu0 0.0
    %2166 = vmatpush1.msra.mxu0 0.0
    %2167 = vmatprep.subr.mxu0 0.0
    %2168 = vmatpush1.msra.mxu0 0.0
    %2169 = vmatprep.subr.mxu0 0.0
    %2170 = vmatpush1.msra.mxu0 0.0
    %2171 = vmatprep.subr.mxu0 0.0
    %2172 = vmatpush1.msra.mxu0 0.0
    %2173 = vmatprep.subr.mxu0 0.0
    %2174 = vmatpush1.msra.mxu0 0.0
    %2175 = vmatprep.subr.mxu0 0.0
    %2176 = vmatpush1.msra.mxu0 0.0
    %2177 = vmatprep.subr.mxu0 0.0
    %2178 = vmatpush1.msra.mxu0 0.0
    %2179 = vmatprep.subr.mxu0 0.0
    %2180 = vmatpush1.msra.mxu0 0.0
    %2181 = vmatprep.subr.mxu0 0.0
    %2182 = vmatpush1.msra.mxu0 0.0
    %2183 = vmatprep.subr.mxu0 0.0
    %2184 = vmatpush1.msra.mxu0 0.0
    %2185 = vmatprep.subr.mxu0 0.0
    %2186 = vmatpush1.msra.mxu0 0.0
    %2187 = vmatprep.subr.mxu0 0.0
    %2188 = vmatpush1.msra.mxu0 %v2061
    %2189 = vmatprep.subr.mxu0 0.0
    %2190 = vmatpush1.msra.mxu0 %v2060
    %2191 = vmatprep.subr.mxu0 0.0
    %2192 = vmatpush2.msra.mxu0 0.0
    %2193 = vmatprep.subr.mxu0 0.0
    %2194 = vmatpush2.msra.mxu0 0.0
    %2195 = vmatprep.subr.mxu0 0.0
    %2196 = vmatpush2.msra.mxu0 0.0
    %2197 = vmatprep.subr.mxu0 0.0
    %2198 = vmatpush2.msra.mxu0 0.0
    %2199 = vmatprep.subr.mxu0 0.0
    %2200 = vmatpush2.msra.mxu0 0.0
    %2201 = vmatprep.subr.mxu0 0.0
    %2202 = vmatpush2.msra.mxu0 0.0
    %2203 = vmatprep.subr.mxu0 0.0
    %2204 = vmatpush2.msra.mxu0 0.0
    %2205 = vmatprep.subr.mxu0 0.0
    %2206 = vmatpush2.msra.mxu0 0.0
    %2207 = vmatprep.subr.mxu0 0.0
    %2208 = vmatpush2.msra.mxu0 0.0
    %2209 = vmatprep.subr.mxu0 0.0
    %2210 = vmatpush2.msra.mxu0 0.0
    %2211 = vmatprep.subr.mxu0 0.0
    %2212 = vmatpush2.msra.mxu0 0.0
    %2213 = vmatprep.subr.mxu0 0.0
    %2214 = vmatpush2.msra.mxu0 0.0
    %2215 = vmatprep.subr.mxu0 0.0
    %2216 = vmatpush2.msra.mxu0 0.0
    %2217 = vmatprep.subr.mxu0 0.0
    %2218 = vmatpush2.msra.mxu0 0.0
    %2219 = vmatprep.subr.mxu0 0.0
    %2220 = vmatpush2.msra.mxu0 0.0
    %2221 = vmatprep.subr.mxu0 0.0
    %2222 = vmatpush2.msra.mxu0 0.0
    %2223 = vmatprep.mubr.f32.mxu0 0.0
    %2224 = vmatmul.mubr.f32.gmra.mxu0 %v2155
    %v2225 = vpop.f32.mrf.mxu0
    %v2226 = vadd.f32 %v2141, %v2225
    %v2227 = vpop.f32.mrf.mxu0
    %2228 = vmatprep.mubr.f32.mxu0 0.0
    %2229 = vmatmul.mubr.f32.gmra.mxu0 %v2157
    %v2230 = vpop.f32.mrf.mxu0
    %v2231 = vadd.f32 %v2146, %v2230
    %v2232 = vpop.f32.mrf.mxu0
    %2233 = vdwg.mxu0
    %v2234 = vld [vmem:[#allocation10] sm:$0x1]
    %v2236 = vlaneseq
    %v2237 = vshrl.u32 %v2236, 7
    %v2238 = vsub.s32 0, %v2237
    %v2239 = vrot.slane %v2234, %v2238
    %v2241 = vadd.f32 %v2226, %v2239
    %v2242 = vadd.f32 %v2231, %v2239
    %v2245 = vcombine.high %v2241, %v2241
    %v2247 = vunpack.c.l.s4 1983009808
    %v2248 = vunpack.c.0.s8 %v2247
    %v2249 = vlaneseq
    %v2250 = vshrl.u32 %v2249, 7
    %v2251 = vsub.s32 %v2248, %v2250
    %v2252 = vrot.slane %v2241, %v2251
    %v2254 = vunpack.c.l.s4 1983009808
    %v2255 = vunpack.c.0.s8 %v2254
    %v2256 = vlaneseq
    %v2257 = vshrl.u32 %v2256, 7
    %v2258 = vsub.s32 %v2255, %v2257
    %v2259 = vrot.slane %v2245, %v2258
    %v2260 = vcombine.high %v2252, %v2252
    %v2261 = vcombine.high %v2259, %v2259
    %v2262 = vcombine.high %v2242, %v2242
    %v2264 = vunpack.c.l.s4 1983009808
    %v2265 = vunpack.c.0.s8 %v2264
    %v2266 = vlaneseq
    %v2267 = vshrl.u32 %v2266, 7
    %v2268 = vsub.s32 %v2265, %v2267
    %v2269 = vrot.slane %v2242, %v2268
    %v2271 = vunpack.c.l.s4 1983009808
    %v2272 = vunpack.c.0.s8 %v2271
    %v2273 = vlaneseq
    %v2274 = vshrl.u32 %v2273, 7
    %v2275 = vsub.s32 %v2272, %v2274
    %v2276 = vrot.slane %v2262, %v2275
    %v2277 = vcombine.high %v2269, %v2269
    %v2278 = vcombine.high %v2276, %v2276
    %v2287 = vld [vmem:[%s11] sm:$0x1f]
    %v2288 = vlaneseq
    %v2289 = vand.u32 %v2288, 127
    %v2290 = vld [vmem:[#allocation11] sm:$0x1]
    %v2292 = vlaneseq
    %v2293 = vshrl.u32 %v2292, 7
    %v2294 = vsub.s32 0, %v2293
    %v2295 = vrot.slane %v2290, %v2294
    %v2297 = vadd.f32 %v2295, %v2252
    %v2300 = vunpack.c.l.s4 1966171168
    %v2301 = vunpack.c.0.s8 %v2300
    %v2302 = vlaneseq
    %v2303 = vshrl.u32 %v2302, 7
    %v2304 = vsub.s32 %v2301, %v2303
    %v2305 = vrot.slane %v2297, %v2304
    %v2306 = vcombine.high %v2305, %v2305
    %v2308 = vunpack.c.l.s4 1966171168
    %v2309 = vunpack.c.0.s8 %v2308
    %v2310 = vlaneseq
    %v2311 = vshrl.u32 %v2310, 7
    %v2312 = vsub.s32 %v2309, %v2311
    %v2313 = vrot.slane %v2305, %v2312
    %v2315 = vunpack.c.l.s4 1966171168
    %v2316 = vunpack.c.0.s8 %v2315
    %v2317 = vlaneseq
    %v2318 = vshrl.u32 %v2317, 7
    %v2319 = vsub.s32 %v2316, %v2318
    %v2320 = vrot.slane %v2306, %v2319
    %v2321 = vlaneseq
    %v2322 = vshrl.u32 %v2321, 7
    %v2323 = vsub.s32 0, %v2322
    %v2324 = vrot.slane %v2313, %v2323
    %v2325 = vlaneseq
    %v2326 = vshrl.u32 %v2325, 7
    %v2327 = vsub.s32 0, %v2326
    %v2328 = vrot.slane %v2320, %v2327
    %v2331 = vadd.f32 %v2324, %v2287
    %v2332 = vadd.f32 %v2328, %v2287
    %v2333 = vlaneseq
    %v2334 = vshrl.u32 %v2333, 7
    %v2335 = vsub.s32 0, %v2334
    %v2336 = vrot.slane %v2260, %v2335
    %2338 = vbcast.lane.b32.xlu0 %v2336, 256
    %v2339 = vpop.permute.xlu0 %2338
    %v2340 = vlaneseq
    %v2341 = vshrl.u32 %v2340, 7
    %v2342 = vsub.s32 1, %v2341
    %v2343 = vrot.slane %v2260, %v2342
    %2345 = vbcast.lane.b32.xlu0 %v2343, 256
    %v2346 = vpop.permute.xlu0 %2345
    %v2347 = vadd.f32 %v2331, %v2339
    %v2348 = vadd.f32 %v2332, %v2346
    %vm2349 = vcmask 36864
    %v2350 = vsel %vm2349, %v2347, -inf
    %2351 = vmax.xlane.f32.xlu0 %v2350
    %v2352 = vpop.xlane.xlu0 %2351
    %v2353 = vsel %vm2349, %v2348, -inf
    %2354 = vmax.xlane.f32.xlu0 %v2353
    %v2355 = vpop.xlane.xlu0 %2354
    %vm2356 = vcmp.eq.f32.partialorder %v2347, %v2352
    %vm2357 = vcmp.eq.f32.partialorder %v2348, %v2355
    %v2358 = vsel %vm2356, %v2289, 5
    %v2359 = vsel %vm2357, %v2289, 5
    %v2360 = vsel %vm2349, %v2358, 2147483647
    %v2361 = vand.u32 %v2360, 65535
    %v2362 = vshra.s32 %v2360, 16
    %v2363 = vcvt.s32.f32 %v2361
    %v2364 = vcvt.s32.f32 %v2362
    %2365 = vmin.xlane.f32.xlu0 %v2364
    %v2366 = vpop.xlane.xlu0 %2365
    %vm2367 = vcmp.eq.f32.partialorder %v2364, %v2366
    %v2368 = vsel %vm2367, %v2363, inf
    %2369 = vmin.xlane.f32.xlu0 %v2368
    %v2370 = vpop.xlane.xlu0 %2369
    %v2371 = vcvt.f32.s32 %v2370
    %v2372 = vcvt.f32.s32 %v2366
    %v2373 = vshll.u32 %v2372, 16
    %v2374 = vadd.s32 %v2373, %v2371
    %v2375 = vsel %vm2349, %v2359, 2147483647
    %v2376 = vand.u32 %v2375, 65535
    %v2377 = vshra.s32 %v2375, 16
    %v2378 = vcvt.s32.f32 %v2376
    %v2379 = vcvt.s32.f32 %v2377
    %2380 = vmin.xlane.f32.xlu0 %v2379
    %v2381 = vpop.xlane.xlu0 %2380
    %vm2382 = vcmp.eq.f32.partialorder %v2379, %v2381
    %v2383 = vsel %vm2382, %v2378, inf
    %2384 = vmin.xlane.f32.xlu0 %v2383
    %v2385 = vpop.xlane.xlu0 %2384
    %v2386 = vcvt.f32.s32 %v2385
    %v2387 = vcvt.f32.s32 %v2381
    %v2388 = vshll.u32 %v2387, 16
    %v2389 = vadd.s32 %v2388, %v2386
    %v2391 = vlaneseq
    %v2392 = vshrl.u32 %v2391, 7
    %v2393 = vsub.s32 0, %v2392
    %v2394 = vrot.slane %v2287, %v2393
    %2396 = vbcast.lane.b32.xlu0 %v2394, 256
    %v2397 = vpop.permute.xlu0 %2396
    %v2398 = vlaneseq
    %v2399 = vshrl.u32 %v2398, 7
    %v2400 = vsub.s32 1, %v2399
    %v2401 = vrot.slane %v2287, %v2400
    %2403 = vbcast.lane.b32.xlu0 %v2401, 256
    %v2404 = vpop.permute.xlu0 %2403
    %v2405 = vlaneseq
    %v2406 = vshrl.u32 %v2405, 7
    %v2407 = vsub.s32 2, %v2406
    %v2408 = vrot.slane %v2287, %v2407
    %2410 = vbcast.lane.b32.xlu0 %v2408, 256
    %v2411 = vpop.permute.xlu0 %2410
    %v2412 = vlaneseq
    %v2413 = vshrl.u32 %v2412, 7
    %v2414 = vsub.s32 3, %v2413
    %v2415 = vrot.slane %v2287, %v2414
    %2417 = vbcast.lane.b32.xlu0 %v2415, 256
    %v2418 = vpop.permute.xlu0 %2417
    %v2419 = vlaneseq
    %v2420 = vshrl.u32 %v2419, 7
    %v2421 = vsub.s32 4, %v2420
    %v2422 = vrot.slane %v2287, %v2421
    %2424 = vbcast.lane.b32.xlu0 %v2422, 256
    %v2425 = vpop.permute.xlu0 %2424
    %v2431 = vadd.f32 %v2352, %v2397
    %v2432 = vadd.f32 %v2352, %v2404
    %v2433 = vadd.f32 %v2352, %v2411
    %v2434 = vadd.f32 %v2352, %v2418
    %v2435 = vadd.f32 %v2352, %v2425
    %v2436 = vadd.f32 %v2355, %v2397
    %v2437 = vadd.f32 %v2355, %v2404
    %v2438 = vadd.f32 %v2355, %v2411
    %v2439 = vadd.f32 %v2355, %v2418
    %v2440 = vadd.f32 %v2355, %v2425
    %v2441 = vlaneseq
    %v2442 = vshrl.u32 %v2441, 7
    %v2443 = vsub.s32 0, %v2442
    %v2444 = vrot.slane %v2259, %v2443
    %2446 = vbcast.lane.b32.xlu0 %v2444, 256
    %v2447 = vpop.permute.xlu0 %2446
    %v2448 = vlaneseq
    %v2449 = vshrl.u32 %v2448, 7
    %v2450 = vsub.s32 1, %v2449
    %v2451 = vrot.slane %v2259, %v2450
    %2453 = vbcast.lane.b32.xlu0 %v2451, 256
    %v2454 = vpop.permute.xlu0 %2453
    %v2457 = vlaneseq
    %v2458 = vshrl.u32 %v2457, 7
    %v2459 = vsub.s32 0, %v2458
    %v2460 = vrot.slane %v2447, %v2459
    %v2461 = vlaneseq
    %v2462 = vshrl.u32 %v2461, 7
    %v2463 = vsub.s32 1, %v2462
    %v2464 = vrot.slane %v2447, %v2463
    %v2465 = vlaneseq
    %v2466 = vshrl.u32 %v2465, 7
    %v2467 = vsub.s32 2, %v2466
    %v2468 = vrot.slane %v2447, %v2467
    %v2469 = vlaneseq
    %v2470 = vshrl.u32 %v2469, 7
    %v2471 = vsub.s32 3, %v2470
    %v2472 = vrot.slane %v2447, %v2471
    %v2473 = vlaneseq
    %v2474 = vshrl.u32 %v2473, 7
    %v2475 = vsub.s32 4, %v2474
    %v2476 = vrot.slane %v2447, %v2475
    %v2477 = vlaneseq
    %v2478 = vshrl.u32 %v2477, 7
    %v2479 = vsub.s32 0, %v2478
    %v2480 = vrot.slane %v2454, %v2479
    %v2481 = vlaneseq
    %v2482 = vshrl.u32 %v2481, 7
    %v2483 = vsub.s32 1, %v2482
    %v2484 = vrot.slane %v2454, %v2483
    %v2485 = vlaneseq
    %v2486 = vshrl.u32 %v2485, 7
    %v2487 = vsub.s32 2, %v2486
    %v2488 = vrot.slane %v2454, %v2487
    %v2489 = vlaneseq
    %v2490 = vshrl.u32 %v2489, 7
    %v2491 = vsub.s32 3, %v2490
    %v2492 = vrot.slane %v2454, %v2491
    %v2493 = vlaneseq
    %v2494 = vshrl.u32 %v2493, 7
    %v2495 = vsub.s32 4, %v2494
    %v2496 = vrot.slane %v2454, %v2495
    %v2507 = vadd.f32 %v2431, %v2460
    %v2508 = vadd.f32 %v2432, %v2464
    %v2509 = vadd.f32 %v2433, %v2468
    %v2510 = vadd.f32 %v2434, %v2472
    %v2511 = vadd.f32 %v2435, %v2476
    %v2512 = vadd.f32 %v2436, %v2480
    %v2513 = vadd.f32 %v2437, %v2484
    %v2514 = vadd.f32 %v2438, %v2488
    %v2515 = vadd.f32 %v2439, %v2492
    %v2516 = vadd.f32 %v2440, %v2496
    %2527 = vset.pattern.permute.xlu0 0
    %2528 = vperm.xlu0 %2527, %v2507
    %v2529 = vpop.permute.xlu0 %2528
    %2530 = vset.pattern.permute.xlu0 0
    %2531 = vperm.xlu0 %2530, %v2508
    %v2532 = vpop.permute.xlu0 %2531
    %2533 = vset.pattern.permute.xlu0 0
    %2534 = vperm.xlu0 %2533, %v2509
    %v2535 = vpop.permute.xlu0 %2534
    %2536 = vset.pattern.permute.xlu0 0
    %2537 = vperm.xlu0 %2536, %v2510
    %v2538 = vpop.permute.xlu0 %2537
    %2539 = vset.pattern.permute.xlu0 0
    %2540 = vperm.xlu0 %2539, %v2511
    %v2541 = vpop.permute.xlu0 %2540
    %2542 = vset.pattern.permute.xlu0 0
    %2543 = vperm.xlu0 %2542, %v2512
    %v2544 = vpop.permute.xlu0 %2543
    %2545 = vset.pattern.permute.xlu0 0
    %2546 = vperm.xlu0 %2545, %v2513
    %v2547 = vpop.permute.xlu0 %2546
    %2548 = vset.pattern.permute.xlu0 0
    %2549 = vperm.xlu0 %2548, %v2514
    %v2550 = vpop.permute.xlu0 %2549
    %2551 = vset.pattern.permute.xlu0 0
    %2552 = vperm.xlu0 %2551, %v2515
    %v2553 = vpop.permute.xlu0 %2552
    %2554 = vset.pattern.permute.xlu0 0
    %2555 = vperm.xlu0 %2554, %v2516
    %v2556 = vpop.permute.xlu0 %2555
    %v2557 = vlaneseq
    %v2558 = vshrl.u32 %v2557, 7
    %v2559 = vsub.s32 %v2289, %v2558
    %v2560 = vrot.slane %v2529, %v2559
    %v2561 = vlaneseq
    %v2562 = vshrl.u32 %v2561, 7
    %v2563 = vsub.s32 %v2289, %v2562
    %v2564 = vrot.slane %v2532, %v2563
    %v2565 = vlaneseq
    %v2566 = vshrl.u32 %v2565, 7
    %v2567 = vsub.s32 %v2289, %v2566
    %v2568 = vrot.slane %v2535, %v2567
    %v2569 = vlaneseq
    %v2570 = vshrl.u32 %v2569, 7
    %v2571 = vsub.s32 %v2289, %v2570
    %v2572 = vrot.slane %v2538, %v2571
    %v2573 = vlaneseq
    %v2574 = vshrl.u32 %v2573, 7
    %v2575 = vsub.s32 %v2289, %v2574
    %v2576 = vrot.slane %v2541, %v2575
    %v2577 = vlaneseq
    %v2578 = vshrl.u32 %v2577, 7
    %v2579 = vsub.s32 %v2289, %v2578
    %v2580 = vrot.slane %v2544, %v2579
    %v2581 = vlaneseq
    %v2582 = vshrl.u32 %v2581, 7
    %v2583 = vsub.s32 %v2289, %v2582
    %v2584 = vrot.slane %v2547, %v2583
    %v2585 = vlaneseq
    %v2586 = vshrl.u32 %v2585, 7
    %v2587 = vsub.s32 %v2289, %v2586
    %v2588 = vrot.slane %v2550, %v2587
    %v2589 = vlaneseq
    %v2590 = vshrl.u32 %v2589, 7
    %v2591 = vsub.s32 %v2289, %v2590
    %v2592 = vrot.slane %v2553, %v2591
    %v2593 = vlaneseq
    %v2594 = vshrl.u32 %v2593, 7
    %v2595 = vsub.s32 %v2289, %v2594
    %v2596 = vrot.slane %v2556, %v2595
    %v2597 = vsel %vm485, %v2564, %v2560
    %v2598 = vsel %vm699, %v2568, %v2597
    %v2599 = vsel %vm915, %v2572, %v2598
    %v2600 = vsel %vm1130, %v2576, %v2599
    %v2601 = vsel %vm485, %v2584, %v2580
    %v2602 = vsel %vm699, %v2588, %v2601
    %v2603 = vsel %vm915, %v2592, %v2602
    %v2604 = vsel %vm1130, %v2596, %v2603
    %v2607 = vsel %vm2349, %v2600, -inf
    %2608 = vmax.xlane.f32.xlu0 %v2607
    %v2609 = vpop.xlane.xlu0 %2608
    %v2610 = vsel %vm2349, %v2604, -inf
    %2611 = vmax.xlane.f32.xlu0 %v2610
    %v2612 = vpop.xlane.xlu0 %2611
    %v2615 = vlaneseq
    %v2616 = vshrl.u32 %v2615, 7
    %v2617 = vsub.s32 0, %v2616
    %v2618 = vrot.slane %v2609, %v2617
    %v2619 = vlaneseq
    %v2620 = vshrl.u32 %v2619, 7
    %v2621 = vsub.s32 1, %v2620
    %v2622 = vrot.slane %v2609, %v2621
    %v2623 = vlaneseq
    %v2624 = vshrl.u32 %v2623, 7
    %v2625 = vsub.s32 2, %v2624
    %v2626 = vrot.slane %v2609, %v2625
    %v2627 = vlaneseq
    %v2628 = vshrl.u32 %v2627, 7
    %v2629 = vsub.s32 3, %v2628
    %v2630 = vrot.slane %v2609, %v2629
    %v2631 = vlaneseq
    %v2632 = vshrl.u32 %v2631, 7
    %v2633 = vsub.s32 4, %v2632
    %v2634 = vrot.slane %v2609, %v2633
    %v2635 = vlaneseq
    %v2636 = vshrl.u32 %v2635, 7
    %v2637 = vsub.s32 0, %v2636
    %v2638 = vrot.slane %v2612, %v2637
    %v2639 = vlaneseq
    %v2640 = vshrl.u32 %v2639, 7
    %v2641 = vsub.s32 1, %v2640
    %v2642 = vrot.slane %v2612, %v2641
    %v2643 = vlaneseq
    %v2644 = vshrl.u32 %v2643, 7
    %v2645 = vsub.s32 2, %v2644
    %v2646 = vrot.slane %v2612, %v2645
    %v2647 = vlaneseq
    %v2648 = vshrl.u32 %v2647, 7
    %v2649 = vsub.s32 3, %v2648
    %v2650 = vrot.slane %v2612, %v2649
    %v2651 = vlaneseq
    %v2652 = vshrl.u32 %v2651, 7
    %v2653 = vsub.s32 4, %v2652
    %v2654 = vrot.slane %v2612, %v2653
    %vm2665 = vcmp.eq.f32.partialorder %v2507, %v2618
    %vm2666 = vcmp.eq.f32.partialorder %v2508, %v2622
    %vm2667 = vcmp.eq.f32.partialorder %v2509, %v2626
    %vm2668 = vcmp.eq.f32.partialorder %v2510, %v2630
    %vm2669 = vcmp.eq.f32.partialorder %v2511, %v2634
    %vm2670 = vcmp.eq.f32.partialorder %v2512, %v2638
    %vm2671 = vcmp.eq.f32.partialorder %v2513, %v2642
    %vm2672 = vcmp.eq.f32.partialorder %v2514, %v2646
    %vm2673 = vcmp.eq.f32.partialorder %v2515, %v2650
    %vm2674 = vcmp.eq.f32.partialorder %v2516, %v2654
    %2676 = vbcast.lane.b32.xlu0 %v2289, 256
    %v2677 = vpop.permute.xlu0 %2676
    %v2678 = vsel %vm2665, %v2677, 5
    %v2679 = vsel %vm2666, %v2677, 5
    %v2680 = vsel %vm2667, %v2677, 5
    %v2681 = vsel %vm2668, %v2677, 5
    %v2682 = vsel %vm2669, %v2677, 5
    %v2683 = vsel %vm2670, %v2677, 5
    %v2684 = vsel %vm2671, %v2677, 5
    %v2685 = vsel %vm2672, %v2677, 5
    %v2686 = vsel %vm2673, %v2677, 5
    %v2687 = vsel %vm2674, %v2677, 5
    %2688 = vset.pattern.permute.xlu0 0
    %2689 = vperm.xlu0 %2688, %v2678
    %v2690 = vpop.permute.xlu0 %2689
    %2691 = vset.pattern.permute.xlu0 0
    %2692 = vperm.xlu0 %2691, %v2679
    %v2693 = vpop.permute.xlu0 %2692
    %2694 = vset.pattern.permute.xlu0 0
    %2695 = vperm.xlu0 %2694, %v2680
    %v2696 = vpop.permute.xlu0 %2695
    %2697 = vset.pattern.permute.xlu0 0
    %2698 = vperm.xlu0 %2697, %v2681
    %v2699 = vpop.permute.xlu0 %2698
    %2700 = vset.pattern.permute.xlu0 0
    %2701 = vperm.xlu0 %2700, %v2682
    %v2702 = vpop.permute.xlu0 %2701
    %2703 = vset.pattern.permute.xlu0 0
    %2704 = vperm.xlu0 %2703, %v2683
    %v2705 = vpop.permute.xlu0 %2704
    %2706 = vset.pattern.permute.xlu0 0
    %2707 = vperm.xlu0 %2706, %v2684
    %v2708 = vpop.permute.xlu0 %2707
    %2709 = vset.pattern.permute.xlu0 0
    %2710 = vperm.xlu0 %2709, %v2685
    %v2711 = vpop.permute.xlu0 %2710
    %2712 = vset.pattern.permute.xlu0 0
    %2713 = vperm.xlu0 %2712, %v2686
    %v2714 = vpop.permute.xlu0 %2713
    %2715 = vset.pattern.permute.xlu0 0
    %2716 = vperm.xlu0 %2715, %v2687
    %v2717 = vpop.permute.xlu0 %2716
    %v2718 = vlaneseq
    %v2719 = vshrl.u32 %v2718, 7
    %v2720 = vsub.s32 %v2289, %v2719
    %v2721 = vrot.slane %v2690, %v2720
    %v2722 = vlaneseq
    %v2723 = vshrl.u32 %v2722, 7
    %v2724 = vsub.s32 %v2289, %v2723
    %v2725 = vrot.slane %v2693, %v2724
    %v2726 = vlaneseq
    %v2727 = vshrl.u32 %v2726, 7
    %v2728 = vsub.s32 %v2289, %v2727
    %v2729 = vrot.slane %v2696, %v2728
    %v2730 = vlaneseq
    %v2731 = vshrl.u32 %v2730, 7
    %v2732 = vsub.s32 %v2289, %v2731
    %v2733 = vrot.slane %v2699, %v2732
    %v2734 = vlaneseq
    %v2735 = vshrl.u32 %v2734, 7
    %v2736 = vsub.s32 %v2289, %v2735
    %v2737 = vrot.slane %v2702, %v2736
    %v2738 = vlaneseq
    %v2739 = vshrl.u32 %v2738, 7
    %v2740 = vsub.s32 %v2289, %v2739
    %v2741 = vrot.slane %v2705, %v2740
    %v2742 = vlaneseq
    %v2743 = vshrl.u32 %v2742, 7
    %v2744 = vsub.s32 %v2289, %v2743
    %v2745 = vrot.slane %v2708, %v2744
    %v2746 = vlaneseq
    %v2747 = vshrl.u32 %v2746, 7
    %v2748 = vsub.s32 %v2289, %v2747
    %v2749 = vrot.slane %v2711, %v2748
    %v2750 = vlaneseq
    %v2751 = vshrl.u32 %v2750, 7
    %v2752 = vsub.s32 %v2289, %v2751
    %v2753 = vrot.slane %v2714, %v2752
    %v2754 = vlaneseq
    %v2755 = vshrl.u32 %v2754, 7
    %v2756 = vsub.s32 %v2289, %v2755
    %v2757 = vrot.slane %v2717, %v2756
    %v2758 = vsel %vm485, %v2725, %v2721
    %v2759 = vsel %vm699, %v2729, %v2758
    %v2760 = vsel %vm915, %v2733, %v2759
    %v2761 = vsel %vm1130, %v2737, %v2760
    %v2762 = vsel %vm485, %v2745, %v2741
    %v2763 = vsel %vm699, %v2749, %v2762
    %v2764 = vsel %vm915, %v2753, %v2763
    %v2765 = vsel %vm1130, %v2757, %v2764
    %v2766 = vsel %vm2349, %v2761, 2147483647
    %v2767 = vand.u32 %v2766, 65535
    %v2768 = vshra.s32 %v2766, 16
    %v2769 = vcvt.s32.f32 %v2767
    %v2770 = vcvt.s32.f32 %v2768
    %2771 = vmin.xlane.f32.xlu0 %v2770
    %v2772 = vpop.xlane.xlu0 %2771
    %vm2773 = vcmp.eq.f32.partialorder %v2770, %v2772
    %v2774 = vsel %vm2773, %v2769, inf
    %2775 = vmin.xlane.f32.xlu0 %v2774
    %v2776 = vpop.xlane.xlu0 %2775
    %v2777 = vcvt.f32.s32 %v2776
    %v2778 = vcvt.f32.s32 %v2772
    %v2779 = vshll.u32 %v2778, 16
    %v2780 = vadd.s32 %v2779, %v2777
    %v2781 = vsel %vm2349, %v2765, 2147483647
    %v2782 = vand.u32 %v2781, 65535
    %v2783 = vshra.s32 %v2781, 16
    %v2784 = vcvt.s32.f32 %v2782
    %v2785 = vcvt.s32.f32 %v2783
    %2786 = vmin.xlane.f32.xlu0 %v2785
    %v2787 = vpop.xlane.xlu0 %2786
    %vm2788 = vcmp.eq.f32.partialorder %v2785, %v2787
    %v2789 = vsel %vm2788, %v2784, inf
    %2790 = vmin.xlane.f32.xlu0 %v2789
    %v2791 = vpop.xlane.xlu0 %2790
    %v2792 = vcvt.f32.s32 %v2791
    %v2793 = vcvt.f32.s32 %v2787
    %v2794 = vshll.u32 %v2793, 16
    %v2795 = vadd.s32 %v2794, %v2792
    %v2796 = vadd.f32 %v2609, %v2397
    %v2797 = vadd.f32 %v2609, %v2404
    %v2798 = vadd.f32 %v2609, %v2411
    %v2799 = vadd.f32 %v2609, %v2418
    %v2800 = vadd.f32 %v2609, %v2425
    %v2801 = vadd.f32 %v2612, %v2397
    %v2802 = vadd.f32 %v2612, %v2404
    %v2803 = vadd.f32 %v2612, %v2411
    %v2804 = vadd.f32 %v2612, %v2418
    %v2805 = vadd.f32 %v2612, %v2425
    %v2806 = vlaneseq
    %v2807 = vshrl.u32 %v2806, 7
    %v2808 = vsub.s32 0, %v2807
    %v2809 = vrot.slane %v2261, %v2808
    %2811 = vbcast.lane.b32.xlu0 %v2809, 256
    %v2812 = vpop.permute.xlu0 %2811
    %v2813 = vlaneseq
    %v2814 = vshrl.u32 %v2813, 7
    %v2815 = vsub.s32 1, %v2814
    %v2816 = vrot.slane %v2261, %v2815
    %2818 = vbcast.lane.b32.xlu0 %v2816, 256
    %v2819 = vpop.permute.xlu0 %2818
    %v2822 = vlaneseq
    %v2823 = vshrl.u32 %v2822, 7
    %v2824 = vsub.s32 0, %v2823
    %v2825 = vrot.slane %v2812, %v2824
    %v2826 = vlaneseq
    %v2827 = vshrl.u32 %v2826, 7
    %v2828 = vsub.s32 1, %v2827
    %v2829 = vrot.slane %v2812, %v2828
    %v2830 = vlaneseq
    %v2831 = vshrl.u32 %v2830, 7
    %v2832 = vsub.s32 2, %v2831
    %v2833 = vrot.slane %v2812, %v2832
    %v2834 = vlaneseq
    %v2835 = vshrl.u32 %v2834, 7
    %v2836 = vsub.s32 3, %v2835
    %v2837 = vrot.slane %v2812, %v2836
    %v2838 = vlaneseq
    %v2839 = vshrl.u32 %v2838, 7
    %v2840 = vsub.s32 4, %v2839
    %v2841 = vrot.slane %v2812, %v2840
    %v2842 = vlaneseq
    %v2843 = vshrl.u32 %v2842, 7
    %v2844 = vsub.s32 0, %v2843
    %v2845 = vrot.slane %v2819, %v2844
    %v2846 = vlaneseq
    %v2847 = vshrl.u32 %v2846, 7
    %v2848 = vsub.s32 1, %v2847
    %v2849 = vrot.slane %v2819, %v2848
    %v2850 = vlaneseq
    %v2851 = vshrl.u32 %v2850, 7
    %v2852 = vsub.s32 2, %v2851
    %v2853 = vrot.slane %v2819, %v2852
    %v2854 = vlaneseq
    %v2855 = vshrl.u32 %v2854, 7
    %v2856 = vsub.s32 3, %v2855
    %v2857 = vrot.slane %v2819, %v2856
    %v2858 = vlaneseq
    %v2859 = vshrl.u32 %v2858, 7
    %v2860 = vsub.s32 4, %v2859
    %v2861 = vrot.slane %v2819, %v2860
    %v2872 = vadd.f32 %v2796, %v2825
    %v2873 = vadd.f32 %v2797, %v2829
    %v2874 = vadd.f32 %v2798, %v2833
    %v2875 = vadd.f32 %v2799, %v2837
    %v2876 = vadd.f32 %v2800, %v2841
    %v2877 = vadd.f32 %v2801, %v2845
    %v2878 = vadd.f32 %v2802, %v2849
    %v2879 = vadd.f32 %v2803, %v2853
    %v2880 = vadd.f32 %v2804, %v2857
    %v2881 = vadd.f32 %v2805, %v2861
    %2892 = vset.pattern.permute.xlu0 0
    %2893 = vperm.xlu0 %2892, %v2872
    %v2894 = vpop.permute.xlu0 %2893
    %2895 = vset.pattern.permute.xlu0 0
    %2896 = vperm.xlu0 %2895, %v2873
    %v2897 = vpop.permute.xlu0 %2896
    %2898 = vset.pattern.permute.xlu0 0
    %2899 = vperm.xlu0 %2898, %v2874
    %v2900 = vpop.permute.xlu0 %2899
    %2901 = vset.pattern.permute.xlu0 0
    %2902 = vperm.xlu0 %2901, %v2875
    %v2903 = vpop.permute.xlu0 %2902
    %2904 = vset.pattern.permute.xlu0 0
    %2905 = vperm.xlu0 %2904, %v2876
    %v2906 = vpop.permute.xlu0 %2905
    %2907 = vset.pattern.permute.xlu0 0
    %2908 = vperm.xlu0 %2907, %v2877
    %v2909 = vpop.permute.xlu0 %2908
    %2910 = vset.pattern.permute.xlu0 0
    %2911 = vperm.xlu0 %2910, %v2878
    %v2912 = vpop.permute.xlu0 %2911
    %2913 = vset.pattern.permute.xlu0 0
    %2914 = vperm.xlu0 %2913, %v2879
    %v2915 = vpop.permute.xlu0 %2914
    %2916 = vset.pattern.permute.xlu0 0
    %2917 = vperm.xlu0 %2916, %v2880
    %v2918 = vpop.permute.xlu0 %2917
    %2919 = vset.pattern.permute.xlu0 0
    %2920 = vperm.xlu0 %2919, %v2881
    %v2921 = vpop.permute.xlu0 %2920
    %v2922 = vlaneseq
    %v2923 = vshrl.u32 %v2922, 7
    %v2924 = vsub.s32 %v2289, %v2923
    %v2925 = vrot.slane %v2894, %v2924
    %v2926 = vlaneseq
    %v2927 = vshrl.u32 %v2926, 7
    %v2928 = vsub.s32 %v2289, %v2927
    %v2929 = vrot.slane %v2897, %v2928
    %v2930 = vlaneseq
    %v2931 = vshrl.u32 %v2930, 7
    %v2932 = vsub.s32 %v2289, %v2931
    %v2933 = vrot.slane %v2900, %v2932
    %v2934 = vlaneseq
    %v2935 = vshrl.u32 %v2934, 7
    %v2936 = vsub.s32 %v2289, %v2935
    %v2937 = vrot.slane %v2903, %v2936
    %v2938 = vlaneseq
    %v2939 = vshrl.u32 %v2938, 7
    %v2940 = vsub.s32 %v2289, %v2939
    %v2941 = vrot.slane %v2906, %v2940
    %v2942 = vlaneseq
    %v2943 = vshrl.u32 %v2942, 7
    %v2944 = vsub.s32 %v2289, %v2943
    %v2945 = vrot.slane %v2909, %v2944
    %v2946 = vlaneseq
    %v2947 = vshrl.u32 %v2946, 7
    %v2948 = vsub.s32 %v2289, %v2947
    %v2949 = vrot.slane %v2912, %v2948
    %v2950 = vlaneseq
    %v2951 = vshrl.u32 %v2950, 7
    %v2952 = vsub.s32 %v2289, %v2951
    %v2953 = vrot.slane %v2915, %v2952
    %v2954 = vlaneseq
    %v2955 = vshrl.u32 %v2954, 7
    %v2956 = vsub.s32 %v2289, %v2955
    %v2957 = vrot.slane %v2918, %v2956
    %v2958 = vlaneseq
    %v2959 = vshrl.u32 %v2958, 7
    %v2960 = vsub.s32 %v2289, %v2959
    %v2961 = vrot.slane %v2921, %v2960
    %v2962 = vsel %vm485, %v2929, %v2925
    %v2963 = vsel %vm699, %v2933, %v2962
    %v2964 = vsel %vm915, %v2937, %v2963
    %v2965 = vsel %vm1130, %v2941, %v2964
    %v2966 = vsel %vm485, %v2949, %v2945
    %v2967 = vsel %vm699, %v2953, %v2966
    %v2968 = vsel %vm915, %v2957, %v2967
    %v2969 = vsel %vm1130, %v2961, %v2968
    %v2972 = vsel %vm2349, %v2965, -inf
    %2973 = vmax.xlane.f32.xlu0 %v2972
    %v2974 = vpop.xlane.xlu0 %2973
    %v2975 = vsel %vm2349, %v2969, -inf
    %2976 = vmax.xlane.f32.xlu0 %v2975
    %v2977 = vpop.xlane.xlu0 %2976
    %v2980 = vlaneseq
    %v2981 = vshrl.u32 %v2980, 7
    %v2982 = vsub.s32 0, %v2981
    %v2983 = vrot.slane %v2974, %v2982
    %v2984 = vlaneseq
    %v2985 = vshrl.u32 %v2984, 7
    %v2986 = vsub.s32 1, %v2985
    %v2987 = vrot.slane %v2974, %v2986
    %v2988 = vlaneseq
    %v2989 = vshrl.u32 %v2988, 7
    %v2990 = vsub.s32 2, %v2989
    %v2991 = vrot.slane %v2974, %v2990
    %v2992 = vlaneseq
    %v2993 = vshrl.u32 %v2992, 7
    %v2994 = vsub.s32 3, %v2993
    %v2995 = vrot.slane %v2974, %v2994
    %v2996 = vlaneseq
    %v2997 = vshrl.u32 %v2996, 7
    %v2998 = vsub.s32 4, %v2997
    %v2999 = vrot.slane %v2974, %v2998
    %v3000 = vlaneseq
    %v3001 = vshrl.u32 %v3000, 7
    %v3002 = vsub.s32 0, %v3001
    %v3003 = vrot.slane %v2977, %v3002
    %v3004 = vlaneseq
    %v3005 = vshrl.u32 %v3004, 7
    %v3006 = vsub.s32 1, %v3005
    %v3007 = vrot.slane %v2977, %v3006
    %v3008 = vlaneseq
    %v3009 = vshrl.u32 %v3008, 7
    %v3010 = vsub.s32 2, %v3009
    %v3011 = vrot.slane %v2977, %v3010
    %v3012 = vlaneseq
    %v3013 = vshrl.u32 %v3012, 7
    %v3014 = vsub.s32 3, %v3013
    %v3015 = vrot.slane %v2977, %v3014
    %v3016 = vlaneseq
    %v3017 = vshrl.u32 %v3016, 7
    %v3018 = vsub.s32 4, %v3017
    %v3019 = vrot.slane %v2977, %v3018
    %vm3030 = vcmp.eq.f32.partialorder %v2872, %v2983
    %vm3031 = vcmp.eq.f32.partialorder %v2873, %v2987
    %vm3032 = vcmp.eq.f32.partialorder %v2874, %v2991
    %vm3033 = vcmp.eq.f32.partialorder %v2875, %v2995
    %vm3034 = vcmp.eq.f32.partialorder %v2876, %v2999
    %vm3035 = vcmp.eq.f32.partialorder %v2877, %v3003
    %vm3036 = vcmp.eq.f32.partialorder %v2878, %v3007
    %vm3037 = vcmp.eq.f32.partialorder %v2879, %v3011
    %vm3038 = vcmp.eq.f32.partialorder %v2880, %v3015
    %vm3039 = vcmp.eq.f32.partialorder %v2881, %v3019
    %v3040 = vsel %vm3030, %v2677, 5
    %v3041 = vsel %vm3031, %v2677, 5
    %v3042 = vsel %vm3032, %v2677, 5
    %v3043 = vsel %vm3033, %v2677, 5
    %v3044 = vsel %vm3034, %v2677, 5
    %v3045 = vsel %vm3035, %v2677, 5
    %v3046 = vsel %vm3036, %v2677, 5
    %v3047 = vsel %vm3037, %v2677, 5
    %v3048 = vsel %vm3038, %v2677, 5
    %v3049 = vsel %vm3039, %v2677, 5
    %3050 = vset.pattern.permute.xlu0 0
    %3051 = vperm.xlu0 %3050, %v3040
    %v3052 = vpop.permute.xlu0 %3051
    %3053 = vset.pattern.permute.xlu0 0
    %3054 = vperm.xlu0 %3053, %v3041
    %v3055 = vpop.permute.xlu0 %3054
    %3056 = vset.pattern.permute.xlu0 0
    %3057 = vperm.xlu0 %3056, %v3042
    %v3058 = vpop.permute.xlu0 %3057
    %3059 = vset.pattern.permute.xlu0 0
    %3060 = vperm.xlu0 %3059, %v3043
    %v3061 = vpop.permute.xlu0 %3060
    %3062 = vset.pattern.permute.xlu0 0
    %3063 = vperm.xlu0 %3062, %v3044
    %v3064 = vpop.permute.xlu0 %3063
    %3065 = vset.pattern.permute.xlu0 0
    %3066 = vperm.xlu0 %3065, %v3045
    %v3067 = vpop.permute.xlu0 %3066
    %3068 = vset.pattern.permute.xlu0 0
    %3069 = vperm.xlu0 %3068, %v3046
    %v3070 = vpop.permute.xlu0 %3069
    %3071 = vset.pattern.permute.xlu0 0
    %3072 = vperm.xlu0 %3071, %v3047
    %v3073 = vpop.permute.xlu0 %3072
    %3074 = vset.pattern.permute.xlu0 0
    %3075 = vperm.xlu0 %3074, %v3048
    %v3076 = vpop.permute.xlu0 %3075
    %3077 = vset.pattern.permute.xlu0 0
    %3078 = vperm.xlu0 %3077, %v3049
    %v3079 = vpop.permute.xlu0 %3078
    %v3080 = vlaneseq
    %v3081 = vshrl.u32 %v3080, 7
    %v3082 = vsub.s32 %v2289, %v3081
    %v3083 = vrot.slane %v3052, %v3082
    %v3084 = vlaneseq
    %v3085 = vshrl.u32 %v3084, 7
    %v3086 = vsub.s32 %v2289, %v3085
    %v3087 = vrot.slane %v3055, %v3086
    %v3088 = vlaneseq
    %v3089 = vshrl.u32 %v3088, 7
    %v3090 = vsub.s32 %v2289, %v3089
    %v3091 = vrot.slane %v3058, %v3090
    %v3092 = vlaneseq
    %v3093 = vshrl.u32 %v3092, 7
    %v3094 = vsub.s32 %v2289, %v3093
    %v3095 = vrot.slane %v3061, %v3094
    %v3096 = vlaneseq
    %v3097 = vshrl.u32 %v3096, 7
    %v3098 = vsub.s32 %v2289, %v3097
    %v3099 = vrot.slane %v3064, %v3098
    %v3100 = vlaneseq
    %v3101 = vshrl.u32 %v3100, 7
    %v3102 = vsub.s32 %v2289, %v3101
    %v3103 = vrot.slane %v3067, %v3102
    %v3104 = vlaneseq
    %v3105 = vshrl.u32 %v3104, 7
    %v3106 = vsub.s32 %v2289, %v3105
    %v3107 = vrot.slane %v3070, %v3106
    %v3108 = vlaneseq
    %v3109 = vshrl.u32 %v3108, 7
    %v3110 = vsub.s32 %v2289, %v3109
    %v3111 = vrot.slane %v3073, %v3110
    %v3112 = vlaneseq
    %v3113 = vshrl.u32 %v3112, 7
    %v3114 = vsub.s32 %v2289, %v3113
    %v3115 = vrot.slane %v3076, %v3114
    %v3116 = vlaneseq
    %v3117 = vshrl.u32 %v3116, 7
    %v3118 = vsub.s32 %v2289, %v3117
    %v3119 = vrot.slane %v3079, %v3118
    %v3120 = vsel %vm485, %v3087, %v3083
    %v3121 = vsel %vm699, %v3091, %v3120
    %v3122 = vsel %vm915, %v3095, %v3121
    %v3123 = vsel %vm1130, %v3099, %v3122
    %v3124 = vsel %vm485, %v3107, %v3103
    %v3125 = vsel %vm699, %v3111, %v3124
    %v3126 = vsel %vm915, %v3115, %v3125
    %v3127 = vsel %vm1130, %v3119, %v3126
    %v3128 = vsel %vm2349, %v3123, 2147483647
    %v3129 = vand.u32 %v3128, 65535
    %v3130 = vshra.s32 %v3128, 16
    %v3131 = vcvt.s32.f32 %v3129
    %v3132 = vcvt.s32.f32 %v3130
    %3133 = vmin.xlane.f32.xlu0 %v3132
    %v3134 = vpop.xlane.xlu0 %3133
    %vm3135 = vcmp.eq.f32.partialorder %v3132, %v3134
    %v3136 = vsel %vm3135, %v3131, inf
    %3137 = vmin.xlane.f32.xlu0 %v3136
    %v3138 = vpop.xlane.xlu0 %3137
    %v3139 = vcvt.f32.s32 %v3138
    %v3140 = vcvt.f32.s32 %v3134
    %v3141 = vshll.u32 %v3140, 16
    %v3142 = vadd.s32 %v3141, %v3139
    %v3143 = vsel %vm2349, %v3127, 2147483647
    %v3144 = vand.u32 %v3143, 65535
    %v3145 = vshra.s32 %v3143, 16
    %v3146 = vcvt.s32.f32 %v3144
    %v3147 = vcvt.s32.f32 %v3145
    %3148 = vmin.xlane.f32.xlu0 %v3147
    %v3149 = vpop.xlane.xlu0 %3148
    %vm3150 = vcmp.eq.f32.partialorder %v3147, %v3149
    %v3151 = vsel %vm3150, %v3146, inf
    %3152 = vmin.xlane.f32.xlu0 %v3151
    %v3153 = vpop.xlane.xlu0 %3152
    %v3154 = vcvt.f32.s32 %v3153
    %v3155 = vcvt.f32.s32 %v3149
    %v3156 = vshll.u32 %v3155, 16
    %v3157 = vadd.s32 %v3156, %v3154
    %v3158 = vadd.f32 %v2974, %v2397
    %v3159 = vadd.f32 %v2974, %v2404
    %v3160 = vadd.f32 %v2974, %v2411
    %v3161 = vadd.f32 %v2974, %v2418
    %v3162 = vadd.f32 %v2974, %v2425
    %v3163 = vadd.f32 %v2977, %v2397
    %v3164 = vadd.f32 %v2977, %v2404
    %v3165 = vadd.f32 %v2977, %v2411
    %v3166 = vadd.f32 %v2977, %v2418
    %v3167 = vadd.f32 %v2977, %v2425
    %v3168 = vlaneseq
    %v3169 = vshrl.u32 %v3168, 7
    %v3170 = vsub.s32 0, %v3169
    %v3171 = vrot.slane %v2269, %v3170
    %3173 = vbcast.lane.b32.xlu0 %v3171, 256
    %v3174 = vpop.permute.xlu0 %3173
    %v3175 = vlaneseq
    %v3176 = vshrl.u32 %v3175, 7
    %v3177 = vsub.s32 1, %v3176
    %v3178 = vrot.slane %v2269, %v3177
    %3180 = vbcast.lane.b32.xlu0 %v3178, 256
    %v3181 = vpop.permute.xlu0 %3180
    %v3184 = vlaneseq
    %v3185 = vshrl.u32 %v3184, 7
    %v3186 = vsub.s32 0, %v3185
    %v3187 = vrot.slane %v3174, %v3186
    %v3188 = vlaneseq
    %v3189 = vshrl.u32 %v3188, 7
    %v3190 = vsub.s32 1, %v3189
    %v3191 = vrot.slane %v3174, %v3190
    %v3192 = vlaneseq
    %v3193 = vshrl.u32 %v3192, 7
    %v3194 = vsub.s32 2, %v3193
    %v3195 = vrot.slane %v3174, %v3194
    %v3196 = vlaneseq
    %v3197 = vshrl.u32 %v3196, 7
    %v3198 = vsub.s32 3, %v3197
    %v3199 = vrot.slane %v3174, %v3198
    %v3200 = vlaneseq
    %v3201 = vshrl.u32 %v3200, 7
    %v3202 = vsub.s32 4, %v3201
    %v3203 = vrot.slane %v3174, %v3202
    %v3204 = vlaneseq
    %v3205 = vshrl.u32 %v3204, 7
    %v3206 = vsub.s32 0, %v3205
    %v3207 = vrot.slane %v3181, %v3206
    %v3208 = vlaneseq
    %v3209 = vshrl.u32 %v3208, 7
    %v3210 = vsub.s32 1, %v3209
    %v3211 = vrot.slane %v3181, %v3210
    %v3212 = vlaneseq
    %v3213 = vshrl.u32 %v3212, 7
    %v3214 = vsub.s32 2, %v3213
    %v3215 = vrot.slane %v3181, %v3214
    %v3216 = vlaneseq
    %v3217 = vshrl.u32 %v3216, 7
    %v3218 = vsub.s32 3, %v3217
    %v3219 = vrot.slane %v3181, %v3218
    %v3220 = vlaneseq
    %v3221 = vshrl.u32 %v3220, 7
    %v3222 = vsub.s32 4, %v3221
    %v3223 = vrot.slane %v3181, %v3222
    %v3234 = vadd.f32 %v3158, %v3187
    %v3235 = vadd.f32 %v3159, %v3191
    %v3236 = vadd.f32 %v3160, %v3195
    %v3237 = vadd.f32 %v3161, %v3199
    %v3238 = vadd.f32 %v3162, %v3203
    %v3239 = vadd.f32 %v3163, %v3207
    %v3240 = vadd.f32 %v3164, %v3211
    %v3241 = vadd.f32 %v3165, %v3215
    %v3242 = vadd.f32 %v3166, %v3219
    %v3243 = vadd.f32 %v3167, %v3223
    %3254 = vset.pattern.permute.xlu0 0
    %3255 = vperm.xlu0 %3254, %v3234
    %v3256 = vpop.permute.xlu0 %3255
    %3257 = vset.pattern.permute.xlu0 0
    %3258 = vperm.xlu0 %3257, %v3235
    %v3259 = vpop.permute.xlu0 %3258
    %3260 = vset.pattern.permute.xlu0 0
    %3261 = vperm.xlu0 %3260, %v3236
    %v3262 = vpop.permute.xlu0 %3261
    %3263 = vset.pattern.permute.xlu0 0
    %3264 = vperm.xlu0 %3263, %v3237
    %v3265 = vpop.permute.xlu0 %3264
    %3266 = vset.pattern.permute.xlu0 0
    %3267 = vperm.xlu0 %3266, %v3238
    %v3268 = vpop.permute.xlu0 %3267
    %3269 = vset.pattern.permute.xlu0 0
    %3270 = vperm.xlu0 %3269, %v3239
    %v3271 = vpop.permute.xlu0 %3270
    %3272 = vset.pattern.permute.xlu0 0
    %3273 = vperm.xlu0 %3272, %v3240
    %v3274 = vpop.permute.xlu0 %3273
    %3275 = vset.pattern.permute.xlu0 0
    %3276 = vperm.xlu0 %3275, %v3241
    %v3277 = vpop.permute.xlu0 %3276
    %3278 = vset.pattern.permute.xlu0 0
    %3279 = vperm.xlu0 %3278, %v3242
    %v3280 = vpop.permute.xlu0 %3279
    %3281 = vset.pattern.permute.xlu0 0
    %3282 = vperm.xlu0 %3281, %v3243
    %v3283 = vpop.permute.xlu0 %3282
    %v3284 = vlaneseq
    %v3285 = vshrl.u32 %v3284, 7
    %v3286 = vsub.s32 %v2289, %v3285
    %v3287 = vrot.slane %v3256, %v3286
    %v3288 = vlaneseq
    %v3289 = vshrl.u32 %v3288, 7
    %v3290 = vsub.s32 %v2289, %v3289
    %v3291 = vrot.slane %v3259, %v3290
    %v3292 = vlaneseq
    %v3293 = vshrl.u32 %v3292, 7
    %v3294 = vsub.s32 %v2289, %v3293
    %v3295 = vrot.slane %v3262, %v3294
    %v3296 = vlaneseq
    %v3297 = vshrl.u32 %v3296, 7
    %v3298 = vsub.s32 %v2289, %v3297
    %v3299 = vrot.slane %v3265, %v3298
    %v3300 = vlaneseq
    %v3301 = vshrl.u32 %v3300, 7
    %v3302 = vsub.s32 %v2289, %v3301
    %v3303 = vrot.slane %v3268, %v3302
    %v3304 = vlaneseq
    %v3305 = vshrl.u32 %v3304, 7
    %v3306 = vsub.s32 %v2289, %v3305
    %v3307 = vrot.slane %v3271, %v3306
    %v3308 = vlaneseq
    %v3309 = vshrl.u32 %v3308, 7
    %v3310 = vsub.s32 %v2289, %v3309
    %v3311 = vrot.slane %v3274, %v3310
    %v3312 = vlaneseq
    %v3313 = vshrl.u32 %v3312, 7
    %v3314 = vsub.s32 %v2289, %v3313
    %v3315 = vrot.slane %v3277, %v3314
    %v3316 = vlaneseq
    %v3317 = vshrl.u32 %v3316, 7
    %v3318 = vsub.s32 %v2289, %v3317
    %v3319 = vrot.slane %v3280, %v3318
    %v3320 = vlaneseq
    %v3321 = vshrl.u32 %v3320, 7
    %v3322 = vsub.s32 %v2289, %v3321
    %v3323 = vrot.slane %v3283, %v3322
    %v3324 = vsel %vm485, %v3291, %v3287
    %v3325 = vsel %vm699, %v3295, %v3324
    %v3326 = vsel %vm915, %v3299, %v3325
    %v3327 = vsel %vm1130, %v3303, %v3326
    %v3328 = vsel %vm485, %v3311, %v3307
    %v3329 = vsel %vm699, %v3315, %v3328
    %v3330 = vsel %vm915, %v3319, %v3329
    %v3331 = vsel %vm1130, %v3323, %v3330
    %v3334 = vsel %vm2349, %v3327, -inf
    %3335 = vmax.xlane.f32.xlu0 %v3334
    %v3336 = vpop.xlane.xlu0 %3335
    %v3337 = vsel %vm2349, %v3331, -inf
    %3338 = vmax.xlane.f32.xlu0 %v3337
    %v3339 = vpop.xlane.xlu0 %3338
    %v3342 = vlaneseq
    %v3343 = vshrl.u32 %v3342, 7
    %v3344 = vsub.s32 0, %v3343
    %v3345 = vrot.slane %v3336, %v3344
    %v3346 = vlaneseq
    %v3347 = vshrl.u32 %v3346, 7
    %v3348 = vsub.s32 1, %v3347
    %v3349 = vrot.slane %v3336, %v3348
    %v3350 = vlaneseq
    %v3351 = vshrl.u32 %v3350, 7
    %v3352 = vsub.s32 2, %v3351
    %v3353 = vrot.slane %v3336, %v3352
    %v3354 = vlaneseq
    %v3355 = vshrl.u32 %v3354, 7
    %v3356 = vsub.s32 3, %v3355
    %v3357 = vrot.slane %v3336, %v3356
    %v3358 = vlaneseq
    %v3359 = vshrl.u32 %v3358, 7
    %v3360 = vsub.s32 4, %v3359
    %v3361 = vrot.slane %v3336, %v3360
    %v3362 = vlaneseq
    %v3363 = vshrl.u32 %v3362, 7
    %v3364 = vsub.s32 0, %v3363
    %v3365 = vrot.slane %v3339, %v3364
    %v3366 = vlaneseq
    %v3367 = vshrl.u32 %v3366, 7
    %v3368 = vsub.s32 1, %v3367
    %v3369 = vrot.slane %v3339, %v3368
    %v3370 = vlaneseq
    %v3371 = vshrl.u32 %v3370, 7
    %v3372 = vsub.s32 2, %v3371
    %v3373 = vrot.slane %v3339, %v3372
    %v3374 = vlaneseq
    %v3375 = vshrl.u32 %v3374, 7
    %v3376 = vsub.s32 3, %v3375
    %v3377 = vrot.slane %v3339, %v3376
    %v3378 = vlaneseq
    %v3379 = vshrl.u32 %v3378, 7
    %v3380 = vsub.s32 4, %v3379
    %v3381 = vrot.slane %v3339, %v3380
    %vm3392 = vcmp.eq.f32.partialorder %v3234, %v3345
    %vm3393 = vcmp.eq.f32.partialorder %v3235, %v3349
    %vm3394 = vcmp.eq.f32.partialorder %v3236, %v3353
    %vm3395 = vcmp.eq.f32.partialorder %v3237, %v3357
    %vm3396 = vcmp.eq.f32.partialorder %v3238, %v3361
    %vm3397 = vcmp.eq.f32.partialorder %v3239, %v3365
    %vm3398 = vcmp.eq.f32.partialorder %v3240, %v3369
    %vm3399 = vcmp.eq.f32.partialorder %v3241, %v3373
    %vm3400 = vcmp.eq.f32.partialorder %v3242, %v3377
    %vm3401 = vcmp.eq.f32.partialorder %v3243, %v3381
    %v3402 = vsel %vm3392, %v2677, 5
    %v3403 = vsel %vm3393, %v2677, 5
    %v3404 = vsel %vm3394, %v2677, 5
    %v3405 = vsel %vm3395, %v2677, 5
    %v3406 = vsel %vm3396, %v2677, 5
    %v3407 = vsel %vm3397, %v2677, 5
    %v3408 = vsel %vm3398, %v2677, 5
    %v3409 = vsel %vm3399, %v2677, 5
    %v3410 = vsel %vm3400, %v2677, 5
    %v3411 = vsel %vm3401, %v2677, 5
    %3412 = vset.pattern.permute.xlu0 0
    %3413 = vperm.xlu0 %3412, %v3402
    %v3414 = vpop.permute.xlu0 %3413
    %3415 = vset.pattern.permute.xlu0 0
    %3416 = vperm.xlu0 %3415, %v3403
    %v3417 = vpop.permute.xlu0 %3416
    %3418 = vset.pattern.permute.xlu0 0
    %3419 = vperm.xlu0 %3418, %v3404
    %v3420 = vpop.permute.xlu0 %3419
    %3421 = vset.pattern.permute.xlu0 0
    %3422 = vperm.xlu0 %3421, %v3405
    %v3423 = vpop.permute.xlu0 %3422
    %3424 = vset.pattern.permute.xlu0 0
    %3425 = vperm.xlu0 %3424, %v3406
    %v3426 = vpop.permute.xlu0 %3425
    %3427 = vset.pattern.permute.xlu0 0
    %3428 = vperm.xlu0 %3427, %v3407
    %v3429 = vpop.permute.xlu0 %3428
    %3430 = vset.pattern.permute.xlu0 0
    %3431 = vperm.xlu0 %3430, %v3408
    %v3432 = vpop.permute.xlu0 %3431
    %3433 = vset.pattern.permute.xlu0 0
    %3434 = vperm.xlu0 %3433, %v3409
    %v3435 = vpop.permute.xlu0 %3434
    %3436 = vset.pattern.permute.xlu0 0
    %3437 = vperm.xlu0 %3436, %v3410
    %v3438 = vpop.permute.xlu0 %3437
    %3439 = vset.pattern.permute.xlu0 0
    %3440 = vperm.xlu0 %3439, %v3411
    %v3441 = vpop.permute.xlu0 %3440
    %v3442 = vlaneseq
    %v3443 = vshrl.u32 %v3442, 7
    %v3444 = vsub.s32 %v2289, %v3443
    %v3445 = vrot.slane %v3414, %v3444
    %v3446 = vlaneseq
    %v3447 = vshrl.u32 %v3446, 7
    %v3448 = vsub.s32 %v2289, %v3447
    %v3449 = vrot.slane %v3417, %v3448
    %v3450 = vlaneseq
    %v3451 = vshrl.u32 %v3450, 7
    %v3452 = vsub.s32 %v2289, %v3451
    %v3453 = vrot.slane %v3420, %v3452
    %v3454 = vlaneseq
    %v3455 = vshrl.u32 %v3454, 7
    %v3456 = vsub.s32 %v2289, %v3455
    %v3457 = vrot.slane %v3423, %v3456
    %v3458 = vlaneseq
    %v3459 = vshrl.u32 %v3458, 7
    %v3460 = vsub.s32 %v2289, %v3459
    %v3461 = vrot.slane %v3426, %v3460
    %v3462 = vlaneseq
    %v3463 = vshrl.u32 %v3462, 7
    %v3464 = vsub.s32 %v2289, %v3463
    %v3465 = vrot.slane %v3429, %v3464
    %v3466 = vlaneseq
    %v3467 = vshrl.u32 %v3466, 7
    %v3468 = vsub.s32 %v2289, %v3467
    %v3469 = vrot.slane %v3432, %v3468
    %v3470 = vlaneseq
    %v3471 = vshrl.u32 %v3470, 7
    %v3472 = vsub.s32 %v2289, %v3471
    %v3473 = vrot.slane %v3435, %v3472
    %v3474 = vlaneseq
    %v3475 = vshrl.u32 %v3474, 7
    %v3476 = vsub.s32 %v2289, %v3475
    %v3477 = vrot.slane %v3438, %v3476
    %v3478 = vlaneseq
    %v3479 = vshrl.u32 %v3478, 7
    %v3480 = vsub.s32 %v2289, %v3479
    %v3481 = vrot.slane %v3441, %v3480
    %v3482 = vsel %vm485, %v3449, %v3445
    %v3483 = vsel %vm699, %v3453, %v3482
    %v3484 = vsel %vm915, %v3457, %v3483
    %v3485 = vsel %vm1130, %v3461, %v3484
    %v3486 = vsel %vm485, %v3469, %v3465
    %v3487 = vsel %vm699, %v3473, %v3486
    %v3488 = vsel %vm915, %v3477, %v3487
    %v3489 = vsel %vm1130, %v3481, %v3488
    %v3490 = vsel %vm2349, %v3485, 2147483647
    %v3491 = vand.u32 %v3490, 65535
    %v3492 = vshra.s32 %v3490, 16
    %v3493 = vcvt.s32.f32 %v3491
    %v3494 = vcvt.s32.f32 %v3492
    %3495 = vmin.xlane.f32.xlu0 %v3494
    %v3496 = vpop.xlane.xlu0 %3495
    %vm3497 = vcmp.eq.f32.partialorder %v3494, %v3496
    %v3498 = vsel %vm3497, %v3493, inf
    %3499 = vmin.xlane.f32.xlu0 %v3498
    %v3500 = vpop.xlane.xlu0 %3499
    %v3501 = vcvt.f32.s32 %v3500
    %v3502 = vcvt.f32.s32 %v3496
    %v3503 = vshll.u32 %v3502, 16
    %v3504 = vadd.s32 %v3503, %v3501
    %v3505 = vsel %vm2349, %v3489, 2147483647
    %v3506 = vand.u32 %v3505, 65535
    %v3507 = vshra.s32 %v3505, 16
    %v3508 = vcvt.s32.f32 %v3506
    %v3509 = vcvt.s32.f32 %v3507
    %3510 = vmin.xlane.f32.xlu0 %v3509
    %v3511 = vpop.xlane.xlu0 %3510
    %vm3512 = vcmp.eq.f32.partialorder %v3509, %v3511
    %v3513 = vsel %vm3512, %v3508, inf
    %3514 = vmin.xlane.f32.xlu0 %v3513
    %v3515 = vpop.xlane.xlu0 %3514
    %v3516 = vcvt.f32.s32 %v3515
    %v3517 = vcvt.f32.s32 %v3511
    %v3518 = vshll.u32 %v3517, 16
    %v3519 = vadd.s32 %v3518, %v3516
    %v3520 = vadd.f32 %v3336, %v2397
    %v3521 = vadd.f32 %v3336, %v2404
    %v3522 = vadd.f32 %v3336, %v2411
    %v3523 = vadd.f32 %v3336, %v2418
    %v3524 = vadd.f32 %v3336, %v2425
    %v3525 = vadd.f32 %v3339, %v2397
    %v3526 = vadd.f32 %v3339, %v2404
    %v3527 = vadd.f32 %v3339, %v2411
    %v3528 = vadd.f32 %v3339, %v2418
    %v3529 = vadd.f32 %v3339, %v2425
    %v3530 = vlaneseq
    %v3531 = vshrl.u32 %v3530, 7
    %v3532 = vsub.s32 0, %v3531
    %v3533 = vrot.slane %v2277, %v3532
    %3535 = vbcast.lane.b32.xlu0 %v3533, 256
    %v3536 = vpop.permute.xlu0 %3535
    %v3537 = vlaneseq
    %v3538 = vshrl.u32 %v3537, 7
    %v3539 = vsub.s32 1, %v3538
    %v3540 = vrot.slane %v2277, %v3539
    %3542 = vbcast.lane.b32.xlu0 %v3540, 256
    %v3543 = vpop.permute.xlu0 %3542
    %v3546 = vlaneseq
    %v3547 = vshrl.u32 %v3546, 7
    %v3548 = vsub.s32 0, %v3547
    %v3549 = vrot.slane %v3536, %v3548
    %v3550 = vlaneseq
    %v3551 = vshrl.u32 %v3550, 7
    %v3552 = vsub.s32 1, %v3551
    %v3553 = vrot.slane %v3536, %v3552
    %v3554 = vlaneseq
    %v3555 = vshrl.u32 %v3554, 7
    %v3556 = vsub.s32 2, %v3555
    %v3557 = vrot.slane %v3536, %v3556
    %v3558 = vlaneseq
    %v3559 = vshrl.u32 %v3558, 7
    %v3560 = vsub.s32 3, %v3559
    %v3561 = vrot.slane %v3536, %v3560
    %v3562 = vlaneseq
    %v3563 = vshrl.u32 %v3562, 7
    %v3564 = vsub.s32 4, %v3563
    %v3565 = vrot.slane %v3536, %v3564
    %v3566 = vlaneseq
    %v3567 = vshrl.u32 %v3566, 7
    %v3568 = vsub.s32 0, %v3567
    %v3569 = vrot.slane %v3543, %v3568
    %v3570 = vlaneseq
    %v3571 = vshrl.u32 %v3570, 7
    %v3572 = vsub.s32 1, %v3571
    %v3573 = vrot.slane %v3543, %v3572
    %v3574 = vlaneseq
    %v3575 = vshrl.u32 %v3574, 7
    %v3576 = vsub.s32 2, %v3575
    %v3577 = vrot.slane %v3543, %v3576
    %v3578 = vlaneseq
    %v3579 = vshrl.u32 %v3578, 7
    %v3580 = vsub.s32 3, %v3579
    %v3581 = vrot.slane %v3543, %v3580
    %v3582 = vlaneseq
    %v3583 = vshrl.u32 %v3582, 7
    %v3584 = vsub.s32 4, %v3583
    %v3585 = vrot.slane %v3543, %v3584
    %v3596 = vadd.f32 %v3520, %v3549
    %v3597 = vadd.f32 %v3521, %v3553
    %v3598 = vadd.f32 %v3522, %v3557
    %v3599 = vadd.f32 %v3523, %v3561
    %v3600 = vadd.f32 %v3524, %v3565
    %v3601 = vadd.f32 %v3525, %v3569
    %v3602 = vadd.f32 %v3526, %v3573
    %v3603 = vadd.f32 %v3527, %v3577
    %v3604 = vadd.f32 %v3528, %v3581
    %v3605 = vadd.f32 %v3529, %v3585
    %3616 = vset.pattern.permute.xlu0 0
    %3617 = vperm.xlu0 %3616, %v3596
    %v3618 = vpop.permute.xlu0 %3617
    %3619 = vset.pattern.permute.xlu0 0
    %3620 = vperm.xlu0 %3619, %v3597
    %v3621 = vpop.permute.xlu0 %3620
    %3622 = vset.pattern.permute.xlu0 0
    %3623 = vperm.xlu0 %3622, %v3598
    %v3624 = vpop.permute.xlu0 %3623
    %3625 = vset.pattern.permute.xlu0 0
    %3626 = vperm.xlu0 %3625, %v3599
    %v3627 = vpop.permute.xlu0 %3626
    %3628 = vset.pattern.permute.xlu0 0
    %3629 = vperm.xlu0 %3628, %v3600
    %v3630 = vpop.permute.xlu0 %3629
    %3631 = vset.pattern.permute.xlu0 0
    %3632 = vperm.xlu0 %3631, %v3601
    %v3633 = vpop.permute.xlu0 %3632
    %3634 = vset.pattern.permute.xlu0 0
    %3635 = vperm.xlu0 %3634, %v3602
    %v3636 = vpop.permute.xlu0 %3635
    %3637 = vset.pattern.permute.xlu0 0
    %3638 = vperm.xlu0 %3637, %v3603
    %v3639 = vpop.permute.xlu0 %3638
    %3640 = vset.pattern.permute.xlu0 0
    %3641 = vperm.xlu0 %3640, %v3604
    %v3642 = vpop.permute.xlu0 %3641
    %3643 = vset.pattern.permute.xlu0 0
    %3644 = vperm.xlu0 %3643, %v3605
    %v3645 = vpop.permute.xlu0 %3644
    %v3646 = vlaneseq
    %v3647 = vshrl.u32 %v3646, 7
    %v3648 = vsub.s32 %v2289, %v3647
    %v3649 = vrot.slane %v3618, %v3648
    %v3650 = vlaneseq
    %v3651 = vshrl.u32 %v3650, 7
    %v3652 = vsub.s32 %v2289, %v3651
    %v3653 = vrot.slane %v3621, %v3652
    %v3654 = vlaneseq
    %v3655 = vshrl.u32 %v3654, 7
    %v3656 = vsub.s32 %v2289, %v3655
    %v3657 = vrot.slane %v3624, %v3656
    %v3658 = vlaneseq
    %v3659 = vshrl.u32 %v3658, 7
    %v3660 = vsub.s32 %v2289, %v3659
    %v3661 = vrot.slane %v3627, %v3660
    %v3662 = vlaneseq
    %v3663 = vshrl.u32 %v3662, 7
    %v3664 = vsub.s32 %v2289, %v3663
    %v3665 = vrot.slane %v3630, %v3664
    %v3666 = vlaneseq
    %v3667 = vshrl.u32 %v3666, 7
    %v3668 = vsub.s32 %v2289, %v3667
    %v3669 = vrot.slane %v3633, %v3668
    %v3670 = vlaneseq
    %v3671 = vshrl.u32 %v3670, 7
    %v3672 = vsub.s32 %v2289, %v3671
    %v3673 = vrot.slane %v3636, %v3672
    %v3674 = vlaneseq
    %v3675 = vshrl.u32 %v3674, 7
    %v3676 = vsub.s32 %v2289, %v3675
    %v3677 = vrot.slane %v3639, %v3676
    %v3678 = vlaneseq
    %v3679 = vshrl.u32 %v3678, 7
    %v3680 = vsub.s32 %v2289, %v3679
    %v3681 = vrot.slane %v3642, %v3680
    %v3682 = vlaneseq
    %v3683 = vshrl.u32 %v3682, 7
    %v3684 = vsub.s32 %v2289, %v3683
    %v3685 = vrot.slane %v3645, %v3684
    %v3686 = vsel %vm485, %v3653, %v3649
    %v3687 = vsel %vm699, %v3657, %v3686
    %v3688 = vsel %vm915, %v3661, %v3687
    %v3689 = vsel %vm1130, %v3665, %v3688
    %v3690 = vsel %vm485, %v3673, %v3669
    %v3691 = vsel %vm699, %v3677, %v3690
    %v3692 = vsel %vm915, %v3681, %v3691
    %v3693 = vsel %vm1130, %v3685, %v3692
    %v3696 = vsel %vm2349, %v3689, -inf
    %3697 = vmax.xlane.f32.xlu0 %v3696
    %v3698 = vpop.xlane.xlu0 %3697
    %v3699 = vsel %vm2349, %v3693, -inf
    %3700 = vmax.xlane.f32.xlu0 %v3699
    %v3701 = vpop.xlane.xlu0 %3700
    %v3704 = vlaneseq
    %v3705 = vshrl.u32 %v3704, 7
    %v3706 = vsub.s32 0, %v3705
    %v3707 = vrot.slane %v3698, %v3706
    %v3708 = vlaneseq
    %v3709 = vshrl.u32 %v3708, 7
    %v3710 = vsub.s32 1, %v3709
    %v3711 = vrot.slane %v3698, %v3710
    %v3712 = vlaneseq
    %v3713 = vshrl.u32 %v3712, 7
    %v3714 = vsub.s32 2, %v3713
    %v3715 = vrot.slane %v3698, %v3714
    %v3716 = vlaneseq
    %v3717 = vshrl.u32 %v3716, 7
    %v3718 = vsub.s32 3, %v3717
    %v3719 = vrot.slane %v3698, %v3718
    %v3720 = vlaneseq
    %v3721 = vshrl.u32 %v3720, 7
    %v3722 = vsub.s32 4, %v3721
    %v3723 = vrot.slane %v3698, %v3722
    %v3724 = vlaneseq
    %v3725 = vshrl.u32 %v3724, 7
    %v3726 = vsub.s32 0, %v3725
    %v3727 = vrot.slane %v3701, %v3726
    %v3728 = vlaneseq
    %v3729 = vshrl.u32 %v3728, 7
    %v3730 = vsub.s32 1, %v3729
    %v3731 = vrot.slane %v3701, %v3730
    %v3732 = vlaneseq
    %v3733 = vshrl.u32 %v3732, 7
    %v3734 = vsub.s32 2, %v3733
    %v3735 = vrot.slane %v3701, %v3734
    %v3736 = vlaneseq
    %v3737 = vshrl.u32 %v3736, 7
    %v3738 = vsub.s32 3, %v3737
    %v3739 = vrot.slane %v3701, %v3738
    %v3740 = vlaneseq
    %v3741 = vshrl.u32 %v3740, 7
    %v3742 = vsub.s32 4, %v3741
    %v3743 = vrot.slane %v3701, %v3742
    %vm3754 = vcmp.eq.f32.partialorder %v3596, %v3707
    %vm3755 = vcmp.eq.f32.partialorder %v3597, %v3711
    %vm3756 = vcmp.eq.f32.partialorder %v3598, %v3715
    %vm3757 = vcmp.eq.f32.partialorder %v3599, %v3719
    %vm3758 = vcmp.eq.f32.partialorder %v3600, %v3723
    %vm3759 = vcmp.eq.f32.partialorder %v3601, %v3727
    %vm3760 = vcmp.eq.f32.partialorder %v3602, %v3731
    %vm3761 = vcmp.eq.f32.partialorder %v3603, %v3735
    %vm3762 = vcmp.eq.f32.partialorder %v3604, %v3739
    %vm3763 = vcmp.eq.f32.partialorder %v3605, %v3743
    %v3764 = vsel %vm3754, %v2677, 5
    %v3765 = vsel %vm3755, %v2677, 5
    %v3766 = vsel %vm3756, %v2677, 5
    %v3767 = vsel %vm3757, %v2677, 5
    %v3768 = vsel %vm3758, %v2677, 5
    %v3769 = vsel %vm3759, %v2677, 5
    %v3770 = vsel %vm3760, %v2677, 5
    %v3771 = vsel %vm3761, %v2677, 5
    %v3772 = vsel %vm3762, %v2677, 5
    %v3773 = vsel %vm3763, %v2677, 5
    %3774 = vset.pattern.permute.xlu0 0
    %3775 = vperm.xlu0 %3774, %v3764
    %v3776 = vpop.permute.xlu0 %3775
    %3777 = vset.pattern.permute.xlu0 0
    %3778 = vperm.xlu0 %3777, %v3765
    %v3779 = vpop.permute.xlu0 %3778
    %3780 = vset.pattern.permute.xlu0 0
    %3781 = vperm.xlu0 %3780, %v3766
    %v3782 = vpop.permute.xlu0 %3781
    %3783 = vset.pattern.permute.xlu0 0
    %3784 = vperm.xlu0 %3783, %v3767
    %v3785 = vpop.permute.xlu0 %3784
    %3786 = vset.pattern.permute.xlu0 0
    %3787 = vperm.xlu0 %3786, %v3768
    %v3788 = vpop.permute.xlu0 %3787
    %3789 = vset.pattern.permute.xlu0 0
    %3790 = vperm.xlu0 %3789, %v3769
    %v3791 = vpop.permute.xlu0 %3790
    %3792 = vset.pattern.permute.xlu0 0
    %3793 = vperm.xlu0 %3792, %v3770
    %v3794 = vpop.permute.xlu0 %3793
    %3795 = vset.pattern.permute.xlu0 0
    %3796 = vperm.xlu0 %3795, %v3771
    %v3797 = vpop.permute.xlu0 %3796
    %3798 = vset.pattern.permute.xlu0 0
    %3799 = vperm.xlu0 %3798, %v3772
    %v3800 = vpop.permute.xlu0 %3799
    %3801 = vset.pattern.permute.xlu0 0
    %3802 = vperm.xlu0 %3801, %v3773
    %v3803 = vpop.permute.xlu0 %3802
    %v3804 = vlaneseq
    %v3805 = vshrl.u32 %v3804, 7
    %v3806 = vsub.s32 %v2289, %v3805
    %v3807 = vrot.slane %v3776, %v3806
    %v3808 = vlaneseq
    %v3809 = vshrl.u32 %v3808, 7
    %v3810 = vsub.s32 %v2289, %v3809
    %v3811 = vrot.slane %v3779, %v3810
    %v3812 = vlaneseq
    %v3813 = vshrl.u32 %v3812, 7
    %v3814 = vsub.s32 %v2289, %v3813
    %v3815 = vrot.slane %v3782, %v3814
    %v3816 = vlaneseq
    %v3817 = vshrl.u32 %v3816, 7
    %v3818 = vsub.s32 %v2289, %v3817
    %v3819 = vrot.slane %v3785, %v3818
    %v3820 = vlaneseq
    %v3821 = vshrl.u32 %v3820, 7
    %v3822 = vsub.s32 %v2289, %v3821
    %v3823 = vrot.slane %v3788, %v3822
    %v3824 = vlaneseq
    %v3825 = vshrl.u32 %v3824, 7
    %v3826 = vsub.s32 %v2289, %v3825
    %v3827 = vrot.slane %v3791, %v3826
    %v3828 = vlaneseq
    %v3829 = vshrl.u32 %v3828, 7
    %v3830 = vsub.s32 %v2289, %v3829
    %v3831 = vrot.slane %v3794, %v3830
    %v3832 = vlaneseq
    %v3833 = vshrl.u32 %v3832, 7
    %v3834 = vsub.s32 %v2289, %v3833
    %v3835 = vrot.slane %v3797, %v3834
    %v3836 = vlaneseq
    %v3837 = vshrl.u32 %v3836, 7
    %v3838 = vsub.s32 %v2289, %v3837
    %v3839 = vrot.slane %v3800, %v3838
    %v3840 = vlaneseq
    %v3841 = vshrl.u32 %v3840, 7
    %v3842 = vsub.s32 %v2289, %v3841
    %v3843 = vrot.slane %v3803, %v3842
    %v3844 = vsel %vm485, %v3811, %v3807
    %v3845 = vsel %vm699, %v3815, %v3844
    %v3846 = vsel %vm915, %v3819, %v3845
    %v3847 = vsel %vm1130, %v3823, %v3846
    %v3848 = vsel %vm485, %v3831, %v3827
    %v3849 = vsel %vm699, %v3835, %v3848
    %v3850 = vsel %vm915, %v3839, %v3849
    %v3851 = vsel %vm1130, %v3843, %v3850
    %v3852 = vsel %vm2349, %v3847, 2147483647
    %v3853 = vand.u32 %v3852, 65535
    %v3854 = vshra.s32 %v3852, 16
    %v3855 = vcvt.s32.f32 %v3853
    %v3856 = vcvt.s32.f32 %v3854
    %3857 = vmin.xlane.f32.xlu0 %v3856
    %v3858 = vpop.xlane.xlu0 %3857
    %vm3859 = vcmp.eq.f32.partialorder %v3856, %v3858
    %v3860 = vsel %vm3859, %v3855, inf
    %3861 = vmin.xlane.f32.xlu0 %v3860
    %v3862 = vpop.xlane.xlu0 %3861
    %v3863 = vcvt.f32.s32 %v3862
    %v3864 = vcvt.f32.s32 %v3858
    %v3865 = vshll.u32 %v3864, 16
    %v3866 = vadd.s32 %v3865, %v3863
    %v3867 = vsel %vm2349, %v3851, 2147483647
    %v3868 = vand.u32 %v3867, 65535
    %v3869 = vshra.s32 %v3867, 16
    %v3870 = vcvt.s32.f32 %v3868
    %v3871 = vcvt.s32.f32 %v3869
    %3872 = vmin.xlane.f32.xlu0 %v3871
    %v3873 = vpop.xlane.xlu0 %3872
    %vm3874 = vcmp.eq.f32.partialorder %v3871, %v3873
    %v3875 = vsel %vm3874, %v3870, inf
    %3876 = vmin.xlane.f32.xlu0 %v3875
    %v3877 = vpop.xlane.xlu0 %3876
    %v3878 = vcvt.f32.s32 %v3877
    %v3879 = vcvt.f32.s32 %v3873
    %v3880 = vshll.u32 %v3879, 16
    %v3881 = vadd.s32 %v3880, %v3878
    %v3882 = vadd.f32 %v3698, %v2397
    %v3883 = vadd.f32 %v3698, %v2404
    %v3884 = vadd.f32 %v3698, %v2411
    %v3885 = vadd.f32 %v3698, %v2418
    %v3886 = vadd.f32 %v3698, %v2425
    %v3887 = vadd.f32 %v3701, %v2397
    %v3888 = vadd.f32 %v3701, %v2404
    %v3889 = vadd.f32 %v3701, %v2411
    %v3890 = vadd.f32 %v3701, %v2418
    %v3891 = vadd.f32 %v3701, %v2425
    %v3892 = vlaneseq
    %v3893 = vshrl.u32 %v3892, 7
    %v3894 = vsub.s32 0, %v3893
    %v3895 = vrot.slane %v2276, %v3894
    %3897 = vbcast.lane.b32.xlu0 %v3895, 256
    %v3898 = vpop.permute.xlu0 %3897
    %v3899 = vlaneseq
    %v3900 = vshrl.u32 %v3899, 7
    %v3901 = vsub.s32 1, %v3900
    %v3902 = vrot.slane %v2276, %v3901
    %3904 = vbcast.lane.b32.xlu0 %v3902, 256
    %v3905 = vpop.permute.xlu0 %3904
    %v3908 = vlaneseq
    %v3909 = vshrl.u32 %v3908, 7
    %v3910 = vsub.s32 0, %v3909
    %v3911 = vrot.slane %v3898, %v3910
    %v3912 = vlaneseq
    %v3913 = vshrl.u32 %v3912, 7
    %v3914 = vsub.s32 1, %v3913
    %v3915 = vrot.slane %v3898, %v3914
    %v3916 = vlaneseq
    %v3917 = vshrl.u32 %v3916, 7
    %v3918 = vsub.s32 2, %v3917
    %v3919 = vrot.slane %v3898, %v3918
    %v3920 = vlaneseq
    %v3921 = vshrl.u32 %v3920, 7
    %v3922 = vsub.s32 3, %v3921
    %v3923 = vrot.slane %v3898, %v3922
    %v3924 = vlaneseq
    %v3925 = vshrl.u32 %v3924, 7
    %v3926 = vsub.s32 4, %v3925
    %v3927 = vrot.slane %v3898, %v3926
    %v3928 = vlaneseq
    %v3929 = vshrl.u32 %v3928, 7
    %v3930 = vsub.s32 0, %v3929
    %v3931 = vrot.slane %v3905, %v3930
    %v3932 = vlaneseq
    %v3933 = vshrl.u32 %v3932, 7
    %v3934 = vsub.s32 1, %v3933
    %v3935 = vrot.slane %v3905, %v3934
    %v3936 = vlaneseq
    %v3937 = vshrl.u32 %v3936, 7
    %v3938 = vsub.s32 2, %v3937
    %v3939 = vrot.slane %v3905, %v3938
    %v3940 = vlaneseq
    %v3941 = vshrl.u32 %v3940, 7
    %v3942 = vsub.s32 3, %v3941
    %v3943 = vrot.slane %v3905, %v3942
    %v3944 = vlaneseq
    %v3945 = vshrl.u32 %v3944, 7
    %v3946 = vsub.s32 4, %v3945
    %v3947 = vrot.slane %v3905, %v3946
    %v3958 = vadd.f32 %v3882, %v3911
    %v3959 = vadd.f32 %v3883, %v3915
    %v3960 = vadd.f32 %v3884, %v3919
    %v3961 = vadd.f32 %v3885, %v3923
    %v3962 = vadd.f32 %v3886, %v3927
    %v3963 = vadd.f32 %v3887, %v3931
    %v3964 = vadd.f32 %v3888, %v3935
    %v3965 = vadd.f32 %v3889, %v3939
    %v3966 = vadd.f32 %v3890, %v3943
    %v3967 = vadd.f32 %v3891, %v3947
    %3978 = vset.pattern.permute.xlu0 0
    %3979 = vperm.xlu0 %3978, %v3958
    %v3980 = vpop.permute.xlu0 %3979
    %3981 = vset.pattern.permute.xlu0 0
    %3982 = vperm.xlu0 %3981, %v3959
    %v3983 = vpop.permute.xlu0 %3982
    %3984 = vset.pattern.permute.xlu0 0
    %3985 = vperm.xlu0 %3984, %v3960
    %v3986 = vpop.permute.xlu0 %3985
    %3987 = vset.pattern.permute.xlu0 0
    %3988 = vperm.xlu0 %3987, %v3961
    %v3989 = vpop.permute.xlu0 %3988
    %3990 = vset.pattern.permute.xlu0 0
    %3991 = vperm.xlu0 %3990, %v3962
    %v3992 = vpop.permute.xlu0 %3991
    %3993 = vset.pattern.permute.xlu0 0
    %3994 = vperm.xlu0 %3993, %v3963
    %v3995 = vpop.permute.xlu0 %3994
    %3996 = vset.pattern.permute.xlu0 0
    %3997 = vperm.xlu0 %3996, %v3964
    %v3998 = vpop.permute.xlu0 %3997
    %3999 = vset.pattern.permute.xlu0 0
    %4000 = vperm.xlu0 %3999, %v3965
    %v4001 = vpop.permute.xlu0 %4000
    %4002 = vset.pattern.permute.xlu0 0
    %4003 = vperm.xlu0 %4002, %v3966
    %v4004 = vpop.permute.xlu0 %4003
    %4005 = vset.pattern.permute.xlu0 0
    %4006 = vperm.xlu0 %4005, %v3967
    %v4007 = vpop.permute.xlu0 %4006
    %v4008 = vlaneseq
    %v4009 = vshrl.u32 %v4008, 7
    %v4010 = vsub.s32 %v2289, %v4009
    %v4011 = vrot.slane %v3980, %v4010
    %v4012 = vlaneseq
    %v4013 = vshrl.u32 %v4012, 7
    %v4014 = vsub.s32 %v2289, %v4013
    %v4015 = vrot.slane %v3983, %v4014
    %v4016 = vlaneseq
    %v4017 = vshrl.u32 %v4016, 7
    %v4018 = vsub.s32 %v2289, %v4017
    %v4019 = vrot.slane %v3986, %v4018
    %v4020 = vlaneseq
    %v4021 = vshrl.u32 %v4020, 7
    %v4022 = vsub.s32 %v2289, %v4021
    %v4023 = vrot.slane %v3989, %v4022
    %v4024 = vlaneseq
    %v4025 = vshrl.u32 %v4024, 7
    %v4026 = vsub.s32 %v2289, %v4025
    %v4027 = vrot.slane %v3992, %v4026
    %v4028 = vlaneseq
    %v4029 = vshrl.u32 %v4028, 7
    %v4030 = vsub.s32 %v2289, %v4029
    %v4031 = vrot.slane %v3995, %v4030
    %v4032 = vlaneseq
    %v4033 = vshrl.u32 %v4032, 7
    %v4034 = vsub.s32 %v2289, %v4033
    %v4035 = vrot.slane %v3998, %v4034
    %v4036 = vlaneseq
    %v4037 = vshrl.u32 %v4036, 7
    %v4038 = vsub.s32 %v2289, %v4037
    %v4039 = vrot.slane %v4001, %v4038
    %v4040 = vlaneseq
    %v4041 = vshrl.u32 %v4040, 7
    %v4042 = vsub.s32 %v2289, %v4041
    %v4043 = vrot.slane %v4004, %v4042
    %v4044 = vlaneseq
    %v4045 = vshrl.u32 %v4044, 7
    %v4046 = vsub.s32 %v2289, %v4045
    %v4047 = vrot.slane %v4007, %v4046
    %v4048 = vsel %vm485, %v4015, %v4011
    %v4049 = vsel %vm699, %v4019, %v4048
    %v4050 = vsel %vm915, %v4023, %v4049
    %v4051 = vsel %vm1130, %v4027, %v4050
    %v4052 = vsel %vm485, %v4035, %v4031
    %v4053 = vsel %vm699, %v4039, %v4052
    %v4054 = vsel %vm915, %v4043, %v4053
    %v4055 = vsel %vm1130, %v4047, %v4054
    %v4058 = vsel %vm2349, %v4051, -inf
    %4059 = vmax.xlane.f32.xlu0 %v4058
    %v4060 = vpop.xlane.xlu0 %4059
    %v4061 = vsel %vm2349, %v4055, -inf
    %4062 = vmax.xlane.f32.xlu0 %v4061
    %v4063 = vpop.xlane.xlu0 %4062
    %v4066 = vlaneseq
    %v4067 = vshrl.u32 %v4066, 7
    %v4068 = vsub.s32 0, %v4067
    %v4069 = vrot.slane %v4060, %v4068
    %v4070 = vlaneseq
    %v4071 = vshrl.u32 %v4070, 7
    %v4072 = vsub.s32 1, %v4071
    %v4073 = vrot.slane %v4060, %v4072
    %v4074 = vlaneseq
    %v4075 = vshrl.u32 %v4074, 7
    %v4076 = vsub.s32 2, %v4075
    %v4077 = vrot.slane %v4060, %v4076
    %v4078 = vlaneseq
    %v4079 = vshrl.u32 %v4078, 7
    %v4080 = vsub.s32 3, %v4079
    %v4081 = vrot.slane %v4060, %v4080
    %v4082 = vlaneseq
    %v4083 = vshrl.u32 %v4082, 7
    %v4084 = vsub.s32 4, %v4083
    %v4085 = vrot.slane %v4060, %v4084
    %v4086 = vlaneseq
    %v4087 = vshrl.u32 %v4086, 7
    %v4088 = vsub.s32 0, %v4087
    %v4089 = vrot.slane %v4063, %v4088
    %v4090 = vlaneseq
    %v4091 = vshrl.u32 %v4090, 7
    %v4092 = vsub.s32 1, %v4091
    %v4093 = vrot.slane %v4063, %v4092
    %v4094 = vlaneseq
    %v4095 = vshrl.u32 %v4094, 7
    %v4096 = vsub.s32 2, %v4095
    %v4097 = vrot.slane %v4063, %v4096
    %v4098 = vlaneseq
    %v4099 = vshrl.u32 %v4098, 7
    %v4100 = vsub.s32 3, %v4099
    %v4101 = vrot.slane %v4063, %v4100
    %v4102 = vlaneseq
    %v4103 = vshrl.u32 %v4102, 7
    %v4104 = vsub.s32 4, %v4103
    %v4105 = vrot.slane %v4063, %v4104
    %vm4116 = vcmp.eq.f32.partialorder %v3958, %v4069
    %vm4117 = vcmp.eq.f32.partialorder %v3959, %v4073
    %vm4118 = vcmp.eq.f32.partialorder %v3960, %v4077
    %vm4119 = vcmp.eq.f32.partialorder %v3961, %v4081
    %vm4120 = vcmp.eq.f32.partialorder %v3962, %v4085
    %vm4121 = vcmp.eq.f32.partialorder %v3963, %v4089
    %vm4122 = vcmp.eq.f32.partialorder %v3964, %v4093
    %vm4123 = vcmp.eq.f32.partialorder %v3965, %v4097
    %vm4124 = vcmp.eq.f32.partialorder %v3966, %v4101
    %vm4125 = vcmp.eq.f32.partialorder %v3967, %v4105
    %v4126 = vsel %vm4116, %v2677, 5
    %v4127 = vsel %vm4117, %v2677, 5
    %v4128 = vsel %vm4118, %v2677, 5
    %v4129 = vsel %vm4119, %v2677, 5
    %v4130 = vsel %vm4120, %v2677, 5
    %v4131 = vsel %vm4121, %v2677, 5
    %v4132 = vsel %vm4122, %v2677, 5
    %v4133 = vsel %vm4123, %v2677, 5
    %v4134 = vsel %vm4124, %v2677, 5
    %v4135 = vsel %vm4125, %v2677, 5
    %4136 = vset.pattern.permute.xlu0 0
    %4137 = vperm.xlu0 %4136, %v4126
    %v4138 = vpop.permute.xlu0 %4137
    %4139 = vset.pattern.permute.xlu0 0
    %4140 = vperm.xlu0 %4139, %v4127
    %v4141 = vpop.permute.xlu0 %4140
    %4142 = vset.pattern.permute.xlu0 0
    %4143 = vperm.xlu0 %4142, %v4128
    %v4144 = vpop.permute.xlu0 %4143
    %4145 = vset.pattern.permute.xlu0 0
    %4146 = vperm.xlu0 %4145, %v4129
    %v4147 = vpop.permute.xlu0 %4146
    %4148 = vset.pattern.permute.xlu0 0
    %4149 = vperm.xlu0 %4148, %v4130
    %v4150 = vpop.permute.xlu0 %4149
    %4151 = vset.pattern.permute.xlu0 0
    %4152 = vperm.xlu0 %4151, %v4131
    %v4153 = vpop.permute.xlu0 %4152
    %4154 = vset.pattern.permute.xlu0 0
    %4155 = vperm.xlu0 %4154, %v4132
    %v4156 = vpop.permute.xlu0 %4155
    %4157 = vset.pattern.permute.xlu0 0
    %4158 = vperm.xlu0 %4157, %v4133
    %v4159 = vpop.permute.xlu0 %4158
    %4160 = vset.pattern.permute.xlu0 0
    %4161 = vperm.xlu0 %4160, %v4134
    %v4162 = vpop.permute.xlu0 %4161
    %4163 = vset.pattern.permute.xlu0 0
    %4164 = vperm.xlu0 %4163, %v4135
    %v4165 = vpop.permute.xlu0 %4164
    %v4166 = vlaneseq
    %v4167 = vshrl.u32 %v4166, 7
    %v4168 = vsub.s32 %v2289, %v4167
    %v4169 = vrot.slane %v4138, %v4168
    %v4170 = vlaneseq
    %v4171 = vshrl.u32 %v4170, 7
    %v4172 = vsub.s32 %v2289, %v4171
    %v4173 = vrot.slane %v4141, %v4172
    %v4174 = vlaneseq
    %v4175 = vshrl.u32 %v4174, 7
    %v4176 = vsub.s32 %v2289, %v4175
    %v4177 = vrot.slane %v4144, %v4176
    %v4178 = vlaneseq
    %v4179 = vshrl.u32 %v4178, 7
    %v4180 = vsub.s32 %v2289, %v4179
    %v4181 = vrot.slane %v4147, %v4180
    %v4182 = vlaneseq
    %v4183 = vshrl.u32 %v4182, 7
    %v4184 = vsub.s32 %v2289, %v4183
    %v4185 = vrot.slane %v4150, %v4184
    %v4186 = vlaneseq
    %v4187 = vshrl.u32 %v4186, 7
    %v4188 = vsub.s32 %v2289, %v4187
    %v4189 = vrot.slane %v4153, %v4188
    %v4190 = vlaneseq
    %v4191 = vshrl.u32 %v4190, 7
    %v4192 = vsub.s32 %v2289, %v4191
    %v4193 = vrot.slane %v4156, %v4192
    %v4194 = vlaneseq
    %v4195 = vshrl.u32 %v4194, 7
    %v4196 = vsub.s32 %v2289, %v4195
    %v4197 = vrot.slane %v4159, %v4196
    %v4198 = vlaneseq
    %v4199 = vshrl.u32 %v4198, 7
    %v4200 = vsub.s32 %v2289, %v4199
    %v4201 = vrot.slane %v4162, %v4200
    %v4202 = vlaneseq
    %v4203 = vshrl.u32 %v4202, 7
    %v4204 = vsub.s32 %v2289, %v4203
    %v4205 = vrot.slane %v4165, %v4204
    %v4206 = vsel %vm485, %v4173, %v4169
    %v4207 = vsel %vm699, %v4177, %v4206
    %v4208 = vsel %vm915, %v4181, %v4207
    %v4209 = vsel %vm1130, %v4185, %v4208
    %v4210 = vsel %vm485, %v4193, %v4189
    %v4211 = vsel %vm699, %v4197, %v4210
    %v4212 = vsel %vm915, %v4201, %v4211
    %v4213 = vsel %vm1130, %v4205, %v4212
    %v4214 = vsel %vm2349, %v4209, 2147483647
    %v4215 = vand.u32 %v4214, 65535
    %v4216 = vshra.s32 %v4214, 16
    %v4217 = vcvt.s32.f32 %v4215
    %v4218 = vcvt.s32.f32 %v4216
    %4219 = vmin.xlane.f32.xlu0 %v4218
    %v4220 = vpop.xlane.xlu0 %4219
    %vm4221 = vcmp.eq.f32.partialorder %v4218, %v4220
    %v4222 = vsel %vm4221, %v4217, inf
    %4223 = vmin.xlane.f32.xlu0 %v4222
    %v4224 = vpop.xlane.xlu0 %4223
    %v4225 = vcvt.f32.s32 %v4224
    %v4226 = vcvt.f32.s32 %v4220
    %v4227 = vshll.u32 %v4226, 16
    %v4228 = vadd.s32 %v4227, %v4225
    %v4229 = vsel %vm2349, %v4213, 2147483647
    %v4230 = vand.u32 %v4229, 65535
    %v4231 = vshra.s32 %v4229, 16
    %v4232 = vcvt.s32.f32 %v4230
    %v4233 = vcvt.s32.f32 %v4231
    %4234 = vmin.xlane.f32.xlu0 %v4233
    %v4235 = vpop.xlane.xlu0 %4234
    %vm4236 = vcmp.eq.f32.partialorder %v4233, %v4235
    %v4237 = vsel %vm4236, %v4232, inf
    %4238 = vmin.xlane.f32.xlu0 %v4237
    %v4239 = vpop.xlane.xlu0 %4238
    %v4240 = vcvt.f32.s32 %v4239
    %v4241 = vcvt.f32.s32 %v4235
    %v4242 = vshll.u32 %v4241, 16
    %v4243 = vadd.s32 %v4242, %v4240
    %v4244 = vadd.f32 %v4060, %v2397
    %v4245 = vadd.f32 %v4060, %v2404
    %v4246 = vadd.f32 %v4060, %v2411
    %v4247 = vadd.f32 %v4060, %v2418
    %v4248 = vadd.f32 %v4060, %v2425
    %v4249 = vadd.f32 %v4063, %v2397
    %v4250 = vadd.f32 %v4063, %v2404
    %v4251 = vadd.f32 %v4063, %v2411
    %v4252 = vadd.f32 %v4063, %v2418
    %v4253 = vadd.f32 %v4063, %v2425
    %v4254 = vlaneseq
    %v4255 = vshrl.u32 %v4254, 7
    %v4256 = vsub.s32 0, %v4255
    %v4257 = vrot.slane %v2278, %v4256
    %4259 = vbcast.lane.b32.xlu0 %v4257, 256
    %v4260 = vpop.permute.xlu0 %4259
    %v4261 = vlaneseq
    %v4262 = vshrl.u32 %v4261, 7
    %v4263 = vsub.s32 1, %v4262
    %v4264 = vrot.slane %v2278, %v4263
    %4266 = vbcast.lane.b32.xlu0 %v4264, 256
    %v4267 = vpop.permute.xlu0 %4266
    %v4270 = vlaneseq
    %v4271 = vshrl.u32 %v4270, 7
    %v4272 = vsub.s32 0, %v4271
    %v4273 = vrot.slane %v4260, %v4272
    %v4274 = vlaneseq
    %v4275 = vshrl.u32 %v4274, 7
    %v4276 = vsub.s32 1, %v4275
    %v4277 = vrot.slane %v4260, %v4276
    %v4278 = vlaneseq
    %v4279 = vshrl.u32 %v4278, 7
    %v4280 = vsub.s32 2, %v4279
    %v4281 = vrot.slane %v4260, %v4280
    %v4282 = vlaneseq
    %v4283 = vshrl.u32 %v4282, 7
    %v4284 = vsub.s32 3, %v4283
    %v4285 = vrot.slane %v4260, %v4284
    %v4286 = vlaneseq
    %v4287 = vshrl.u32 %v4286, 7
    %v4288 = vsub.s32 4, %v4287
    %v4289 = vrot.slane %v4260, %v4288
    %v4290 = vlaneseq
    %v4291 = vshrl.u32 %v4290, 7
    %v4292 = vsub.s32 0, %v4291
    %v4293 = vrot.slane %v4267, %v4292
    %v4294 = vlaneseq
    %v4295 = vshrl.u32 %v4294, 7
    %v4296 = vsub.s32 1, %v4295
    %v4297 = vrot.slane %v4267, %v4296
    %v4298 = vlaneseq
    %v4299 = vshrl.u32 %v4298, 7
    %v4300 = vsub.s32 2, %v4299
    %v4301 = vrot.slane %v4267, %v4300
    %v4302 = vlaneseq
    %v4303 = vshrl.u32 %v4302, 7
    %v4304 = vsub.s32 3, %v4303
    %v4305 = vrot.slane %v4267, %v4304
    %v4306 = vlaneseq
    %v4307 = vshrl.u32 %v4306, 7
    %v4308 = vsub.s32 4, %v4307
    %v4309 = vrot.slane %v4267, %v4308
    %v4320 = vadd.f32 %v4244, %v4273
    %v4321 = vadd.f32 %v4245, %v4277
    %v4322 = vadd.f32 %v4246, %v4281
    %v4323 = vadd.f32 %v4247, %v4285
    %v4324 = vadd.f32 %v4248, %v4289
    %v4325 = vadd.f32 %v4249, %v4293
    %v4326 = vadd.f32 %v4250, %v4297
    %v4327 = vadd.f32 %v4251, %v4301
    %v4328 = vadd.f32 %v4252, %v4305
    %v4329 = vadd.f32 %v4253, %v4309
    %4340 = vset.pattern.permute.xlu0 0
    %4341 = vperm.xlu0 %4340, %v4320
    %v4342 = vpop.permute.xlu0 %4341
    %4343 = vset.pattern.permute.xlu0 0
    %4344 = vperm.xlu0 %4343, %v4321
    %v4345 = vpop.permute.xlu0 %4344
    %4346 = vset.pattern.permute.xlu0 0
    %4347 = vperm.xlu0 %4346, %v4322
    %v4348 = vpop.permute.xlu0 %4347
    %4349 = vset.pattern.permute.xlu0 0
    %4350 = vperm.xlu0 %4349, %v4323
    %v4351 = vpop.permute.xlu0 %4350
    %4352 = vset.pattern.permute.xlu0 0
    %4353 = vperm.xlu0 %4352, %v4324
    %v4354 = vpop.permute.xlu0 %4353
    %4355 = vset.pattern.permute.xlu0 0
    %4356 = vperm.xlu0 %4355, %v4325
    %v4357 = vpop.permute.xlu0 %4356
    %4358 = vset.pattern.permute.xlu0 0
    %4359 = vperm.xlu0 %4358, %v4326
    %v4360 = vpop.permute.xlu0 %4359
    %4361 = vset.pattern.permute.xlu0 0
    %4362 = vperm.xlu0 %4361, %v4327
    %v4363 = vpop.permute.xlu0 %4362
    %4364 = vset.pattern.permute.xlu0 0
    %4365 = vperm.xlu0 %4364, %v4328
    %v4366 = vpop.permute.xlu0 %4365
    %4367 = vset.pattern.permute.xlu0 0
    %4368 = vperm.xlu0 %4367, %v4329
    %v4369 = vpop.permute.xlu0 %4368
    %v4370 = vlaneseq
    %v4371 = vshrl.u32 %v4370, 7
    %v4372 = vsub.s32 %v2289, %v4371
    %v4373 = vrot.slane %v4342, %v4372
    %v4374 = vlaneseq
    %v4375 = vshrl.u32 %v4374, 7
    %v4376 = vsub.s32 %v2289, %v4375
    %v4377 = vrot.slane %v4345, %v4376
    %v4378 = vlaneseq
    %v4379 = vshrl.u32 %v4378, 7
    %v4380 = vsub.s32 %v2289, %v4379
    %v4381 = vrot.slane %v4348, %v4380
    %v4382 = vlaneseq
    %v4383 = vshrl.u32 %v4382, 7
    %v4384 = vsub.s32 %v2289, %v4383
    %v4385 = vrot.slane %v4351, %v4384
    %v4386 = vlaneseq
    %v4387 = vshrl.u32 %v4386, 7
    %v4388 = vsub.s32 %v2289, %v4387
    %v4389 = vrot.slane %v4354, %v4388
    %v4390 = vlaneseq
    %v4391 = vshrl.u32 %v4390, 7
    %v4392 = vsub.s32 %v2289, %v4391
    %v4393 = vrot.slane %v4357, %v4392
    %v4394 = vlaneseq
    %v4395 = vshrl.u32 %v4394, 7
    %v4396 = vsub.s32 %v2289, %v4395
    %v4397 = vrot.slane %v4360, %v4396
    %v4398 = vlaneseq
    %v4399 = vshrl.u32 %v4398, 7
    %v4400 = vsub.s32 %v2289, %v4399
    %v4401 = vrot.slane %v4363, %v4400
    %v4402 = vlaneseq
    %v4403 = vshrl.u32 %v4402, 7
    %v4404 = vsub.s32 %v2289, %v4403
    %v4405 = vrot.slane %v4366, %v4404
    %v4406 = vlaneseq
    %v4407 = vshrl.u32 %v4406, 7
    %v4408 = vsub.s32 %v2289, %v4407
    %v4409 = vrot.slane %v4369, %v4408
    %v4410 = vsel %vm485, %v4377, %v4373
    %v4411 = vsel %vm699, %v4381, %v4410
    %v4412 = vsel %vm915, %v4385, %v4411
    %v4413 = vsel %vm1130, %v4389, %v4412
    %v4414 = vsel %vm485, %v4397, %v4393
    %v4415 = vsel %vm699, %v4401, %v4414
    %v4416 = vsel %vm915, %v4405, %v4415
    %v4417 = vsel %vm1130, %v4409, %v4416
    %v4420 = vsel %vm2349, %v4413, -inf
    %4421 = vmax.xlane.f32.xlu0 %v4420
    %v4422 = vpop.xlane.xlu0 %4421
    %v4423 = vsel %vm2349, %v4417, -inf
    %4424 = vmax.xlane.f32.xlu0 %v4423
    %v4425 = vpop.xlane.xlu0 %4424
    %v4428 = vlaneseq
    %v4429 = vshrl.u32 %v4428, 7
    %v4430 = vsub.s32 0, %v4429
    %v4431 = vrot.slane %v4422, %v4430
    %v4432 = vlaneseq
    %v4433 = vshrl.u32 %v4432, 7
    %v4434 = vsub.s32 1, %v4433
    %v4435 = vrot.slane %v4422, %v4434
    %v4436 = vlaneseq
    %v4437 = vshrl.u32 %v4436, 7
    %v4438 = vsub.s32 2, %v4437
    %v4439 = vrot.slane %v4422, %v4438
    %v4440 = vlaneseq
    %v4441 = vshrl.u32 %v4440, 7
    %v4442 = vsub.s32 3, %v4441
    %v4443 = vrot.slane %v4422, %v4442
    %v4444 = vlaneseq
    %v4445 = vshrl.u32 %v4444, 7
    %v4446 = vsub.s32 4, %v4445
    %v4447 = vrot.slane %v4422, %v4446
    %v4448 = vlaneseq
    %v4449 = vshrl.u32 %v4448, 7
    %v4450 = vsub.s32 0, %v4449
    %v4451 = vrot.slane %v4425, %v4450
    %v4452 = vlaneseq
    %v4453 = vshrl.u32 %v4452, 7
    %v4454 = vsub.s32 1, %v4453
    %v4455 = vrot.slane %v4425, %v4454
    %v4456 = vlaneseq
    %v4457 = vshrl.u32 %v4456, 7
    %v4458 = vsub.s32 2, %v4457
    %v4459 = vrot.slane %v4425, %v4458
    %v4460 = vlaneseq
    %v4461 = vshrl.u32 %v4460, 7
    %v4462 = vsub.s32 3, %v4461
    %v4463 = vrot.slane %v4425, %v4462
    %v4464 = vlaneseq
    %v4465 = vshrl.u32 %v4464, 7
    %v4466 = vsub.s32 4, %v4465
    %v4467 = vrot.slane %v4425, %v4466
    %vm4478 = vcmp.eq.f32.partialorder %v4320, %v4431
    %vm4479 = vcmp.eq.f32.partialorder %v4321, %v4435
    %vm4480 = vcmp.eq.f32.partialorder %v4322, %v4439
    %vm4481 = vcmp.eq.f32.partialorder %v4323, %v4443
    %vm4482 = vcmp.eq.f32.partialorder %v4324, %v4447
    %vm4483 = vcmp.eq.f32.partialorder %v4325, %v4451
    %vm4484 = vcmp.eq.f32.partialorder %v4326, %v4455
    %vm4485 = vcmp.eq.f32.partialorder %v4327, %v4459
    %vm4486 = vcmp.eq.f32.partialorder %v4328, %v4463
    %vm4487 = vcmp.eq.f32.partialorder %v4329, %v4467
    %v4488 = vsel %vm4478, %v2677, 5
    %v4489 = vsel %vm4479, %v2677, 5
    %v4490 = vsel %vm4480, %v2677, 5
    %v4491 = vsel %vm4481, %v2677, 5
    %v4492 = vsel %vm4482, %v2677, 5
    %v4493 = vsel %vm4483, %v2677, 5
    %v4494 = vsel %vm4484, %v2677, 5
    %v4495 = vsel %vm4485, %v2677, 5
    %v4496 = vsel %vm4486, %v2677, 5
    %v4497 = vsel %vm4487, %v2677, 5
    %4498 = vset.pattern.permute.xlu0 0
    %4499 = vperm.xlu0 %4498, %v4488
    %v4500 = vpop.permute.xlu0 %4499
    %4501 = vset.pattern.permute.xlu0 0
    %4502 = vperm.xlu0 %4501, %v4489
    %v4503 = vpop.permute.xlu0 %4502
    %4504 = vset.pattern.permute.xlu0 0
    %4505 = vperm.xlu0 %4504, %v4490
    %v4506 = vpop.permute.xlu0 %4505
    %4507 = vset.pattern.permute.xlu0 0
    %4508 = vperm.xlu0 %4507, %v4491
    %v4509 = vpop.permute.xlu0 %4508
    %4510 = vset.pattern.permute.xlu0 0
    %4511 = vperm.xlu0 %4510, %v4492
    %v4512 = vpop.permute.xlu0 %4511
    %4513 = vset.pattern.permute.xlu0 0
    %4514 = vperm.xlu0 %4513, %v4493
    %v4515 = vpop.permute.xlu0 %4514
    %4516 = vset.pattern.permute.xlu0 0
    %4517 = vperm.xlu0 %4516, %v4494
    %v4518 = vpop.permute.xlu0 %4517
    %4519 = vset.pattern.permute.xlu0 0
    %4520 = vperm.xlu0 %4519, %v4495
    %v4521 = vpop.permute.xlu0 %4520
    %4522 = vset.pattern.permute.xlu0 0
    %4523 = vperm.xlu0 %4522, %v4496
    %v4524 = vpop.permute.xlu0 %4523
    %4525 = vset.pattern.permute.xlu0 0
    %4526 = vperm.xlu0 %4525, %v4497
    %v4527 = vpop.permute.xlu0 %4526
    %v4528 = vlaneseq
    %v4529 = vshrl.u32 %v4528, 7
    %v4530 = vsub.s32 %v2289, %v4529
    %v4531 = vrot.slane %v4500, %v4530
    %v4532 = vlaneseq
    %v4533 = vshrl.u32 %v4532, 7
    %v4534 = vsub.s32 %v2289, %v4533
    %v4535 = vrot.slane %v4503, %v4534
    %v4536 = vlaneseq
    %v4537 = vshrl.u32 %v4536, 7
    %v4538 = vsub.s32 %v2289, %v4537
    %v4539 = vrot.slane %v4506, %v4538
    %v4540 = vlaneseq
    %v4541 = vshrl.u32 %v4540, 7
    %v4542 = vsub.s32 %v2289, %v4541
    %v4543 = vrot.slane %v4509, %v4542
    %v4544 = vlaneseq
    %v4545 = vshrl.u32 %v4544, 7
    %v4546 = vsub.s32 %v2289, %v4545
    %v4547 = vrot.slane %v4512, %v4546
    %v4548 = vlaneseq
    %v4549 = vshrl.u32 %v4548, 7
    %v4550 = vsub.s32 %v2289, %v4549
    %v4551 = vrot.slane %v4515, %v4550
    %v4552 = vlaneseq
    %v4553 = vshrl.u32 %v4552, 7
    %v4554 = vsub.s32 %v2289, %v4553
    %v4555 = vrot.slane %v4518, %v4554
    %v4556 = vlaneseq
    %v4557 = vshrl.u32 %v4556, 7
    %v4558 = vsub.s32 %v2289, %v4557
    %v4559 = vrot.slane %v4521, %v4558
    %v4560 = vlaneseq
    %v4561 = vshrl.u32 %v4560, 7
    %v4562 = vsub.s32 %v2289, %v4561
    %v4563 = vrot.slane %v4524, %v4562
    %v4564 = vlaneseq
    %v4565 = vshrl.u32 %v4564, 7
    %v4566 = vsub.s32 %v2289, %v4565
    %v4567 = vrot.slane %v4527, %v4566
    %v4568 = vsel %vm485, %v4535, %v4531
    %v4569 = vsel %vm699, %v4539, %v4568
    %v4570 = vsel %vm915, %v4543, %v4569
    %v4571 = vsel %vm1130, %v4547, %v4570
    %v4572 = vsel %vm485, %v4555, %v4551
    %v4573 = vsel %vm699, %v4559, %v4572
    %v4574 = vsel %vm915, %v4563, %v4573
    %v4575 = vsel %vm1130, %v4567, %v4574
    %v4576 = vsel %vm2349, %v4571, 2147483647
    %v4577 = vand.u32 %v4576, 65535
    %v4578 = vshra.s32 %v4576, 16
    %v4579 = vcvt.s32.f32 %v4577
    %v4580 = vcvt.s32.f32 %v4578
    %4581 = vmin.xlane.f32.xlu0 %v4580
    %v4582 = vpop.xlane.xlu0 %4581
    %vm4583 = vcmp.eq.f32.partialorder %v4580, %v4582
    %v4584 = vsel %vm4583, %v4579, inf
    %4585 = vmin.xlane.f32.xlu0 %v4584
    %v4586 = vpop.xlane.xlu0 %4585
    %v4587 = vcvt.f32.s32 %v4586
    %v4588 = vcvt.f32.s32 %v4582
    %v4589 = vshll.u32 %v4588, 16
    %v4590 = vadd.s32 %v4589, %v4587
    %v4591 = vsel %vm2349, %v4575, 2147483647
    %v4592 = vand.u32 %v4591, 65535
    %v4593 = vshra.s32 %v4591, 16
    %v4594 = vcvt.s32.f32 %v4592
    %v4595 = vcvt.s32.f32 %v4593
    %4596 = vmin.xlane.f32.xlu0 %v4595
    %v4597 = vpop.xlane.xlu0 %4596
    %vm4598 = vcmp.eq.f32.partialorder %v4595, %v4597
    %v4599 = vsel %vm4598, %v4594, inf
    %4600 = vmin.xlane.f32.xlu0 %v4599
    %v4601 = vpop.xlane.xlu0 %4600
    %v4602 = vcvt.f32.s32 %v4601
    %v4603 = vcvt.f32.s32 %v4597
    %v4604 = vshll.u32 %v4603, 16
    %v4605 = vadd.s32 %v4604, %v4602
    %v4606 = vld [vmem:[%s10] sm:$0x1]
    %v4608 = vlaneseq
    %v4609 = vshrl.u32 %v4608, 7
    %v4610 = vsub.s32 0, %v4609
    %v4611 = vrot.slane %v4606, %v4610
    %4613 = vbcast.lane.b32.xlu0 %v4611, 256
    %v4614 = vpop.permute.xlu0 %4613
    %v4616 = vadd.f32 %v4422, %v4614
    %v4617 = vadd.f32 %v4425, %v4614
    %4620 = vset.pattern.permute.xlu0 0
    %4621 = vperm.xlu0 %4620, %v4616
    %v4622 = vpop.permute.xlu0 %4621
    %4623 = vset.pattern.permute.xlu0 0
    %4624 = vperm.xlu0 %4623, %v4617
    %v4625 = vpop.permute.xlu0 %4624
    %v4626 = vlaneseq
    %v4627 = vshrl.u32 %v4626, 7
    %v4628 = vsub.s32 %v2289, %v4627
    %v4629 = vrot.slane %v4622, %v4628
    %v4630 = vlaneseq
    %v4631 = vshrl.u32 %v4630, 7
    %v4632 = vsub.s32 %v2289, %v4631
    %v4633 = vrot.slane %v4625, %v4632
    %v4634 = vsel %vm485, %v4633, %v4629
    %vm4636 = vcmask 33792
    %v4637 = vsel %vm4636, %v4634, -inf
    %4638 = vmax.xlane.f32.xlu0 %v4637
    %v4639 = vpop.xlane.xlu0 %4638
    %v4641 = vlaneseq
    %v4642 = vshrl.u32 %v4641, 7
    %v4643 = vsub.s32 0, %v4642
    %v4644 = vrot.slane %v4639, %v4643
    %v4645 = vlaneseq
    %v4646 = vshrl.u32 %v4645, 7
    %v4647 = vsub.s32 1, %v4646
    %v4648 = vrot.slane %v4639, %v4647
    %vm4651 = vcmp.eq.f32.partialorder %v4616, %v4644
    %vm4652 = vcmp.eq.f32.partialorder %v4617, %v4648
    %v4653 = vsel %vm4651, %v2677, 5
    %v4654 = vsel %vm4652, %v2677, 5
    %4655 = vset.pattern.permute.xlu0 0
    %4656 = vperm.xlu0 %4655, %v4653
    %v4657 = vpop.permute.xlu0 %4656
    %4658 = vset.pattern.permute.xlu0 0
    %4659 = vperm.xlu0 %4658, %v4654
    %v4660 = vpop.permute.xlu0 %4659
    %v4661 = vlaneseq
    %v4662 = vshrl.u32 %v4661, 7
    %v4663 = vsub.s32 %v2289, %v4662
    %v4664 = vrot.slane %v4657, %v4663
    %v4665 = vlaneseq
    %v4666 = vshrl.u32 %v4665, 7
    %v4667 = vsub.s32 %v2289, %v4666
    %v4668 = vrot.slane %v4660, %v4667
    %v4669 = vsel %vm485, %v4668, %v4664
    %v4670 = vsel %vm4636, %v4669, 2147483647
    %v4671 = vand.u32 %v4670, 65535
    %v4672 = vshra.s32 %v4670, 16
    %v4673 = vcvt.s32.f32 %v4671
    %v4674 = vcvt.s32.f32 %v4672
    %4675 = vmin.xlane.f32.xlu0 %v4674
    %v4676 = vpop.xlane.xlu0 %4675
    %vm4677 = vcmp.eq.f32.partialorder %v4674, %v4676
    %v4678 = vsel %vm4677, %v4673, inf
    %4679 = vmin.xlane.f32.xlu0 %v4678
    %v4680 = vpop.xlane.xlu0 %4679
    %v4681 = vcvt.f32.s32 %v4680
    %v4682 = vcvt.f32.s32 %v4676
    %v4683 = vshll.u32 %v4682, 16
    %v4684 = vadd.s32 %v4683, %v4681
    %vm4685 = vcmp.eq.s32.totalorder %v2289, %v4684
    %v4686 = vlaneseq
    %v4687 = vshrl.u32 %v4686, 7
    %v4688 = vsub.s32 %v2289, %v4687
    %v4689 = vrot.slane %v4590, %v4688
    %v4690 = vlaneseq
    %v4691 = vshrl.u32 %v4690, 7
    %v4692 = vsub.s32 %v2289, %v4691
    %v4693 = vrot.slane %v4605, %v4692
    %v4694 = vsel %vm485, %v4693, %v4689
    %v4695 = vsel %vm4685, %v4694, 0
    %v4696 = vsel %vm4636, %v4695, 0
    %v4697 = vand.u32 %v4696, 65535
    %v4698 = vshrl.u32 %v4696, 16
    %v4699 = vcvt.s32.f32 %v4697
    %v4700 = vcvt.s32.f32 %v4698
    %4701 = vadd.xlane.f32.xlu0 %v4699
    %v4702 = vpop.xlane.xlu0 %4701
    %4703 = vadd.xlane.f32.xlu0 %v4700
    %v4704 = vpop.xlane.xlu0 %4703
    %v4705 = vcvt.f32.s32 %v4702
    %v4706 = vcvt.f32.s32 %v4704
    %v4707 = vshll.u32 %v4706, 16
    %v4708 = vadd.s32 %v4707, %v4705
    %vm4709 = vcmp.eq.s32.totalorder %v2289, %v4708
    %v4710 = vlaneseq
    %v4711 = vshrl.u32 %v4710, 7
    %v4712 = vsub.s32 %v2289, %v4711
    %v4713 = vrot.slane %v4228, %v4712
    %v4714 = vlaneseq
    %v4715 = vshrl.u32 %v4714, 7
    %v4716 = vsub.s32 %v2289, %v4715
    %v4717 = vrot.slane %v4243, %v4716
    %v4718 = vsel %vm485, %v4717, %v4713
    %v4719 = vsel %vm4709, %v4718, 0
    %v4720 = vsel %vm4636, %v4719, 0
    %v4721 = vand.u32 %v4720, 65535
    %v4722 = vshrl.u32 %v4720, 16
    %v4723 = vcvt.s32.f32 %v4721
    %v4724 = vcvt.s32.f32 %v4722
    %4725 = vadd.xlane.f32.xlu0 %v4723
    %v4726 = vpop.xlane.xlu0 %4725
    %4727 = vadd.xlane.f32.xlu0 %v4724
    %v4728 = vpop.xlane.xlu0 %4727
    %v4729 = vcvt.f32.s32 %v4726
    %v4730 = vcvt.f32.s32 %v4728
    %v4731 = vshll.u32 %v4730, 16
    %v4732 = vadd.s32 %v4731, %v4729
    %vm4733 = vcmp.eq.s32.totalorder %v2289, %v4732
    %v4734 = vlaneseq
    %v4735 = vshrl.u32 %v4734, 7
    %v4736 = vsub.s32 %v2289, %v4735
    %v4737 = vrot.slane %v3866, %v4736
    %v4738 = vlaneseq
    %v4739 = vshrl.u32 %v4738, 7
    %v4740 = vsub.s32 %v2289, %v4739
    %v4741 = vrot.slane %v3881, %v4740
    %v4742 = vsel %vm485, %v4741, %v4737
    %v4743 = vsel %vm4733, %v4742, 0
    %v4744 = vsel %vm4636, %v4743, 0
    %v4745 = vand.u32 %v4744, 65535
    %v4746 = vshrl.u32 %v4744, 16
    %v4747 = vcvt.s32.f32 %v4745
    %v4748 = vcvt.s32.f32 %v4746
    %4749 = vadd.xlane.f32.xlu0 %v4747
    %v4750 = vpop.xlane.xlu0 %4749
    %4751 = vadd.xlane.f32.xlu0 %v4748
    %v4752 = vpop.xlane.xlu0 %4751
    %v4753 = vcvt.f32.s32 %v4750
    %v4754 = vcvt.f32.s32 %v4752
    %v4755 = vshll.u32 %v4754, 16
    %v4756 = vadd.s32 %v4755, %v4753
    %vm4757 = vcmp.eq.s32.totalorder %v2289, %v4756
    %v4758 = vlaneseq
    %v4759 = vshrl.u32 %v4758, 7
    %v4760 = vsub.s32 %v2289, %v4759
    %v4761 = vrot.slane %v3504, %v4760
    %v4762 = vlaneseq
    %v4763 = vshrl.u32 %v4762, 7
    %v4764 = vsub.s32 %v2289, %v4763
    %v4765 = vrot.slane %v3519, %v4764
    %v4766 = vsel %vm485, %v4765, %v4761
    %v4767 = vsel %vm4757, %v4766, 0
    %v4768 = vsel %vm4636, %v4767, 0
    %v4769 = vand.u32 %v4768, 65535
    %v4770 = vshrl.u32 %v4768, 16
    %v4771 = vcvt.s32.f32 %v4769
    %v4772 = vcvt.s32.f32 %v4770
    %4773 = vadd.xlane.f32.xlu0 %v4771
    %v4774 = vpop.xlane.xlu0 %4773
    %4775 = vadd.xlane.f32.xlu0 %v4772
    %v4776 = vpop.xlane.xlu0 %4775
    %v4777 = vcvt.f32.s32 %v4774
    %v4778 = vcvt.f32.s32 %v4776
    %v4779 = vshll.u32 %v4778, 16
    %v4780 = vadd.s32 %v4779, %v4777
    %vm4781 = vcmp.eq.s32.totalorder %v2289, %v4780
    %v4782 = vlaneseq
    %v4783 = vshrl.u32 %v4782, 7
    %v4784 = vsub.s32 %v2289, %v4783
    %v4785 = vrot.slane %v3142, %v4784
    %v4786 = vlaneseq
    %v4787 = vshrl.u32 %v4786, 7
    %v4788 = vsub.s32 %v2289, %v4787
    %v4789 = vrot.slane %v3157, %v4788
    %v4790 = vsel %vm485, %v4789, %v4785
    %v4791 = vsel %vm4781, %v4790, 0
    %v4792 = vsel %vm4636, %v4791, 0
    %v4793 = vand.u32 %v4792, 65535
    %v4794 = vshrl.u32 %v4792, 16
    %v4795 = vcvt.s32.f32 %v4793
    %v4796 = vcvt.s32.f32 %v4794
    %4797 = vadd.xlane.f32.xlu0 %v4795
    %v4798 = vpop.xlane.xlu0 %4797
    %4799 = vadd.xlane.f32.xlu0 %v4796
    %v4800 = vpop.xlane.xlu0 %4799
    %v4801 = vcvt.f32.s32 %v4798
    %v4802 = vcvt.f32.s32 %v4800
    %v4803 = vshll.u32 %v4802, 16
    %v4804 = vadd.s32 %v4803, %v4801
    %vm4805 = vcmp.eq.s32.totalorder %v2289, %v4804
    %v4806 = vlaneseq
    %v4807 = vshrl.u32 %v4806, 7
    %v4808 = vsub.s32 %v2289, %v4807
    %v4809 = vrot.slane %v2780, %v4808
    %v4810 = vlaneseq
    %v4811 = vshrl.u32 %v4810, 7
    %v4812 = vsub.s32 %v2289, %v4811
    %v4813 = vrot.slane %v2795, %v4812
    %v4814 = vsel %vm485, %v4813, %v4809
    %v4815 = vsel %vm4805, %v4814, 0
    %v4816 = vsel %vm4636, %v4815, 0
    %v4817 = vand.u32 %v4816, 65535
    %v4818 = vshrl.u32 %v4816, 16
    %v4819 = vcvt.s32.f32 %v4817
    %v4820 = vcvt.s32.f32 %v4818
    %4821 = vadd.xlane.f32.xlu0 %v4819
    %v4822 = vpop.xlane.xlu0 %4821
    %4823 = vadd.xlane.f32.xlu0 %v4820
    %v4824 = vpop.xlane.xlu0 %4823
    %v4825 = vcvt.f32.s32 %v4822
    %v4826 = vcvt.f32.s32 %v4824
    %v4827 = vshll.u32 %v4826, 16
    %v4828 = vadd.s32 %v4827, %v4825
    %vm4829 = vcmp.eq.s32.totalorder %v2289, %v4828
    %v4830 = vlaneseq
    %v4831 = vshrl.u32 %v4830, 7
    %v4832 = vsub.s32 %v2289, %v4831
    %v4833 = vrot.slane %v2374, %v4832
    %v4834 = vlaneseq
    %v4835 = vshrl.u32 %v4834, 7
    %v4836 = vsub.s32 %v2289, %v4835
    %v4837 = vrot.slane %v2389, %v4836
    %v4838 = vsel %vm485, %v4837, %v4833
    %v4839 = vsel %vm4829, %v4838, 0
    %v4840 = vsel %vm4636, %v4839, 0
    %v4841 = vand.u32 %v4840, 65535
    %v4842 = vshrl.u32 %v4840, 16
    %v4843 = vcvt.s32.f32 %v4841
    %v4844 = vcvt.s32.f32 %v4842
    %4845 = vadd.xlane.f32.xlu0 %v4843
    %v4846 = vpop.xlane.xlu0 %4845
    %4847 = vadd.xlane.f32.xlu0 %v4844
    %v4848 = vpop.xlane.xlu0 %4847
    %v4849 = vcvt.f32.s32 %v4846
    %v4850 = vcvt.f32.s32 %v4848
    %v4851 = vshll.u32 %v4850, 16
    %v4852 = vadd.s32 %v4851, %v4849
    %vm4853 = vcmask 7168
    %v4854 = vsel %vm4853, %v4852, %v4828
    %vm4855 = vcmask 15360
    %v4856 = vsel %vm4855, %v4854, %v4804
    %vm4857 = vcmask 23552
    %v4858 = vsel %vm4857, %v4856, %v4780
    %vm4859 = vcmask 31744
    %v4860 = vsel %vm4859, %v4858, %v4756
    %vm4861 = vcmask 39936
    %v4862 = vsel %vm4861, %v4860, %v4732
    %vm4863 = vcmask 48128
    %v4864 = vsel %vm4863, %v4862, %v4708
    %vm4865 = vcmask 56320
    %v4866 = vsel %vm4865, %v4864, %v4684
    %vm4867 = vcmask 58368
    %4868 = vst.msk [vmem:[#allocation13] sm:$0x3] %vm4867, %v4866
    // Predicated region
    $region74: #{tpu_custom_call.1} parent=1 // pred_check
      _
    $region75: #{tpu_custom_call.1} parent=1 // pred_check_branch
      %4870 = sbr.rel (0) target = $region77
    $region76: #{tpu_custom_call.1} parent=1 // pred_region
      %s4872 = ssub.s32 32, 32
      %4873 = vsyncadd [#allocation4], %s4872
      %s4875 = sshll.u32 [#allocation13], 4
      %s4876 = int_to_ptr.vmem [resolvable:$true] %s4875
      %4878 = dma.vmem_to_hbm [thread:$0]  %s4876, 32, %s12, [#allocation4]
    $region77: #{tpu_custom_call.1} parent=1 // pred_fallthru
      _
    // Predicated region
    $region78: #{tpu_custom_call.1} parent=1 // pred_check
      _
    $region79: #{tpu_custom_call.1} parent=1 // pred_check_branch
      %4880 = sbr.rel (0) target = $region81
    $region80: #{tpu_custom_call.1} parent=1 // pred_region
      %4881 = dma.done [#allocation4], 32
    $region81: #{tpu_custom_call.1} parent=1 // pred_fallthru
      _
    %4882 = vsyncpa [#allocation3], 1
    %4883 = vsyncpa [#allocation6], 1
    %4884 = vsyncpa [#allocation9], 1
    %4885 = vsyncpa [#allocation12], 1
    %4886 = vsyncpa [#allocation4], 1

</llo_original>
